<compile_context>
chip_gen: v7x
topology: tpu7x:2x2x1
jax: 0.10.0
libtpu: 0.0.40
codegen_flags: <defaults>
</compile_context>

<pallas_src>
import numpy as np
import jax
import jax.numpy as jnp
from jax import lax
from jax.experimental import pallas as pl
from jax.experimental.pallas import tpu as pltpu

NUM_CLASSES = 10
BATCH_TILE = 2          # images per grid step (grid axis is "parallel")

# (kernel, stride, pad, Cin, Cout) for the 4 Conv2d+ReLU stages of FashionMnistNet.
CONVS = (
    dict(k=5, s=2, p=2, cin=1,  cout=8),
    dict(k=3, s=2, p=1, cin=8,  cout=16),
    dict(k=3, s=2, p=1, cin=16, cout=32),
    dict(k=3, s=2, p=1, cin=32, cout=32),
)


def _conv_out(n, k, s, p):
    return (n + 2 * p - k) // s + 1


# ----------------------------------------------------------------------------
# Fused kernel: whole network for one batch tile.
# Activations live as (C, nt*H*W) values; every conv is a sum over taps of
#   W_t @ (act @ Sel_t)
# where Sel_t is a constant 0/1 gather matrix with the conv zero-padding folded
# in.  Only 2D matmuls + bias + ReLU -> no wasted K lanes, no scratch, no
# strided accesses.
# ----------------------------------------------------------------------------
def _fused_net_kernel(patch1_ref, w1_ref, b1_ref,
                      sel2_ref, w2_ref, b2_ref,
                      sel3_ref, w3_ref, b3_ref,
                      sel4_ref, w4_ref, b4_ref,
                      pool_ref, wfc_ref, bfc_ref, o_ref):
    f32 = jnp.float32

    # Layer 1: the wrapper already provides the (K, nt*ho*wo) im2col patch.
    act = jnp.dot(w1_ref[...], patch1_ref[...], preferred_element_type=f32)
    act = jnp.maximum(act + b1_ref[...], 0.0)                     # (8, nt*64)

    # Layers 2..4: per-tap gather matmul + weight matmul, accumulated.
    for sel_ref, w_ref, b_ref in ((sel2_ref, w2_ref, b2_ref),
                                  (sel3_ref, w3_ref, b3_ref),
                                  (sel4_ref, w4_ref, b4_ref)):
        n_taps = sel_ref.shape[0]                                 # 9 (static unroll)
        acc = None
        for t in range(n_taps):
            g = jnp.dot(act, sel_ref[t], preferred_element_type=f32)   # gather taps
            c = jnp.dot(w_ref[t], g, preferred_element_type=f32)       # conv weights
            acc = c if acc is None else acc + c
        act = jnp.maximum(acc + b_ref[...], 0.0)

    # Adaptive avg pool (constant averaging matrix) + Linear, fused epilogue.
    pooled = jnp.dot(act, pool_ref[...], preferred_element_type=f32)    # (32, nt)
    logits = jnp.dot(wfc_ref[...], pooled, preferred_element_type=f32) + bfc_ref[...]
    o_ref[...] = logits[None]                                     # (1, 10, nt)


# ----------------------------------------------------------------------------
# One-time host-side packing: real-size weights + constant gather/pool matrices.
# ----------------------------------------------------------------------------
def prepare(params, height, width, nt=BATCH_TILE):
    consts = {}

    # Per-layer spatial geometry.
    hs, ws = [height], [width]
    for cfg in CONVS:
        hs.append(_conv_out(hs[-1], cfg["k"], cfg["s"], cfg["p"]))
        ws.append(_conv_out(ws[-1], cfg["k"], cfg["s"], cfg["p"]))

    # Layer 1: (Cout, k*k) with K padded only to a sublane multiple (25 -> 32).
    cfg = CONVS[0]
    k = cfg["k"]
    kk_pad = ((k * k + 7) // 8) * 8
    w1 = np.zeros((cfg["cout"], kk_pad), np.float32)
    w1[:, :k * k] = np.asarray(params["c1_w"], np.float32).reshape(cfg["cout"], k * k)
    consts["w1"] = w1
    consts["b1"] = np.asarray(params["c1_b"], np.float32).reshape(-1, 1)

    # Layers 2..4: tap-major weights (k*k, Cout, Cin) + 0/1 gather matrices
    # (k*k, nt*Hi*Wi, nt*Ho*Wo) with stride-2 + conv zero-padding folded in.
    for li in range(1, 4):
        cfg = CONVS[li]
        k, s, p = cfg["k"], cfg["s"], cfg["p"]
        hi, wi, ho, wo = hs[li], ws[li], hs[li + 1], ws[li + 1]
        w = np.asarray(params[f"c{li + 1}_w"], np.float32)        # (Cout, Cin, k, k)
        consts[f"w{li + 1}"] = np.ascontiguousarray(
            np.transpose(w.reshape(cfg["cout"], cfg["cin"], k * k), (2, 0, 1)))
        consts[f"b{li + 1}"] = np.asarray(
            params[f"c{li + 1}_b"], np.float32).reshape(-1, 1)

        sel = np.zeros((k * k, nt * hi * wi, nt * ho * wo), np.float32)
        for kh in range(k):
            for kw in range(k):
                t = kh * k + kw
                for n in range(nt):
                    for i in range(ho):
                        y = s * i + kh - p
                        if not (0 <= y < hi):
                            continue
                        for j in range(wo):
                            x = s * j + kw - p
                            if not (0 <= x < wi):
                                continue
                            sel[t, n * hi * wi + y * wi + x,
                                n * ho * wo + i * wo + j] = 1.0
        consts[f"sel{li + 1}"] = sel

    # Adaptive avg pool to 1x1 as an averaging matrix, then FC (PyTorch layouts).
    s4 = hs[4] * ws[4]
    pool = np.zeros((nt * s4, nt), np.float32)
    for n in range(nt):
        pool[n * s4:(n + 1) * s4, n] = 1.0 / s4
    consts["pool"] = pool
    consts["wfc"] = np.asarray(params["fc_w"], np.float32)        # (10, 32)
    consts["bfc"] = np.asarray(params["fc_b"], np.float32).reshape(-1, 1)

    return jax.tree_util.tree_map(jnp.asarray, consts)


# ----------------------------------------------------------------------------
# Forward wrapper: layer-1 im2col (layout plumbing) + single pallas_call.
# ----------------------------------------------------------------------------
@jax.jit
def fashion_mnist_net(consts, x_nchw):
    x = x_nchw.astype(jnp.float32)
    n, cin, h, w = x.shape
    assert cin == 1

    nt = consts["pool"].shape[1]                      # batch tile (static)
    assert n % nt == 0, f"batch {n} must be a multiple of the batch tile {nt}"
    num_tiles = n // nt

    cfg = CONVS[0]
    k, s, p = cfg["k"], cfg["s"], cfg["p"]
    ho, wo = _conv_out(h, k, s, p), _conv_out(w, k, s, p)
    assert consts["sel2"].shape[1] == nt * ho * wo, \
        "constants were built for a different input size"

    # Layer-1 im2col in the wrapper: (k*k, N*ho*wo), ~13 KB (vs ~400 KB before).
    xpad = jnp.pad(x[:, 0], ((0, 0), (p, p), (p, p)))
    cols = []
    for kh in range(k):
        for kw in range(k):
            cols.append(lax.slice(xpad, (0, kh, kw),
                                  (n, kh + s * (ho - 1) + 1, kw + s * (wo - 1) + 1),
                                  (1, s, s)))                     # (N, ho, wo)
    patch1 = jnp.stack(cols, axis=0).reshape(k * k, n * ho * wo)
    kk_pad = consts["w1"].shape[1]
    patch1 = jnp.pad(patch1, ((0, kk_pad - k * k), (0, 0)))

    inputs = (patch1,
              consts["w1"], consts["b1"],
              consts["sel2"], consts["w2"], consts["b2"],
              consts["sel3"], consts["w3"], consts["b3"],
              consts["sel4"], consts["w4"], consts["b4"],
              consts["pool"], consts["wfc"], consts["bfc"])

    def _const_spec(a):
        nd = a.ndim
        # Whole-array block, same index every step -> stays VMEM-resident.
        return pl.BlockSpec(a.shape, lambda t: (0,) * nd)

    in_specs = [pl.BlockSpec((kk_pad, nt * ho * wo), lambda t: (0, t))]
    in_specs += [_const_spec(a) for a in inputs[1:]]

    out = pl.pallas_call(
        _fused_net_kernel,
        out_shape=jax.ShapeDtypeStruct((num_tiles, NUM_CLASSES, nt), jnp.float32),
        grid=(num_tiles,),
        in_specs=in_specs,
        out_specs=pl.BlockSpec((1, NUM_CLASSES, nt), lambda t: (t, 0, 0)),
        compiler_params=pltpu.CompilerParams(
            dimension_semantics=("parallel",)),
    )(*inputs)

    # (num_tiles, 10, nt) -> (N, 10)
    return jnp.transpose(out, (0, 2, 1)).reshape(n, NUM_CLASSES)


# ----------------------------------------------------------------------------
# Parameter init (PyTorch layouts) and a pure-JAX reference for sanity checking.
# ----------------------------------------------------------------------------
def init_params(key):
    ks = jax.random.split(key, 10)

    def w(k_, shape, fan_in):
        return jax.random.normal(k_, shape, jnp.float32) * (1.0 / fan_in) ** 0.5

    return {
        "c1_w": w(ks[0], (8, 1, 5, 5), 25),
        "c1_b": w(ks[1], (8,), 25),
        "c2_w": w(ks[2], (16, 8, 3, 3), 72),
        "c2_b": w(ks[3], (16,), 72),
        "c3_w": w(ks[4], (32, 16, 3, 3), 144),
        "c3_b": w(ks[5], (32,), 144),
        "c4_w": w(ks[6], (32, 32, 3, 3), 288),
        "c4_b": w(ks[7], (32,), 288),
        "fc_w": w(ks[8], (10, 32), 32),   # PyTorch Linear: (out, in)
        "fc_b": w(ks[9], (10,), 32),
    }


def reference(params, x_nchw):
    x = jnp.transpose(x_nchw, (0, 2, 3, 1)).astype(jnp.float32)

    def conv(x, w_oihw, b, stride, pad):
        w = jnp.transpose(w_oihw, (2, 3, 1, 0))  # HWIO
        y = lax.conv_general_dilated(
            x, w, window_strides=(stride, stride),
            padding=[(pad, pad), (pad, pad)],
            dimension_numbers=("NHWC", "HWIO", "NHWC"))
        return jnp.maximum(y + b, 0.0)

    x = conv(x, params["c1_w"], params["c1_b"], 2, 2)
    x = conv(x, params["c2_w"], params["c2_b"], 2, 1)
    x = conv(x, params["c3_w"], params["c3_b"], 2, 1)
    x = conv(x, params["c4_w"], params["c4_b"], 2, 1)
    x = jnp.mean(x, axis=(1, 2))                 # adaptive avg pool -> (N, 32)
    return x @ params["fc_w"].T + params["fc_b"]


if __name__ == "__main__":
    key = jax.random.PRNGKey(0)
    pkey, xkey = jax.random.split(key)
    params = init_params(pkey)
    x = jax.random.normal(xkey, (2, 1, 16, 16), jnp.float32)

    consts = prepare(params, height=16, width=16, nt=BATCH_TILE)

    out = fashion_mnist_net(consts, x)
    out = jax.block_until_ready(out)
    assert out.shape == (2, NUM_CLASSES), out.shape

    ref = reference(params, x)
    assert jnp.allclose(out, ref, rtol=1e-2, atol=1e-2), (
        f"max abs err {jnp.max(jnp.abs(out - ref))}")

    print("KERNEL_OK")
</pallas_src>

<mosaic_0001>
module attributes {stable_mosaic.version = 11 : i64} {
  func.func @_fused_net_kernel(%arg0: i32, %arg1: memref<32x128xf32, #tpu.memory_space<vmem>>, %arg2: memref<8x32xf32, #tpu.memory_space<vmem>>, %arg3: memref<8x1xf32, #tpu.memory_space<vmem>>, %arg4: memref<9x128x32xf32, #tpu.memory_space<vmem>>, %arg5: memref<9x16x8xf32, #tpu.memory_space<vmem>>, %arg6: memref<16x1xf32, #tpu.memory_space<vmem>>, %arg7: memref<9x32x8xf32, #tpu.memory_space<vmem>>, %arg8: memref<9x32x16xf32, #tpu.memory_space<vmem>>, %arg9: memref<32x1xf32, #tpu.memory_space<vmem>>, %arg10: memref<9x8x2xf32, #tpu.memory_space<vmem>>, %arg11: memref<9x32x32xf32, #tpu.memory_space<vmem>>, %arg12: memref<32x1xf32, #tpu.memory_space<vmem>>, %arg13: memref<2x2xf32, #tpu.memory_space<vmem>>, %arg14: memref<10x32xf32, #tpu.memory_space<vmem>>, %arg15: memref<10x1xf32, #tpu.memory_space<vmem>>, %arg16: memref<1x10x2xf32, #tpu.memory_space<vmem>>) attributes {dimension_semantics = [#tpu.dimension_semantics<parallel>], iteration_bounds = array<i64: 1>, scalar_prefetch = 0 : i64, scratch_operands = 0 : i64, tpu.core_type = #tpu.core_type<tc>, window_params = [{transform_indices = @transform_0, window_bounds = array<i64: 32, 128>}, {pipeline_mode = #tpu.pipeline_mode<synchronous>, transform_indices = @transform_1, window_bounds = array<i64: 8, 32>}, {pipeline_mode = #tpu.pipeline_mode<synchronous>, transform_indices = @transform_2, window_bounds = array<i64: 8, 1>}, {pipeline_mode = #tpu.pipeline_mode<synchronous>, transform_indices = @transform_3, window_bounds = array<i64: 9, 128, 32>}, {pipeline_mode = #tpu.pipeline_mode<synchronous>, transform_indices = @transform_4, window_bounds = array<i64: 9, 16, 8>}, {pipeline_mode = #tpu.pipeline_mode<synchronous>, transform_indices = @transform_5, window_bounds = array<i64: 16, 1>}, {pipeline_mode = #tpu.pipeline_mode<synchronous>, transform_indices = @transform_6, window_bounds = array<i64: 9, 32, 8>}, {pipeline_mode = #tpu.pipeline_mode<synchronous>, transform_indices = @transform_7, window_bounds = array<i64: 9, 32, 16>}, {pipeline_mode = #tpu.pipeline_mode<synchronous>, transform_indices = @transform_8, window_bounds = array<i64: 32, 1>}, {pipeline_mode = #tpu.pipeline_mode<synchronous>, transform_indices = @transform_9, window_bounds = array<i64: 9, 8, 2>}, {pipeline_mode = #tpu.pipeline_mode<synchronous>, transform_indices = @transform_10, window_bounds = array<i64: 9, 32, 32>}, {pipeline_mode = #tpu.pipeline_mode<synchronous>, transform_indices = @transform_11, window_bounds = array<i64: 32, 1>}, {pipeline_mode = #tpu.pipeline_mode<synchronous>, transform_indices = @transform_12, window_bounds = array<i64: 2, 2>}, {pipeline_mode = #tpu.pipeline_mode<synchronous>, transform_indices = @transform_13, window_bounds = array<i64: 10, 32>}, {pipeline_mode = #tpu.pipeline_mode<synchronous>, transform_indices = @transform_14, window_bounds = array<i64: 10, 1>}, {transform_indices = @transform_15, window_bounds = array<i64: 1, 10, 2>}]} {
    %c0 = arith.constant 0 : index
    %c0_0 = arith.constant 0 : index
    %0 = vector.load %arg2[%c0, %c0_0] : memref<8x32xf32, #tpu.memory_space<vmem>>, vector<8x32xf32>
    %c0_1 = arith.constant 0 : index
    %c0_2 = arith.constant 0 : index
    %1 = vector.load %arg1[%c0_1, %c0_2] : memref<32x128xf32, #tpu.memory_space<vmem>>, vector<32x128xf32>
    %cst = arith.constant dense<0.000000e+00> : vector<8x128xf32>
    %2 = tpu.matmul %0, %1, %cst {dimension_numbers = #tpu.dot_dimension_numbers<[1], [0], [0], [1], [0, 0, 1, 1], [], []>} : vector<8x32xf32>, vector<32x128xf32>, vector<8x128xf32> -> vector<8x128xf32>
    %c0_3 = arith.constant 0 : index
    %c0_4 = arith.constant 0 : index
    %3 = vector.load %arg3[%c0_3, %c0_4] : memref<8x1xf32, #tpu.memory_space<vmem>>, vector<8x1xf32>
    %4 = vector.broadcast %3 : vector<8x1xf32> to vector<8x128xf32>
    %5 = arith.addf %2, %4 : vector<8x128xf32>
    %cst_5 = arith.constant 0.000000e+00 : f32
    %6 = vector.broadcast %cst_5 : f32 to vector<8x128xf32>
    %7 = arith.maximumf %5, %6 : vector<8x128xf32>
    %c0_6 = arith.constant 0 : index
    %c0_7 = arith.constant 0 : index
    %c0_8 = arith.constant 0 : index
    %8 = vector.load %arg4[%c0_6, %c0_7, %c0_8] : memref<9x128x32xf32, #tpu.memory_space<vmem>>, vector<1x128x32xf32>
    %9 = vector.shape_cast %8 : vector<1x128x32xf32> to vector<128x32xf32>
    %cst_9 = arith.constant dense<0.000000e+00> : vector<8x32xf32>
    %10 = tpu.matmul %7, %9, %cst_9 {dimension_numbers = #tpu.dot_dimension_numbers<[1], [0], [0], [1], [0, 0, 1, 1], [], []>} : vector<8x128xf32>, vector<128x32xf32>, vector<8x32xf32> -> vector<8x32xf32>
    %c0_10 = arith.constant 0 : index
    %c0_11 = arith.constant 0 : index
    %c0_12 = arith.constant 0 : index
    %11 = vector.load %arg5[%c0_10, %c0_11, %c0_12] : memref<9x16x8xf32, #tpu.memory_space<vmem>>, vector<1x16x8xf32>
    %12 = vector.shape_cast %11 : vector<1x16x8xf32> to vector<16x8xf32>
    %cst_13 = arith.constant dense<0.000000e+00> : vector<16x32xf32>
    %13 = tpu.matmul %12, %10, %cst_13 {dimension_numbers = #tpu.dot_dimension_numbers<[1], [0], [0], [1], [0, 0, 1, 1], [], []>} : vector<16x8xf32>, vector<8x32xf32>, vector<16x32xf32> -> vector<16x32xf32>
    %c1 = arith.constant 1 : index
    %c0_14 = arith.constant 0 : index
    %c0_15 = arith.constant 0 : index
    %14 = vector.load %arg4[%c1, %c0_14, %c0_15] : memref<9x128x32xf32, #tpu.memory_space<vmem>>, vector<1x128x32xf32>
    %15 = vector.shape_cast %14 : vector<1x128x32xf32> to vector<128x32xf32>
    %cst_16 = arith.constant dense<0.000000e+00> : vector<8x32xf32>
    %16 = tpu.matmul %7, %15, %cst_16 {dimension_numbers = #tpu.dot_dimension_numbers<[1], [0], [0], [1], [0, 0, 1, 1], [], []>} : vector<8x128xf32>, vector<128x32xf32>, vector<8x32xf32> -> vector<8x32xf32>
    %c1_17 = arith.constant 1 : index
    %c0_18 = arith.constant 0 : index
    %c0_19 = arith.constant 0 : index
    %17 = vector.load %arg5[%c1_17, %c0_18, %c0_19] : memref<9x16x8xf32, #tpu.memory_space<vmem>>, vector<1x16x8xf32>
    %18 = vector.shape_cast %17 : vector<1x16x8xf32> to vector<16x8xf32>
    %cst_20 = arith.constant dense<0.000000e+00> : vector<16x32xf32>
    %19 = tpu.matmul %18, %16, %cst_20 {dimension_numbers = #tpu.dot_dimension_numbers<[1], [0], [0], [1], [0, 0, 1, 1], [], []>} : vector<16x8xf32>, vector<8x32xf32>, vector<16x32xf32> -> vector<16x32xf32>
    %20 = arith.addf %13, %19 : vector<16x32xf32>
    %c2 = arith.constant 2 : index
    %c0_21 = arith.constant 0 : index
    %c0_22 = arith.constant 0 : index
    %21 = vector.load %arg4[%c2, %c0_21, %c0_22] : memref<9x128x32xf32, #tpu.memory_space<vmem>>, vector<1x128x32xf32>
    %22 = vector.shape_cast %21 : vector<1x128x32xf32> to vector<128x32xf32>
    %cst_23 = arith.constant dense<0.000000e+00> : vector<8x32xf32>
    %23 = tpu.matmul %7, %22, %cst_23 {dimension_numbers = #tpu.dot_dimension_numbers<[1], [0], [0], [1], [0, 0, 1, 1], [], []>} : vector<8x128xf32>, vector<128x32xf32>, vector<8x32xf32> -> vector<8x32xf32>
    %c2_24 = arith.constant 2 : index
    %c0_25 = arith.constant 0 : index
    %c0_26 = arith.constant 0 : index
    %24 = vector.load %arg5[%c2_24, %c0_25, %c0_26] : memref<9x16x8xf32, #tpu.memory_space<vmem>>, vector<1x16x8xf32>
    %25 = vector.shape_cast %24 : vector<1x16x8xf32> to vector<16x8xf32>
    %cst_27 = arith.constant dense<0.000000e+00> : vector<16x32xf32>
    %26 = tpu.matmul %25, %23, %cst_27 {dimension_numbers = #tpu.dot_dimension_numbers<[1], [0], [0], [1], [0, 0, 1, 1], [], []>} : vector<16x8xf32>, vector<8x32xf32>, vector<16x32xf32> -> vector<16x32xf32>
    %27 = arith.addf %20, %26 : vector<16x32xf32>
    %c3 = arith.constant 3 : index
    %c0_28 = arith.constant 0 : index
    %c0_29 = arith.constant 0 : index
    %28 = vector.load %arg4[%c3, %c0_28, %c0_29] : memref<9x128x32xf32, #tpu.memory_space<vmem>>, vector<1x128x32xf32>
    %29 = vector.shape_cast %28 : vector<1x128x32xf32> to vector<128x32xf32>
    %cst_30 = arith.constant dense<0.000000e+00> : vector<8x32xf32>
    %30 = tpu.matmul %7, %29, %cst_30 {dimension_numbers = #tpu.dot_dimension_numbers<[1], [0], [0], [1], [0, 0, 1, 1], [], []>} : vector<8x128xf32>, vector<128x32xf32>, vector<8x32xf32> -> vector<8x32xf32>
    %c3_31 = arith.constant 3 : index
    %c0_32 = arith.constant 0 : index
    %c0_33 = arith.constant 0 : index
    %31 = vector.load %arg5[%c3_31, %c0_32, %c0_33] : memref<9x16x8xf32, #tpu.memory_space<vmem>>, vector<1x16x8xf32>
    %32 = vector.shape_cast %31 : vector<1x16x8xf32> to vector<16x8xf32>
    %cst_34 = arith.constant dense<0.000000e+00> : vector<16x32xf32>
    %33 = tpu.matmul %32, %30, %cst_34 {dimension_numbers = #tpu.dot_dimension_numbers<[1], [0], [0], [1], [0, 0, 1, 1], [], []>} : vector<16x8xf32>, vector<8x32xf32>, vector<16x32xf32> -> vector<16x32xf32>
    %34 = arith.addf %27, %33 : vector<16x32xf32>
    %c4 = arith.constant 4 : index
    %c0_35 = arith.constant 0 : index
    %c0_36 = arith.constant 0 : index
    %35 = vector.load %arg4[%c4, %c0_35, %c0_36] : memref<9x128x32xf32, #tpu.memory_space<vmem>>, vector<1x128x32xf32>
    %36 = vector.shape_cast %35 : vector<1x128x32xf32> to vector<128x32xf32>
    %cst_37 = arith.constant dense<0.000000e+00> : vector<8x32xf32>
    %37 = tpu.matmul %7, %36, %cst_37 {dimension_numbers = #tpu.dot_dimension_numbers<[1], [0], [0], [1], [0, 0, 1, 1], [], []>} : vector<8x128xf32>, vector<128x32xf32>, vector<8x32xf32> -> vector<8x32xf32>
    %c4_38 = arith.constant 4 : index
    %c0_39 = arith.constant 0 : index
    %c0_40 = arith.constant 0 : index
    %38 = vector.load %arg5[%c4_38, %c0_39, %c0_40] : memref<9x16x8xf32, #tpu.memory_space<vmem>>, vector<1x16x8xf32>
    %39 = vector.shape_cast %38 : vector<1x16x8xf32> to vector<16x8xf32>
    %cst_41 = arith.constant dense<0.000000e+00> : vector<16x32xf32>
    %40 = tpu.matmul %39, %37, %cst_41 {dimension_numbers = #tpu.dot_dimension_numbers<[1], [0], [0], [1], [0, 0, 1, 1], [], []>} : vector<16x8xf32>, vector<8x32xf32>, vector<16x32xf32> -> vector<16x32xf32>
    %41 = arith.addf %34, %40 : vector<16x32xf32>
    %c5 = arith.constant 5 : index
    %c0_42 = arith.constant 0 : index
    %c0_43 = arith.constant 0 : index
    %42 = vector.load %arg4[%c5, %c0_42, %c0_43] : memref<9x128x32xf32, #tpu.memory_space<vmem>>, vector<1x128x32xf32>
    %43 = vector.shape_cast %42 : vector<1x128x32xf32> to vector<128x32xf32>
    %cst_44 = arith.constant dense<0.000000e+00> : vector<8x32xf32>
    %44 = tpu.matmul %7, %43, %cst_44 {dimension_numbers = #tpu.dot_dimension_numbers<[1], [0], [0], [1], [0, 0, 1, 1], [], []>} : vector<8x128xf32>, vector<128x32xf32>, vector<8x32xf32> -> vector<8x32xf32>
    %c5_45 = arith.constant 5 : index
    %c0_46 = arith.constant 0 : index
    %c0_47 = arith.constant 0 : index
    %45 = vector.load %arg5[%c5_45, %c0_46, %c0_47] : memref<9x16x8xf32, #tpu.memory_space<vmem>>, vector<1x16x8xf32>
    %46 = vector.shape_cast %45 : vector<1x16x8xf32> to vector<16x8xf32>
    %cst_48 = arith.constant dense<0.000000e+00> : vector<16x32xf32>
    %47 = tpu.matmul %46, %44, %cst_48 {dimension_numbers = #tpu.dot_dimension_numbers<[1], [0], [0], [1], [0, 0, 1, 1], [], []>} : vector<16x8xf32>, vector<8x32xf32>, vector<16x32xf32> -> vector<16x32xf32>
    %48 = arith.addf %41, %47 : vector<16x32xf32>
    %c6 = arith.constant 6 : index
    %c0_49 = arith.constant 0 : index
    %c0_50 = arith.constant 0 : index
    %49 = vector.load %arg4[%c6, %c0_49, %c0_50] : memref<9x128x32xf32, #tpu.memory_space<vmem>>, vector<1x128x32xf32>
    %50 = vector.shape_cast %49 : vector<1x128x32xf32> to vector<128x32xf32>
    %cst_51 = arith.constant dense<0.000000e+00> : vector<8x32xf32>
    %51 = tpu.matmul %7, %50, %cst_51 {dimension_numbers = #tpu.dot_dimension_numbers<[1], [0], [0], [1], [0, 0, 1, 1], [], []>} : vector<8x128xf32>, vector<128x32xf32>, vector<8x32xf32> -> vector<8x32xf32>
    %c6_52 = arith.constant 6 : index
    %c0_53 = arith.constant 0 : index
    %c0_54 = arith.constant 0 : index
    %52 = vector.load %arg5[%c6_52, %c0_53, %c0_54] : memref<9x16x8xf32, #tpu.memory_space<vmem>>, vector<1x16x8xf32>
    %53 = vector.shape_cast %52 : vector<1x16x8xf32> to vector<16x8xf32>
    %cst_55 = arith.constant dense<0.000000e+00> : vector<16x32xf32>
    %54 = tpu.matmul %53, %51, %cst_55 {dimension_numbers = #tpu.dot_dimension_numbers<[1], [0], [0], [1], [0, 0, 1, 1], [], []>} : vector<16x8xf32>, vector<8x32xf32>, vector<16x32xf32> -> vector<16x32xf32>
    %55 = arith.addf %48, %54 : vector<16x32xf32>
    %c7 = arith.constant 7 : index
    %c0_56 = arith.constant 0 : index
    %c0_57 = arith.constant 0 : index
    %56 = vector.load %arg4[%c7, %c0_56, %c0_57] : memref<9x128x32xf32, #tpu.memory_space<vmem>>, vector<1x128x32xf32>
    %57 = vector.shape_cast %56 : vector<1x128x32xf32> to vector<128x32xf32>
    %cst_58 = arith.constant dense<0.000000e+00> : vector<8x32xf32>
    %58 = tpu.matmul %7, %57, %cst_58 {dimension_numbers = #tpu.dot_dimension_numbers<[1], [0], [0], [1], [0, 0, 1, 1], [], []>} : vector<8x128xf32>, vector<128x32xf32>, vector<8x32xf32> -> vector<8x32xf32>
    %c7_59 = arith.constant 7 : index
    %c0_60 = arith.constant 0 : index
    %c0_61 = arith.constant 0 : index
    %59 = vector.load %arg5[%c7_59, %c0_60, %c0_61] : memref<9x16x8xf32, #tpu.memory_space<vmem>>, vector<1x16x8xf32>
    %60 = vector.shape_cast %59 : vector<1x16x8xf32> to vector<16x8xf32>
    %cst_62 = arith.constant dense<0.000000e+00> : vector<16x32xf32>
    %61 = tpu.matmul %60, %58, %cst_62 {dimension_numbers = #tpu.dot_dimension_numbers<[1], [0], [0], [1], [0, 0, 1, 1], [], []>} : vector<16x8xf32>, vector<8x32xf32>, vector<16x32xf32> -> vector<16x32xf32>
    %62 = arith.addf %55, %61 : vector<16x32xf32>
    %c8 = arith.constant 8 : index
    %c0_63 = arith.constant 0 : index
    %c0_64 = arith.constant 0 : index
    %63 = vector.load %arg4[%c8, %c0_63, %c0_64] : memref<9x128x32xf32, #tpu.memory_space<vmem>>, vector<1x128x32xf32>
    %64 = vector.shape_cast %63 : vector<1x128x32xf32> to vector<128x32xf32>
    %cst_65 = arith.constant dense<0.000000e+00> : vector<8x32xf32>
    %65 = tpu.matmul %7, %64, %cst_65 {dimension_numbers = #tpu.dot_dimension_numbers<[1], [0], [0], [1], [0, 0, 1, 1], [], []>} : vector<8x128xf32>, vector<128x32xf32>, vector<8x32xf32> -> vector<8x32xf32>
    %c8_66 = arith.constant 8 : index
    %c0_67 = arith.constant 0 : index
    %c0_68 = arith.constant 0 : index
    %66 = vector.load %arg5[%c8_66, %c0_67, %c0_68] : memref<9x16x8xf32, #tpu.memory_space<vmem>>, vector<1x16x8xf32>
    %67 = vector.shape_cast %66 : vector<1x16x8xf32> to vector<16x8xf32>
    %cst_69 = arith.constant dense<0.000000e+00> : vector<16x32xf32>
    %68 = tpu.matmul %67, %65, %cst_69 {dimension_numbers = #tpu.dot_dimension_numbers<[1], [0], [0], [1], [0, 0, 1, 1], [], []>} : vector<16x8xf32>, vector<8x32xf32>, vector<16x32xf32> -> vector<16x32xf32>
    %69 = arith.addf %62, %68 : vector<16x32xf32>
    %c0_70 = arith.constant 0 : index
    %c0_71 = arith.constant 0 : index
    %70 = vector.load %arg6[%c0_70, %c0_71] : memref<16x1xf32, #tpu.memory_space<vmem>>, vector<16x1xf32>
    %71 = vector.broadcast %70 : vector<16x1xf32> to vector<16x32xf32>
    %72 = arith.addf %69, %71 : vector<16x32xf32>
    %cst_72 = arith.constant 0.000000e+00 : f32
    %73 = vector.broadcast %cst_72 : f32 to vector<16x32xf32>
    %74 = arith.maximumf %72, %73 : vector<16x32xf32>
    %c0_73 = arith.constant 0 : index
    %c0_74 = arith.constant 0 : index
    %c0_75 = arith.constant 0 : index
    %75 = vector.load %arg7[%c0_73, %c0_74, %c0_75] : memref<9x32x8xf32, #tpu.memory_space<vmem>>, vector<1x32x8xf32>
    %76 = vector.shape_cast %75 : vector<1x32x8xf32> to vector<32x8xf32>
    %cst_76 = arith.constant dense<0.000000e+00> : vector<16x8xf32>
    %77 = tpu.matmul %74, %76, %cst_76 {dimension_numbers = #tpu.dot_dimension_numbers<[1], [0], [0], [1], [0, 0, 1, 1], [], []>} : vector<16x32xf32>, vector<32x8xf32>, vector<16x8xf32> -> vector<16x8xf32>
    %c0_77 = arith.constant 0 : index
    %c0_78 = arith.constant 0 : index
    %c0_79 = arith.constant 0 : index
    %78 = vector.load %arg8[%c0_77, %c0_78, %c0_79] : memref<9x32x16xf32, #tpu.memory_space<vmem>>, vector<1x32x16xf32>
    %79 = vector.shape_cast %78 : vector<1x32x16xf32> to vector<32x16xf32>
    %cst_80 = arith.constant dense<0.000000e+00> : vector<32x8xf32>
    %80 = tpu.matmul %79, %77, %cst_80 {dimension_numbers = #tpu.dot_dimension_numbers<[1], [0], [0], [1], [0, 0, 1, 1], [], []>} : vector<32x16xf32>, vector<16x8xf32>, vector<32x8xf32> -> vector<32x8xf32>
    %c1_81 = arith.constant 1 : index
    %c0_82 = arith.constant 0 : index
    %c0_83 = arith.constant 0 : index
    %81 = vector.load %arg7[%c1_81, %c0_82, %c0_83] : memref<9x32x8xf32, #tpu.memory_space<vmem>>, vector<1x32x8xf32>
    %82 = vector.shape_cast %81 : vector<1x32x8xf32> to vector<32x8xf32>
    %cst_84 = arith.constant dense<0.000000e+00> : vector<16x8xf32>
    %83 = tpu.matmul %74, %82, %cst_84 {dimension_numbers = #tpu.dot_dimension_numbers<[1], [0], [0], [1], [0, 0, 1, 1], [], []>} : vector<16x32xf32>, vector<32x8xf32>, vector<16x8xf32> -> vector<16x8xf32>
    %c1_85 = arith.constant 1 : index
    %c0_86 = arith.constant 0 : index
    %c0_87 = arith.constant 0 : index
    %84 = vector.load %arg8[%c1_85, %c0_86, %c0_87] : memref<9x32x16xf32, #tpu.memory_space<vmem>>, vector<1x32x16xf32>
    %85 = vector.shape_cast %84 : vector<1x32x16xf32> to vector<32x16xf32>
    %cst_88 = arith.constant dense<0.000000e+00> : vector<32x8xf32>
    %86 = tpu.matmul %85, %83, %cst_88 {dimension_numbers = #tpu.dot_dimension_numbers<[1], [0], [0], [1], [0, 0, 1, 1], [], []>} : vector<32x16xf32>, vector<16x8xf32>, vector<32x8xf32> -> vector<32x8xf32>
    %87 = arith.addf %80, %86 : vector<32x8xf32>
    %c2_89 = arith.constant 2 : index
    %c0_90 = arith.constant 0 : index
    %c0_91 = arith.constant 0 : index
    %88 = vector.load %arg7[%c2_89, %c0_90, %c0_91] : memref<9x32x8xf32, #tpu.memory_space<vmem>>, vector<1x32x8xf32>
    %89 = vector.shape_cast %88 : vector<1x32x8xf32> to vector<32x8xf32>
    %cst_92 = arith.constant dense<0.000000e+00> : vector<16x8xf32>
    %90 = tpu.matmul %74, %89, %cst_92 {dimension_numbers = #tpu.dot_dimension_numbers<[1], [0], [0], [1], [0, 0, 1, 1], [], []>} : vector<16x32xf32>, vector<32x8xf32>, vector<16x8xf32> -> vector<16x8xf32>
    %c2_93 = arith.constant 2 : index
    %c0_94 = arith.constant 0 : index
    %c0_95 = arith.constant 0 : index
    %91 = vector.load %arg8[%c2_93, %c0_94, %c0_95] : memref<9x32x16xf32, #tpu.memory_space<vmem>>, vector<1x32x16xf32>
    %92 = vector.shape_cast %91 : vector<1x32x16xf32> to vector<32x16xf32>
    %cst_96 = arith.constant dense<0.000000e+00> : vector<32x8xf32>
    %93 = tpu.matmul %92, %90, %cst_96 {dimension_numbers = #tpu.dot_dimension_numbers<[1], [0], [0], [1], [0, 0, 1, 1], [], []>} : vector<32x16xf32>, vector<16x8xf32>, vector<32x8xf32> -> vector<32x8xf32>
    %94 = arith.addf %87, %93 : vector<32x8xf32>
    %c3_97 = arith.constant 3 : index
    %c0_98 = arith.constant 0 : index
    %c0_99 = arith.constant 0 : index
    %95 = vector.load %arg7[%c3_97, %c0_98, %c0_99] : memref<9x32x8xf32, #tpu.memory_space<vmem>>, vector<1x32x8xf32>
    %96 = vector.shape_cast %95 : vector<1x32x8xf32> to vector<32x8xf32>
    %cst_100 = arith.constant dense<0.000000e+00> : vector<16x8xf32>
    %97 = tpu.matmul %74, %96, %cst_100 {dimension_numbers = #tpu.dot_dimension_numbers<[1], [0], [0], [1], [0, 0, 1, 1], [], []>} : vector<16x32xf32>, vector<32x8xf32>, vector<16x8xf32> -> vector<16x8xf32>
    %c3_101 = arith.constant 3 : index
    %c0_102 = arith.constant 0 : index
    %c0_103 = arith.constant 0 : index
    %98 = vector.load %arg8[%c3_101, %c0_102, %c0_103] : memref<9x32x16xf32, #tpu.memory_space<vmem>>, vector<1x32x16xf32>
    %99 = vector.shape_cast %98 : vector<1x32x16xf32> to vector<32x16xf32>
    %cst_104 = arith.constant dense<0.000000e+00> : vector<32x8xf32>
    %100 = tpu.matmul %99, %97, %cst_104 {dimension_numbers = #tpu.dot_dimension_numbers<[1], [0], [0], [1], [0, 0, 1, 1], [], []>} : vector<32x16xf32>, vector<16x8xf32>, vector<32x8xf32> -> vector<32x8xf32>
    %101 = arith.addf %94, %100 : vector<32x8xf32>
    %c4_105 = arith.constant 4 : index
    %c0_106 = arith.constant 0 : index
    %c0_107 = arith.constant 0 : index
    %102 = vector.load %arg7[%c4_105, %c0_106, %c0_107] : memref<9x32x8xf32, #tpu.memory_space<vmem>>, vector<1x32x8xf32>
    %103 = vector.shape_cast %102 : vector<1x32x8xf32> to vector<32x8xf32>
    %cst_108 = arith.constant dense<0.000000e+00> : vector<16x8xf32>
    %104 = tpu.matmul %74, %103, %cst_108 {dimension_numbers = #tpu.dot_dimension_numbers<[1], [0], [0], [1], [0, 0, 1, 1], [], []>} : vector<16x32xf32>, vector<32x8xf32>, vector<16x8xf32> -> vector<16x8xf32>
    %c4_109 = arith.constant 4 : index
    %c0_110 = arith.constant 0 : index
    %c0_111 = arith.constant 0 : index
    %105 = vector.load %arg8[%c4_109, %c0_110, %c0_111] : memref<9x32x16xf32, #tpu.memory_space<vmem>>, vector<1x32x16xf32>
    %106 = vector.shape_cast %105 : vector<1x32x16xf32> to vector<32x16xf32>
    %cst_112 = arith.constant dense<0.000000e+00> : vector<32x8xf32>
    %107 = tpu.matmul %106, %104, %cst_112 {dimension_numbers = #tpu.dot_dimension_numbers<[1], [0], [0], [1], [0, 0, 1, 1], [], []>} : vector<32x16xf32>, vector<16x8xf32>, vector<32x8xf32> -> vector<32x8xf32>
    %108 = arith.addf %101, %107 : vector<32x8xf32>
    %c5_113 = arith.constant 5 : index
    %c0_114 = arith.constant 0 : index
    %c0_115 = arith.constant 0 : index
    %109 = vector.load %arg7[%c5_113, %c0_114, %c0_115] : memref<9x32x8xf32, #tpu.memory_space<vmem>>, vector<1x32x8xf32>
    %110 = vector.shape_cast %109 : vector<1x32x8xf32> to vector<32x8xf32>
    %cst_116 = arith.constant dense<0.000000e+00> : vector<16x8xf32>
    %111 = tpu.matmul %74, %110, %cst_116 {dimension_numbers = #tpu.dot_dimension_numbers<[1], [0], [0], [1], [0, 0, 1, 1], [], []>} : vector<16x32xf32>, vector<32x8xf32>, vector<16x8xf32> -> vector<16x8xf32>
    %c5_117 = arith.constant 5 : index
    %c0_118 = arith.constant 0 : index
    %c0_119 = arith.constant 0 : index
    %112 = vector.load %arg8[%c5_117, %c0_118, %c0_119] : memref<9x32x16xf32, #tpu.memory_space<vmem>>, vector<1x32x16xf32>
    %113 = vector.shape_cast %112 : vector<1x32x16xf32> to vector<32x16xf32>
    %cst_120 = arith.constant dense<0.000000e+00> : vector<32x8xf32>
    %114 = tpu.matmul %113, %111, %cst_120 {dimension_numbers = #tpu.dot_dimension_numbers<[1], [0], [0], [1], [0, 0, 1, 1], [], []>} : vector<32x16xf32>, vector<16x8xf32>, vector<32x8xf32> -> vector<32x8xf32>
    %115 = arith.addf %108, %114 : vector<32x8xf32>
    %c6_121 = arith.constant 6 : index
    %c0_122 = arith.constant 0 : index
    %c0_123 = arith.constant 0 : index
    %116 = vector.load %arg7[%c6_121, %c0_122, %c0_123] : memref<9x32x8xf32, #tpu.memory_space<vmem>>, vector<1x32x8xf32>
    %117 = vector.shape_cast %116 : vector<1x32x8xf32> to vector<32x8xf32>
    %cst_124 = arith.constant dense<0.000000e+00> : vector<16x8xf32>
    %118 = tpu.matmul %74, %117, %cst_124 {dimension_numbers = #tpu.dot_dimension_numbers<[1], [0], [0], [1], [0, 0, 1, 1], [], []>} : vector<16x32xf32>, vector<32x8xf32>, vector<16x8xf32> -> vector<16x8xf32>
    %c6_125 = arith.constant 6 : index
    %c0_126 = arith.constant 0 : index
    %c0_127 = arith.constant 0 : index
    %119 = vector.load %arg8[%c6_125, %c0_126, %c0_127] : memref<9x32x16xf32, #tpu.memory_space<vmem>>, vector<1x32x16xf32>
    %120 = vector.shape_cast %119 : vector<1x32x16xf32> to vector<32x16xf32>
    %cst_128 = arith.constant dense<0.000000e+00> : vector<32x8xf32>
    %121 = tpu.matmul %120, %118, %cst_128 {dimension_numbers = #tpu.dot_dimension_numbers<[1], [0], [0], [1], [0, 0, 1, 1], [], []>} : vector<32x16xf32>, vector<16x8xf32>, vector<32x8xf32> -> vector<32x8xf32>
    %122 = arith.addf %115, %121 : vector<32x8xf32>
    %c7_129 = arith.constant 7 : index
    %c0_130 = arith.constant 0 : index
    %c0_131 = arith.constant 0 : index
    %123 = vector.load %arg7[%c7_129, %c0_130, %c0_131] : memref<9x32x8xf32, #tpu.memory_space<vmem>>, vector<1x32x8xf32>
    %124 = vector.shape_cast %123 : vector<1x32x8xf32> to vector<32x8xf32>
    %cst_132 = arith.constant dense<0.000000e+00> : vector<16x8xf32>
    %125 = tpu.matmul %74, %124, %cst_132 {dimension_numbers = #tpu.dot_dimension_numbers<[1], [0], [0], [1], [0, 0, 1, 1], [], []>} : vector<16x32xf32>, vector<32x8xf32>, vector<16x8xf32> -> vector<16x8xf32>
    %c7_133 = arith.constant 7 : index
    %c0_134 = arith.constant 0 : index
    %c0_135 = arith.constant 0 : index
    %126 = vector.load %arg8[%c7_133, %c0_134, %c0_135] : memref<9x32x16xf32, #tpu.memory_space<vmem>>, vector<1x32x16xf32>
    %127 = vector.shape_cast %126 : vector<1x32x16xf32> to vector<32x16xf32>
    %cst_136 = arith.constant dense<0.000000e+00> : vector<32x8xf32>
    %128 = tpu.matmul %127, %125, %cst_136 {dimension_numbers = #tpu.dot_dimension_numbers<[1], [0], [0], [1], [0, 0, 1, 1], [], []>} : vector<32x16xf32>, vector<16x8xf32>, vector<32x8xf32> -> vector<32x8xf32>
    %129 = arith.addf %122, %128 : vector<32x8xf32>
    %c8_137 = arith.constant 8 : index
    %c0_138 = arith.constant 0 : index
    %c0_139 = arith.constant 0 : index
    %130 = vector.load %arg7[%c8_137, %c0_138, %c0_139] : memref<9x32x8xf32, #tpu.memory_space<vmem>>, vector<1x32x8xf32>
    %131 = vector.shape_cast %130 : vector<1x32x8xf32> to vector<32x8xf32>
    %cst_140 = arith.constant dense<0.000000e+00> : vector<16x8xf32>
    %132 = tpu.matmul %74, %131, %cst_140 {dimension_numbers = #tpu.dot_dimension_numbers<[1], [0], [0], [1], [0, 0, 1, 1], [], []>} : vector<16x32xf32>, vector<32x8xf32>, vector<16x8xf32> -> vector<16x8xf32>
    %c8_141 = arith.constant 8 : index
    %c0_142 = arith.constant 0 : index
    %c0_143 = arith.constant 0 : index
    %133 = vector.load %arg8[%c8_141, %c0_142, %c0_143] : memref<9x32x16xf32, #tpu.memory_space<vmem>>, vector<1x32x16xf32>
    %134 = vector.shape_cast %133 : vector<1x32x16xf32> to vector<32x16xf32>
    %cst_144 = arith.constant dense<0.000000e+00> : vector<32x8xf32>
    %135 = tpu.matmul %134, %132, %cst_144 {dimension_numbers = #tpu.dot_dimension_numbers<[1], [0], [0], [1], [0, 0, 1, 1], [], []>} : vector<32x16xf32>, vector<16x8xf32>, vector<32x8xf32> -> vector<32x8xf32>
    %136 = arith.addf %129, %135 : vector<32x8xf32>
    %c0_145 = arith.constant 0 : index
    %c0_146 = arith.constant 0 : index
    %137 = vector.load %arg9[%c0_145, %c0_146] : memref<32x1xf32, #tpu.memory_space<vmem>>, vector<32x1xf32>
    %138 = vector.broadcast %137 : vector<32x1xf32> to vector<32x8xf32>
    %139 = arith.addf %136, %138 : vector<32x8xf32>
    %cst_147 = arith.constant 0.000000e+00 : f32
    %140 = vector.broadcast %cst_147 : f32 to vector<32x8xf32>
    %141 = arith.maximumf %139, %140 : vector<32x8xf32>
    %c0_148 = arith.constant 0 : index
    %c0_149 = arith.constant 0 : index
    %c0_150 = arith.constant 0 : index
    %142 = vector.load %arg10[%c0_148, %c0_149, %c0_150] : memref<9x8x2xf32, #tpu.memory_space<vmem>>, vector<1x8x2xf32>
    %143 = vector.shape_cast %142 : vector<1x8x2xf32> to vector<8x2xf32>
    %cst_151 = arith.constant dense<0.000000e+00> : vector<32x2xf32>
    %144 = tpu.matmul %141, %143, %cst_151 {dimension_numbers = #tpu.dot_dimension_numbers<[1], [0], [0], [1], [0, 0, 1, 1], [], []>} : vector<32x8xf32>, vector<8x2xf32>, vector<32x2xf32> -> vector<32x2xf32>
    %c0_152 = arith.constant 0 : index
    %c0_153 = arith.constant 0 : index
    %c0_154 = arith.constant 0 : index
    %145 = vector.load %arg11[%c0_152, %c0_153, %c0_154] : memref<9x32x32xf32, #tpu.memory_space<vmem>>, vector<1x32x32xf32>
    %146 = vector.shape_cast %145 : vector<1x32x32xf32> to vector<32x32xf32>
    %cst_155 = arith.constant dense<0.000000e+00> : vector<32x2xf32>
    %147 = tpu.matmul %146, %144, %cst_155 {dimension_numbers = #tpu.dot_dimension_numbers<[1], [0], [0], [1], [0, 0, 1, 1], [], []>} : vector<32x32xf32>, vector<32x2xf32>, vector<32x2xf32> -> vector<32x2xf32>
    %c1_156 = arith.constant 1 : index
    %c0_157 = arith.constant 0 : index
    %c0_158 = arith.constant 0 : index
    %148 = vector.load %arg10[%c1_156, %c0_157, %c0_158] : memref<9x8x2xf32, #tpu.memory_space<vmem>>, vector<1x8x2xf32>
    %149 = vector.shape_cast %148 : vector<1x8x2xf32> to vector<8x2xf32>
    %cst_159 = arith.constant dense<0.000000e+00> : vector<32x2xf32>
    %150 = tpu.matmul %141, %149, %cst_159 {dimension_numbers = #tpu.dot_dimension_numbers<[1], [0], [0], [1], [0, 0, 1, 1], [], []>} : vector<32x8xf32>, vector<8x2xf32>, vector<32x2xf32> -> vector<32x2xf32>
    %c1_160 = arith.constant 1 : index
    %c0_161 = arith.constant 0 : index
    %c0_162 = arith.constant 0 : index
    %151 = vector.load %arg11[%c1_160, %c0_161, %c0_162] : memref<9x32x32xf32, #tpu.memory_space<vmem>>, vector<1x32x32xf32>
    %152 = vector.shape_cast %151 : vector<1x32x32xf32> to vector<32x32xf32>
    %cst_163 = arith.constant dense<0.000000e+00> : vector<32x2xf32>
    %153 = tpu.matmul %152, %150, %cst_163 {dimension_numbers = #tpu.dot_dimension_numbers<[1], [0], [0], [1], [0, 0, 1, 1], [], []>} : vector<32x32xf32>, vector<32x2xf32>, vector<32x2xf32> -> vector<32x2xf32>
    %154 = arith.addf %147, %153 : vector<32x2xf32>
    %c2_164 = arith.constant 2 : index
    %c0_165 = arith.constant 0 : index
    %c0_166 = arith.constant 0 : index
    %155 = vector.load %arg10[%c2_164, %c0_165, %c0_166] : memref<9x8x2xf32, #tpu.memory_space<vmem>>, vector<1x8x2xf32>
    %156 = vector.shape_cast %155 : vector<1x8x2xf32> to vector<8x2xf32>
    %cst_167 = arith.constant dense<0.000000e+00> : vector<32x2xf32>
    %157 = tpu.matmul %141, %156, %cst_167 {dimension_numbers = #tpu.dot_dimension_numbers<[1], [0], [0], [1], [0, 0, 1, 1], [], []>} : vector<32x8xf32>, vector<8x2xf32>, vector<32x2xf32> -> vector<32x2xf32>
    %c2_168 = arith.constant 2 : index
    %c0_169 = arith.constant 0 : index
    %c0_170 = arith.constant 0 : index
    %158 = vector.load %arg11[%c2_168, %c0_169, %c0_170] : memref<9x32x32xf32, #tpu.memory_space<vmem>>, vector<1x32x32xf32>
    %159 = vector.shape_cast %158 : vector<1x32x32xf32> to vector<32x32xf32>
    %cst_171 = arith.constant dense<0.000000e+00> : vector<32x2xf32>
    %160 = tpu.matmul %159, %157, %cst_171 {dimension_numbers = #tpu.dot_dimension_numbers<[1], [0], [0], [1], [0, 0, 1, 1], [], []>} : vector<32x32xf32>, vector<32x2xf32>, vector<32x2xf32> -> vector<32x2xf32>
    %161 = arith.addf %154, %160 : vector<32x2xf32>
    %c3_172 = arith.constant 3 : index
    %c0_173 = arith.constant 0 : index
    %c0_174 = arith.constant 0 : index
    %162 = vector.load %arg10[%c3_172, %c0_173, %c0_174] : memref<9x8x2xf32, #tpu.memory_space<vmem>>, vector<1x8x2xf32>
    %163 = vector.shape_cast %162 : vector<1x8x2xf32> to vector<8x2xf32>
    %cst_175 = arith.constant dense<0.000000e+00> : vector<32x2xf32>
    %164 = tpu.matmul %141, %163, %cst_175 {dimension_numbers = #tpu.dot_dimension_numbers<[1], [0], [0], [1], [0, 0, 1, 1], [], []>} : vector<32x8xf32>, vector<8x2xf32>, vector<32x2xf32> -> vector<32x2xf32>
    %c3_176 = arith.constant 3 : index
    %c0_177 = arith.constant 0 : index
    %c0_178 = arith.constant 0 : index
    %165 = vector.load %arg11[%c3_176, %c0_177, %c0_178] : memref<9x32x32xf32, #tpu.memory_space<vmem>>, vector<1x32x32xf32>
    %166 = vector.shape_cast %165 : vector<1x32x32xf32> to vector<32x32xf32>
    %cst_179 = arith.constant dense<0.000000e+00> : vector<32x2xf32>
    %167 = tpu.matmul %166, %164, %cst_179 {dimension_numbers = #tpu.dot_dimension_numbers<[1], [0], [0], [1], [0, 0, 1, 1], [], []>} : vector<32x32xf32>, vector<32x2xf32>, vector<32x2xf32> -> vector<32x2xf32>
    %168 = arith.addf %161, %167 : vector<32x2xf32>
    %c4_180 = arith.constant 4 : index
    %c0_181 = arith.constant 0 : index
    %c0_182 = arith.constant 0 : index
    %169 = vector.load %arg10[%c4_180, %c0_181, %c0_182] : memref<9x8x2xf32, #tpu.memory_space<vmem>>, vector<1x8x2xf32>
    %170 = vector.shape_cast %169 : vector<1x8x2xf32> to vector<8x2xf32>
    %cst_183 = arith.constant dense<0.000000e+00> : vector<32x2xf32>
    %171 = tpu.matmul %141, %170, %cst_183 {dimension_numbers = #tpu.dot_dimension_numbers<[1], [0], [0], [1], [0, 0, 1, 1], [], []>} : vector<32x8xf32>, vector<8x2xf32>, vector<32x2xf32> -> vector<32x2xf32>
    %c4_184 = arith.constant 4 : index
    %c0_185 = arith.constant 0 : index
    %c0_186 = arith.constant 0 : index
    %172 = vector.load %arg11[%c4_184, %c0_185, %c0_186] : memref<9x32x32xf32, #tpu.memory_space<vmem>>, vector<1x32x32xf32>
    %173 = vector.shape_cast %172 : vector<1x32x32xf32> to vector<32x32xf32>
    %cst_187 = arith.constant dense<0.000000e+00> : vector<32x2xf32>
    %174 = tpu.matmul %173, %171, %cst_187 {dimension_numbers = #tpu.dot_dimension_numbers<[1], [0], [0], [1], [0, 0, 1, 1], [], []>} : vector<32x32xf32>, vector<32x2xf32>, vector<32x2xf32> -> vector<32x2xf32>
    %175 = arith.addf %168, %174 : vector<32x2xf32>
    %c5_188 = arith.constant 5 : index
    %c0_189 = arith.constant 0 : index
    %c0_190 = arith.constant 0 : index
    %176 = vector.load %arg10[%c5_188, %c0_189, %c0_190] : memref<9x8x2xf32, #tpu.memory_space<vmem>>, vector<1x8x2xf32>
    %177 = vector.shape_cast %176 : vector<1x8x2xf32> to vector<8x2xf32>
    %cst_191 = arith.constant dense<0.000000e+00> : vector<32x2xf32>
    %178 = tpu.matmul %141, %177, %cst_191 {dimension_numbers = #tpu.dot_dimension_numbers<[1], [0], [0], [1], [0, 0, 1, 1], [], []>} : vector<32x8xf32>, vector<8x2xf32>, vector<32x2xf32> -> vector<32x2xf32>
    %c5_192 = arith.constant 5 : index
    %c0_193 = arith.constant 0 : index
    %c0_194 = arith.constant 0 : index
    %179 = vector.load %arg11[%c5_192, %c0_193, %c0_194] : memref<9x32x32xf32, #tpu.memory_space<vmem>>, vector<1x32x32xf32>
    %180 = vector.shape_cast %179 : vector<1x32x32xf32> to vector<32x32xf32>
    %cst_195 = arith.constant dense<0.000000e+00> : vector<32x2xf32>
    %181 = tpu.matmul %180, %178, %cst_195 {dimension_numbers = #tpu.dot_dimension_numbers<[1], [0], [0], [1], [0, 0, 1, 1], [], []>} : vector<32x32xf32>, vector<32x2xf32>, vector<32x2xf32> -> vector<32x2xf32>
    %182 = arith.addf %175, %181 : vector<32x2xf32>
    %c6_196 = arith.constant 6 : index
    %c0_197 = arith.constant 0 : index
    %c0_198 = arith.constant 0 : index
    %183 = vector.load %arg10[%c6_196, %c0_197, %c0_198] : memref<9x8x2xf32, #tpu.memory_space<vmem>>, vector<1x8x2xf32>
    %184 = vector.shape_cast %183 : vector<1x8x2xf32> to vector<8x2xf32>
    %cst_199 = arith.constant dense<0.000000e+00> : vector<32x2xf32>
    %185 = tpu.matmul %141, %184, %cst_199 {dimension_numbers = #tpu.dot_dimension_numbers<[1], [0], [0], [1], [0, 0, 1, 1], [], []>} : vector<32x8xf32>, vector<8x2xf32>, vector<32x2xf32> -> vector<32x2xf32>
    %c6_200 = arith.constant 6 : index
    %c0_201 = arith.constant 0 : index
    %c0_202 = arith.constant 0 : index
    %186 = vector.load %arg11[%c6_200, %c0_201, %c0_202] : memref<9x32x32xf32, #tpu.memory_space<vmem>>, vector<1x32x32xf32>
    %187 = vector.shape_cast %186 : vector<1x32x32xf32> to vector<32x32xf32>
    %cst_203 = arith.constant dense<0.000000e+00> : vector<32x2xf32>
    %188 = tpu.matmul %187, %185, %cst_203 {dimension_numbers = #tpu.dot_dimension_numbers<[1], [0], [0], [1], [0, 0, 1, 1], [], []>} : vector<32x32xf32>, vector<32x2xf32>, vector<32x2xf32> -> vector<32x2xf32>
    %189 = arith.addf %182, %188 : vector<32x2xf32>
    %c7_204 = arith.constant 7 : index
    %c0_205 = arith.constant 0 : index
    %c0_206 = arith.constant 0 : index
    %190 = vector.load %arg10[%c7_204, %c0_205, %c0_206] : memref<9x8x2xf32, #tpu.memory_space<vmem>>, vector<1x8x2xf32>
    %191 = vector.shape_cast %190 : vector<1x8x2xf32> to vector<8x2xf32>
    %cst_207 = arith.constant dense<0.000000e+00> : vector<32x2xf32>
    %192 = tpu.matmul %141, %191, %cst_207 {dimension_numbers = #tpu.dot_dimension_numbers<[1], [0], [0], [1], [0, 0, 1, 1], [], []>} : vector<32x8xf32>, vector<8x2xf32>, vector<32x2xf32> -> vector<32x2xf32>
    %c7_208 = arith.constant 7 : index
    %c0_209 = arith.constant 0 : index
    %c0_210 = arith.constant 0 : index
    %193 = vector.load %arg11[%c7_208, %c0_209, %c0_210] : memref<9x32x32xf32, #tpu.memory_space<vmem>>, vector<1x32x32xf32>
    %194 = vector.shape_cast %193 : vector<1x32x32xf32> to vector<32x32xf32>
    %cst_211 = arith.constant dense<0.000000e+00> : vector<32x2xf32>
    %195 = tpu.matmul %194, %192, %cst_211 {dimension_numbers = #tpu.dot_dimension_numbers<[1], [0], [0], [1], [0, 0, 1, 1], [], []>} : vector<32x32xf32>, vector<32x2xf32>, vector<32x2xf32> -> vector<32x2xf32>
    %196 = arith.addf %189, %195 : vector<32x2xf32>
    %c8_212 = arith.constant 8 : index
    %c0_213 = arith.constant 0 : index
    %c0_214 = arith.constant 0 : index
    %197 = vector.load %arg10[%c8_212, %c0_213, %c0_214] : memref<9x8x2xf32, #tpu.memory_space<vmem>>, vector<1x8x2xf32>
    %198 = vector.shape_cast %197 : vector<1x8x2xf32> to vector<8x2xf32>
    %cst_215 = arith.constant dense<0.000000e+00> : vector<32x2xf32>
    %199 = tpu.matmul %141, %198, %cst_215 {dimension_numbers = #tpu.dot_dimension_numbers<[1], [0], [0], [1], [0, 0, 1, 1], [], []>} : vector<32x8xf32>, vector<8x2xf32>, vector<32x2xf32> -> vector<32x2xf32>
    %c8_216 = arith.constant 8 : index
    %c0_217 = arith.constant 0 : index
    %c0_218 = arith.constant 0 : index
    %200 = vector.load %arg11[%c8_216, %c0_217, %c0_218] : memref<9x32x32xf32, #tpu.memory_space<vmem>>, vector<1x32x32xf32>
    %201 = vector.shape_cast %200 : vector<1x32x32xf32> to vector<32x32xf32>
    %cst_219 = arith.constant dense<0.000000e+00> : vector<32x2xf32>
    %202 = tpu.matmul %201, %199, %cst_219 {dimension_numbers = #tpu.dot_dimension_numbers<[1], [0], [0], [1], [0, 0, 1, 1], [], []>} : vector<32x32xf32>, vector<32x2xf32>, vector<32x2xf32> -> vector<32x2xf32>
    %203 = arith.addf %196, %202 : vector<32x2xf32>
    %c0_220 = arith.constant 0 : index
    %c0_221 = arith.constant 0 : index
    %204 = vector.load %arg12[%c0_220, %c0_221] : memref<32x1xf32, #tpu.memory_space<vmem>>, vector<32x1xf32>
    %205 = vector.broadcast %204 : vector<32x1xf32> to vector<32x2xf32>
    %206 = arith.addf %203, %205 : vector<32x2xf32>
    %cst_222 = arith.constant 0.000000e+00 : f32
    %207 = vector.broadcast %cst_222 : f32 to vector<32x2xf32>
    %208 = arith.maximumf %206, %207 : vector<32x2xf32>
    %c0_223 = arith.constant 0 : index
    %c0_224 = arith.constant 0 : index
    %209 = vector.load %arg13[%c0_223, %c0_224] : memref<2x2xf32, #tpu.memory_space<vmem>>, vector<2x2xf32>
    %cst_225 = arith.constant dense<0.000000e+00> : vector<32x2xf32>
    %210 = tpu.matmul %208, %209, %cst_225 {dimension_numbers = #tpu.dot_dimension_numbers<[1], [0], [0], [1], [0, 0, 1, 1], [], []>} : vector<32x2xf32>, vector<2x2xf32>, vector<32x2xf32> -> vector<32x2xf32>
    %c0_226 = arith.constant 0 : index
    %c0_227 = arith.constant 0 : index
    %211 = vector.load %arg14[%c0_226, %c0_227] : memref<10x32xf32, #tpu.memory_space<vmem>>, vector<10x32xf32>
    %cst_228 = arith.constant dense<0.000000e+00> : vector<10x2xf32>
    %212 = tpu.matmul %211, %210, %cst_228 {dimension_numbers = #tpu.dot_dimension_numbers<[1], [0], [0], [1], [0, 0, 1, 1], [], []>} : vector<10x32xf32>, vector<32x2xf32>, vector<10x2xf32> -> vector<10x2xf32>
    %c0_229 = arith.constant 0 : index
    %c0_230 = arith.constant 0 : index
    %213 = vector.load %arg15[%c0_229, %c0_230] : memref<10x1xf32, #tpu.memory_space<vmem>>, vector<10x1xf32>
    %214 = vector.broadcast %213 : vector<10x1xf32> to vector<10x2xf32>
    %215 = arith.addf %212, %214 : vector<10x2xf32>
    %216 = vector.shape_cast %215 : vector<10x2xf32> to vector<1x10x2xf32>
    %c0_231 = arith.constant 0 : index
    %c0_232 = arith.constant 0 : index
    %c0_233 = arith.constant 0 : index
    %217 = vector.load %arg16[%c0_231, %c0_232, %c0_233] : memref<1x10x2xf32, #tpu.memory_space<vmem>>, vector<1x10x2xf32>
    tpu.vector_store %arg16[%c0_231, %c0_232, %c0_233], %216 {strides = array<i32>} : memref<1x10x2xf32, #tpu.memory_space<vmem>>, vector<1x10x2xf32>,
    return
  }
  func.func @transform_0(%arg0: i32) -> (i32, i32) {
    %c0_i32 = arith.constant 0 : i32
    %c0_i32_0 = arith.constant 0 : i32
    return %c0_i32, %arg0 : i32, i32
  }
  func.func @transform_1(%arg0: i32) -> (i32, i32) {
    %c0_i32 = arith.constant 0 : i32
    %c0_i32_0 = arith.constant 0 : i32
    %c0_i32_1 = arith.constant 0 : i32
    return %c0_i32, %c0_i32_0 : i32, i32
  }
  func.func @transform_2(%arg0: i32) -> (i32, i32) {
    %c0_i32 = arith.constant 0 : i32
    %c0_i32_0 = arith.constant 0 : i32
    %c0_i32_1 = arith.constant 0 : i32
    return %c0_i32, %c0_i32_0 : i32, i32
  }
  func.func @transform_3(%arg0: i32) -> (i32, i32, i32) {
    %c0_i32 = arith.constant 0 : i32
    %c0_i32_0 = arith.constant 0 : i32
    %c0_i32_1 = arith.constant 0 : i32
    %c0_i32_2 = arith.constant 0 : i32
    return %c0_i32, %c0_i32_0, %c0_i32_1 : i32, i32, i32
  }
  func.func @transform_4(%arg0: i32) -> (i32, i32, i32) {
    %c0_i32 = arith.constant 0 : i32
    %c0_i32_0 = arith.constant 0 : i32
    %c0_i32_1 = arith.constant 0 : i32
    %c0_i32_2 = arith.constant 0 : i32
    return %c0_i32, %c0_i32_0, %c0_i32_1 : i32, i32, i32
  }
  func.func @transform_5(%arg0: i32) -> (i32, i32) {
    %c0_i32 = arith.constant 0 : i32
    %c0_i32_0 = arith.constant 0 : i32
    %c0_i32_1 = arith.constant 0 : i32
    return %c0_i32, %c0_i32_0 : i32, i32
  }
  func.func @transform_6(%arg0: i32) -> (i32, i32, i32) {
    %c0_i32 = arith.constant 0 : i32
    %c0_i32_0 = arith.constant 0 : i32
    %c0_i32_1 = arith.constant 0 : i32
    %c0_i32_2 = arith.constant 0 : i32
    return %c0_i32, %c0_i32_0, %c0_i32_1 : i32, i32, i32
  }
  func.func @transform_7(%arg0: i32) -> (i32, i32, i32) {
    %c0_i32 = arith.constant 0 : i32
    %c0_i32_0 = arith.constant 0 : i32
    %c0_i32_1 = arith.constant 0 : i32
    %c0_i32_2 = arith.constant 0 : i32
    return %c0_i32, %c0_i32_0, %c0_i32_1 : i32, i32, i32
  }
  func.func @transform_8(%arg0: i32) -> (i32, i32) {
    %c0_i32 = arith.constant 0 : i32
    %c0_i32_0 = arith.constant 0 : i32
    %c0_i32_1 = arith.constant 0 : i32
    return %c0_i32, %c0_i32_0 : i32, i32
  }
  func.func @transform_9(%arg0: i32) -> (i32, i32, i32) {
    %c0_i32 = arith.constant 0 : i32
    %c0_i32_0 = arith.constant 0 : i32
    %c0_i32_1 = arith.constant 0 : i32
    %c0_i32_2 = arith.constant 0 : i32
    return %c0_i32, %c0_i32_0, %c0_i32_1 : i32, i32, i32
  }
  func.func @transform_10(%arg0: i32) -> (i32, i32, i32) {
    %c0_i32 = arith.constant 0 : i32
    %c0_i32_0 = arith.constant 0 : i32
    %c0_i32_1 = arith.constant 0 : i32
    %c0_i32_2 = arith.constant 0 : i32
    return %c0_i32, %c0_i32_0, %c0_i32_1 : i32, i32, i32
  }
  func.func @transform_11(%arg0: i32) -> (i32, i32) {
    %c0_i32 = arith.constant 0 : i32
    %c0_i32_0 = arith.constant 0 : i32
    %c0_i32_1 = arith.constant 0 : i32
    return %c0_i32, %c0_i32_0 : i32, i32
  }
  func.func @transform_12(%arg0: i32) -> (i32, i32) {
    %c0_i32 = arith.constant 0 : i32
    %c0_i32_0 = arith.constant 0 : i32
    %c0_i32_1 = arith.constant 0 : i32
    return %c0_i32, %c0_i32_0 : i32, i32
  }
  func.func @transform_13(%arg0: i32) -> (i32, i32) {
    %c0_i32 = arith.constant 0 : i32
    %c0_i32_0 = arith.constant 0 : i32
    %c0_i32_1 = arith.constant 0 : i32
    return %c0_i32, %c0_i32_0 : i32, i32
  }
  func.func @transform_14(%arg0: i32) -> (i32, i32) {
    %c0_i32 = arith.constant 0 : i32
    %c0_i32_0 = arith.constant 0 : i32
    %c0_i32_1 = arith.constant 0 : i32
    return %c0_i32, %c0_i32_0 : i32, i32
  }
  func.func @transform_15(%arg0: i32) -> (i32, i32, i32) {
    %c0_i32 = arith.constant 0 : i32
    %c0_i32_0 = arith.constant 0 : i32
    %c0_i32_1 = arith.constant 0 : i32
    return %arg0, %c0_i32, %c0_i32_0 : i32, i32, i32
  }
}

</mosaic_0001>

<llo_original>
// kernel: fashion_mnist_net.1
$region0: #{fashion_mnist_net.1}
  #allocation0 [shape = 'u32[]', space=smem, size = 0x4, offset = 0x4, fixed_abs, tag = 'smem constant byte address 0x4 - core index']
  #allocation1 [shape = 'u32[144,128]{1,0:T(1,128)}', space=vmem, size = 0x12000, scoped, tag = 'internal scratch']
  %s0 = inlined_call_operand.vmem [shape: f32[32,128], index: 0, kind: input, shape index: {}]
  %s1 = inlined_call_operand.vmem [shape: f32[8,32], index: 1, kind: input, shape index: {}]
  %s2 = inlined_call_operand.vmem [shape: f32[8,1], index: 2, kind: input, shape index: {}]
  %s3 = inlined_call_operand.vmem [shape: f32[9,128,32], index: 3, kind: input, shape index: {}]
  %s4 = inlined_call_operand.vmem [shape: f32[9,16,8], index: 4, kind: input, shape index: {}]
  %s5 = inlined_call_operand.vmem [shape: f32[16,1], index: 5, kind: input, shape index: {}]
  %s6 = inlined_call_operand.vmem [shape: f32[9,32,8], index: 6, kind: input, shape index: {}]
  %s7 = inlined_call_operand.vmem [shape: f32[9,32,16], index: 7, kind: input, shape index: {}]
  %s8 = inlined_call_operand.vmem [shape: f32[32,1], index: 8, kind: input, shape index: {}]
  %s9 = inlined_call_operand.vmem [shape: f32[9,8,2], index: 9, kind: input, shape index: {}]
  %s10 = inlined_call_operand.vmem [shape: f32[9,32,32], index: 10, kind: input, shape index: {}]
  %s11 = inlined_call_operand.vmem [shape: f32[32,1], index: 11, kind: input, shape index: {}]
  %s12 = inlined_call_operand.vmem [shape: f32[2,2], index: 12, kind: input, shape index: {}]
  %s13 = inlined_call_operand.vmem [shape: f32[10,32], index: 13, kind: input, shape index: {}]
  %s14 = inlined_call_operand.vmem [shape: f32[10,1], index: 14, kind: input, shape index: {}]
  %s15 = inlined_call_operand.vmem [shape: f32[1,10,2], index: 15, kind: output, shape index: {}]
  %s16 = sld [smem:[#allocation0]]
  $region70: #{fashion_mnist_net.1} parent=0
    _
  %s18 = ssub.s32 1, %s16
  %s19 = scalar_select 0, %s18, %s16
  // Predicated region
  $region2: #{fashion_mnist_net.1} parent=0 // pred_check
    _
  $region3: #{fashion_mnist_net.1} parent=0 // pred_check_branch
    %21 = sbr.rel (0) target = $region5
  $region4: #{fashion_mnist_net.1} parent=0 // pred_region
    _
  $region5: #{fashion_mnist_net.1} parent=0 // pred_fallthru
    _
  // Predicated region
  $region6: #{fashion_mnist_net.1} parent=0 // pred_check
    _
  $region7: #{fashion_mnist_net.1} parent=0 // pred_check_branch
    %23 = sbr.rel (0) target = $region9
  $region8: #{fashion_mnist_net.1} parent=0 // pred_region
    _
  $region9: #{fashion_mnist_net.1} parent=0 // pred_fallthru
    _
  // Predicated region
  $region10: #{fashion_mnist_net.1} parent=0 // pred_check
    _
  $region11: #{fashion_mnist_net.1} parent=0 // pred_check_branch
    %25 = sbr.rel (0) target = $region13
  $region12: #{fashion_mnist_net.1} parent=0 // pred_region
    _
  $region13: #{fashion_mnist_net.1} parent=0 // pred_fallthru
    _
  // Predicated region
  $region14: #{fashion_mnist_net.1} parent=0 // pred_check
    _
  $region15: #{fashion_mnist_net.1} parent=0 // pred_check_branch
    %27 = sbr.rel (0) target = $region17
  $region16: #{fashion_mnist_net.1} parent=0 // pred_region
    _
  $region17: #{fashion_mnist_net.1} parent=0 // pred_fallthru
    _
  // Predicated region
  $region18: #{fashion_mnist_net.1} parent=0 // pred_check
    _
  $region19: #{fashion_mnist_net.1} parent=0 // pred_check_branch
    %29 = sbr.rel (0) target = $region21
  $region20: #{fashion_mnist_net.1} parent=0 // pred_region
    _
  $region21: #{fashion_mnist_net.1} parent=0 // pred_fallthru
    _
  // Predicated region
  $region22: #{fashion_mnist_net.1} parent=0 // pred_check
    _
  $region23: #{fashion_mnist_net.1} parent=0 // pred_check_branch
    %31 = sbr.rel (0) target = $region25
  $region24: #{fashion_mnist_net.1} parent=0 // pred_region
    _
  $region25: #{fashion_mnist_net.1} parent=0 // pred_fallthru
    _
  // Predicated region
  $region26: #{fashion_mnist_net.1} parent=0 // pred_check
    _
  $region27: #{fashion_mnist_net.1} parent=0 // pred_check_branch
    %33 = sbr.rel (0) target = $region29
  $region28: #{fashion_mnist_net.1} parent=0 // pred_region
    _
  $region29: #{fashion_mnist_net.1} parent=0 // pred_fallthru
    _
  // Predicated region
  $region30: #{fashion_mnist_net.1} parent=0 // pred_check
    _
  $region31: #{fashion_mnist_net.1} parent=0 // pred_check_branch
    %35 = sbr.rel (0) target = $region33
  $region32: #{fashion_mnist_net.1} parent=0 // pred_region
    _
  $region33: #{fashion_mnist_net.1} parent=0 // pred_fallthru
    _
  // Predicated region
  $region34: #{fashion_mnist_net.1} parent=0 // pred_check
    _
  $region35: #{fashion_mnist_net.1} parent=0 // pred_check_branch
    %37 = sbr.rel (0) target = $region37
  $region36: #{fashion_mnist_net.1} parent=0 // pred_region
    _
  $region37: #{fashion_mnist_net.1} parent=0 // pred_fallthru
    _
  // Predicated region
  $region38: #{fashion_mnist_net.1} parent=0 // pred_check
    _
  $region39: #{fashion_mnist_net.1} parent=0 // pred_check_branch
    %39 = sbr.rel (0) target = $region41
  $region40: #{fashion_mnist_net.1} parent=0 // pred_region
    _
  $region41: #{fashion_mnist_net.1} parent=0 // pred_fallthru
    _
  // Predicated region
  $region42: #{fashion_mnist_net.1} parent=0 // pred_check
    _
  $region43: #{fashion_mnist_net.1} parent=0 // pred_check_branch
    %41 = sbr.rel (0) target = $region45
  $region44: #{fashion_mnist_net.1} parent=0 // pred_region
    _
  $region45: #{fashion_mnist_net.1} parent=0 // pred_fallthru
    _
  // Predicated region
  $region46: #{fashion_mnist_net.1} parent=0 // pred_check
    _
  $region47: #{fashion_mnist_net.1} parent=0 // pred_check_branch
    %43 = sbr.rel (0) target = $region49
  $region48: #{fashion_mnist_net.1} parent=0 // pred_region
    _
  $region49: #{fashion_mnist_net.1} parent=0 // pred_fallthru
    _
  // Predicated region
  $region50: #{fashion_mnist_net.1} parent=0 // pred_check
    _
  $region51: #{fashion_mnist_net.1} parent=0 // pred_check_branch
    %45 = sbr.rel (0) target = $region53
  $region52: #{fashion_mnist_net.1} parent=0 // pred_region
    _
  $region53: #{fashion_mnist_net.1} parent=0 // pred_fallthru
    _
  // Predicated region
  $region54: #{fashion_mnist_net.1} parent=0 // pred_check
    _
  $region55: #{fashion_mnist_net.1} parent=0 // pred_check_branch
    %47 = sbr.rel (0) target = $region57
  $region56: #{fashion_mnist_net.1} parent=0 // pred_region
    _
  $region57: #{fashion_mnist_net.1} parent=0 // pred_fallthru
    _
  // Predicated region
  $region58: #{fashion_mnist_net.1} parent=0 // pred_check
    _
  $region59: #{fashion_mnist_net.1} parent=0 // pred_check_branch
    %49 = sbr.rel (0) target = $region61
  $region60: #{fashion_mnist_net.1} parent=0 // pred_region
    _
  $region61: #{fashion_mnist_net.1} parent=0 // pred_fallthru
    _
  %v50 = vld [vmem:[%s1] sm:$0xff]
  %v51 = vld [vmem:[%s0] sm:$0xff]
  %v52 = vld [vmem:[%s0 + $0x8] sm:$0xff]
  %v53 = vld [vmem:[%s0 + $0x10] sm:$0xff]
  %v54 = vld [vmem:[%s0 + $0x18] sm:$0xff]
  %v55 = vld [vmem:[%s2] sm:$0xff]
  %57 = vset.pattern.permute.xlu0 0
  %58 = vperm.xlu0 %57, %v55
  %v59 = vpop.permute.xlu0 %58
  %vm61 = vcmask 261120
  %v63 = vsel %vm61, %v50, 0
  %65 = vmatprep.subr.mxu0 0.0
  %66 = vmatpush1.msra.mxu0 %v51
  %67 = vmatprep.subr.mxu0 0.0
  %68 = vmatpush1.msra.mxu0 %v52
  %69 = vmatprep.subr.mxu0 0.0
  %70 = vmatpush1.msra.mxu0 %v53
  %71 = vmatprep.subr.mxu0 0.0
  %72 = vmatpush1.msra.mxu0 %v54
  %73 = vmatprep.subr.mxu0 0.0
  %74 = vmatpush1.msra.mxu0 0.0
  %75 = vmatprep.subr.mxu0 0.0
  %76 = vmatpush1.msra.mxu0 0.0
  %77 = vmatprep.subr.mxu0 0.0
  %78 = vmatpush1.msra.mxu0 0.0
  %79 = vmatprep.subr.mxu0 0.0
  %80 = vmatpush1.msra.mxu0 0.0
  %81 = vmatprep.subr.mxu0 0.0
  %82 = vmatpush1.msra.mxu0 0.0
  %83 = vmatprep.subr.mxu0 0.0
  %84 = vmatpush1.msra.mxu0 0.0
  %85 = vmatprep.subr.mxu0 0.0
  %86 = vmatpush1.msra.mxu0 0.0
  %87 = vmatprep.subr.mxu0 0.0
  %88 = vmatpush1.msra.mxu0 0.0
  %89 = vmatprep.subr.mxu0 0.0
  %90 = vmatpush1.msra.mxu0 0.0
  %91 = vmatprep.subr.mxu0 0.0
  %92 = vmatpush1.msra.mxu0 0.0
  %93 = vmatprep.subr.mxu0 0.0
  %94 = vmatpush1.msra.mxu0 0.0
  %95 = vmatprep.subr.mxu0 0.0
  %96 = vmatpush1.msra.mxu0 0.0
  %97 = vmatprep.subr.mxu0 0.0
  %98 = vmatpush1.msra.mxu0 0.0
  %99 = vmatprep.subr.mxu0 0.0
  %100 = vmatpush1.msra.mxu0 0.0
  %101 = vmatprep.subr.mxu0 0.0
  %102 = vmatpush1.msra.mxu0 0.0
  %103 = vmatprep.subr.mxu0 0.0
  %104 = vmatpush1.msra.mxu0 0.0
  %105 = vmatprep.subr.mxu0 0.0
  %106 = vmatpush1.msra.mxu0 0.0
  %107 = vmatprep.subr.mxu0 0.0
  %108 = vmatpush1.msra.mxu0 0.0
  %109 = vmatprep.subr.mxu0 0.0
  %110 = vmatpush1.msra.mxu0 0.0
  %111 = vmatprep.subr.mxu0 0.0
  %112 = vmatpush1.msra.mxu0 0.0
  %113 = vmatprep.subr.mxu0 0.0
  %114 = vmatpush1.msra.mxu0 0.0
  %115 = vmatprep.subr.mxu0 0.0
  %116 = vmatpush1.msra.mxu0 0.0
  %117 = vmatprep.subr.mxu0 0.0
  %118 = vmatpush1.msra.mxu0 0.0
  %119 = vmatprep.subr.mxu0 0.0
  %120 = vmatpush1.msra.mxu0 0.0
  %121 = vmatprep.subr.mxu0 0.0
  %122 = vmatpush1.msra.mxu0 0.0
  %123 = vmatprep.subr.mxu0 0.0
  %124 = vmatpush1.msra.mxu0 0.0
  %125 = vmatprep.subr.mxu0 0.0
  %126 = vmatpush1.msra.mxu0 0.0
  %127 = vmatprep.subr.mxu0 0.0
  %128 = vmatpush1.msra.mxu0 0.0
  %129 = vmatprep.mubr.f32.mxu0 0.0
  %130 = vmatmul.mubr.f32.gmra.mrb[0].mxu0 %v63
  %v131 = vpop.f32.mrb[0].mxu0
  %v132 = vadd.f32 %v59, %v131
  %v133 = vpop.f32.mrb[0].mxu0
  %134 = vdwg.mxu0
  %v135 = vmax.f32 %v132, 0.0
  %v136 = vld [vmem:[%s3] sm:$0xff]
  %v137 = vld [vmem:[%s3 + $0x8] sm:$0xff]
  %v138 = vld [vmem:[%s3 + $0x10] sm:$0xff]
  %v139 = vld [vmem:[%s3 + $0x18] sm:$0xff]
  %v140 = vld [vmem:[%s3 + $0x20] sm:$0xff]
  %v141 = vld [vmem:[%s3 + $0x28] sm:$0xff]
  %v142 = vld [vmem:[%s3 + $0x30] sm:$0xff]
  %v143 = vld [vmem:[%s3 + $0x38] sm:$0xff]
  %v144 = vld [vmem:[%s3 + $0x40] sm:$0xff]
  %v145 = vld [vmem:[%s3 + $0x48] sm:$0xff]
  %v146 = vld [vmem:[%s3 + $0x50] sm:$0xff]
  %v147 = vld [vmem:[%s3 + $0x58] sm:$0xff]
  %v148 = vld [vmem:[%s3 + $0x60] sm:$0xff]
  %v149 = vld [vmem:[%s3 + $0x68] sm:$0xff]
  %v150 = vld [vmem:[%s3 + $0x70] sm:$0xff]
  %v151 = vld [vmem:[%s3 + $0x78] sm:$0xff]
  %152 = vmatprep.subr.mxu0 0.0
  %153 = vmatpush1.msra.mxu0 %v136
  %154 = vmatprep.subr.mxu0 0.0
  %155 = vmatpush1.msra.mxu0 %v137
  %156 = vmatprep.subr.mxu0 0.0
  %157 = vmatpush1.msra.mxu0 %v138
  %158 = vmatprep.subr.mxu0 0.0
  %159 = vmatpush1.msra.mxu0 %v139
  %160 = vmatprep.subr.mxu0 0.0
  %161 = vmatpush1.msra.mxu0 %v140
  %162 = vmatprep.subr.mxu0 0.0
  %163 = vmatpush1.msra.mxu0 %v141
  %164 = vmatprep.subr.mxu0 0.0
  %165 = vmatpush1.msra.mxu0 %v142
  %166 = vmatprep.subr.mxu0 0.0
  %167 = vmatpush1.msra.mxu0 %v143
  %168 = vmatprep.subr.mxu0 0.0
  %169 = vmatpush1.msra.mxu0 %v144
  %170 = vmatprep.subr.mxu0 0.0
  %171 = vmatpush1.msra.mxu0 %v145
  %172 = vmatprep.subr.mxu0 0.0
  %173 = vmatpush1.msra.mxu0 %v146
  %174 = vmatprep.subr.mxu0 0.0
  %175 = vmatpush1.msra.mxu0 %v147
  %176 = vmatprep.subr.mxu0 0.0
  %177 = vmatpush1.msra.mxu0 %v148
  %178 = vmatprep.subr.mxu0 0.0
  %179 = vmatpush1.msra.mxu0 %v149
  %180 = vmatprep.subr.mxu0 0.0
  %181 = vmatpush1.msra.mxu0 %v150
  %182 = vmatprep.subr.mxu0 0.0
  %183 = vmatpush1.msra.mxu0 %v151
  %184 = vmatprep.subr.mxu0 0.0
  %185 = vmatpush1.msra.mxu0 0.0
  %186 = vmatprep.subr.mxu0 0.0
  %187 = vmatpush1.msra.mxu0 0.0
  %188 = vmatprep.subr.mxu0 0.0
  %189 = vmatpush1.msra.mxu0 0.0
  %190 = vmatprep.subr.mxu0 0.0
  %191 = vmatpush1.msra.mxu0 0.0
  %192 = vmatprep.subr.mxu0 0.0
  %193 = vmatpush1.msra.mxu0 0.0
  %194 = vmatprep.subr.mxu0 0.0
  %195 = vmatpush1.msra.mxu0 0.0
  %196 = vmatprep.subr.mxu0 0.0
  %197 = vmatpush1.msra.mxu0 0.0
  %198 = vmatprep.subr.mxu0 0.0
  %199 = vmatpush1.msra.mxu0 0.0
  %200 = vmatprep.subr.mxu0 0.0
  %201 = vmatpush1.msra.mxu0 0.0
  %202 = vmatprep.subr.mxu0 0.0
  %203 = vmatpush1.msra.mxu0 0.0
  %204 = vmatprep.subr.mxu0 0.0
  %205 = vmatpush1.msra.mxu0 0.0
  %206 = vmatprep.subr.mxu0 0.0
  %207 = vmatpush1.msra.mxu0 0.0
  %208 = vmatprep.subr.mxu0 0.0
  %209 = vmatpush1.msra.mxu0 0.0
  %210 = vmatprep.subr.mxu0 0.0
  %211 = vmatpush1.msra.mxu0 0.0
  %212 = vmatprep.subr.mxu0 0.0
  %213 = vmatpush1.msra.mxu0 0.0
  %214 = vmatprep.subr.mxu0 0.0
  %215 = vmatpush1.msra.mxu0 0.0
  %216 = vmatprep.mubr.f32.mxu0 0.0
  %217 = vmatmul.mubr.f32.gmra.mrb[0].mxu0 %v135
  %v218 = vpop.f32.mrb[0].mxu0
  %v219 = vadd.f32 0.0, %v218
  %v220 = vpop.f32.mrb[0].mxu0
  %221 = vdwg.mxu0
  %v222 = vld [vmem:[%s4] sm:$0xff]
  %v223 = vld [vmem:[%s4 + $0x8] sm:$0xff]
  %s224 = scalar_lea.vmem %s3, 128
  %v225 = vld [vmem:[%s224] sm:$0xff]
  %v226 = vld [vmem:[%s224 + $0x8] sm:$0xff]
  %v227 = vld [vmem:[%s224 + $0x10] sm:$0xff]
  %v228 = vld [vmem:[%s224 + $0x18] sm:$0xff]
  %v229 = vld [vmem:[%s224 + $0x20] sm:$0xff]
  %v230 = vld [vmem:[%s224 + $0x28] sm:$0xff]
  %v231 = vld [vmem:[%s224 + $0x30] sm:$0xff]
  %v232 = vld [vmem:[%s224 + $0x38] sm:$0xff]
  %v233 = vld [vmem:[%s224 + $0x40] sm:$0xff]
  %v234 = vld [vmem:[%s224 + $0x48] sm:$0xff]
  %v235 = vld [vmem:[%s224 + $0x50] sm:$0xff]
  %v236 = vld [vmem:[%s224 + $0x58] sm:$0xff]
  %v237 = vld [vmem:[%s224 + $0x60] sm:$0xff]
  %v238 = vld [vmem:[%s224 + $0x68] sm:$0xff]
  %v239 = vld [vmem:[%s224 + $0x70] sm:$0xff]
  %v240 = vld [vmem:[%s224 + $0x78] sm:$0xff]
  %241 = vmatprep.subr.mxu0 0.0
  %242 = vmatpush1.msra.mxu0 %v225
  %243 = vmatprep.subr.mxu0 0.0
  %244 = vmatpush1.msra.mxu0 %v226
  %245 = vmatprep.subr.mxu0 0.0
  %246 = vmatpush1.msra.mxu0 %v227
  %247 = vmatprep.subr.mxu0 0.0
  %248 = vmatpush1.msra.mxu0 %v228
  %249 = vmatprep.subr.mxu0 0.0
  %250 = vmatpush1.msra.mxu0 %v229
  %251 = vmatprep.subr.mxu0 0.0
  %252 = vmatpush1.msra.mxu0 %v230
  %253 = vmatprep.subr.mxu0 0.0
  %254 = vmatpush1.msra.mxu0 %v231
  %255 = vmatprep.subr.mxu0 0.0
  %256 = vmatpush1.msra.mxu0 %v232
  %257 = vmatprep.subr.mxu0 0.0
  %258 = vmatpush1.msra.mxu0 %v233
  %259 = vmatprep.subr.mxu0 0.0
  %260 = vmatpush1.msra.mxu0 %v234
  %261 = vmatprep.subr.mxu0 0.0
  %262 = vmatpush1.msra.mxu0 %v235
  %263 = vmatprep.subr.mxu0 0.0
  %264 = vmatpush1.msra.mxu0 %v236
  %265 = vmatprep.subr.mxu0 0.0
  %266 = vmatpush1.msra.mxu0 %v237
  %267 = vmatprep.subr.mxu0 0.0
  %268 = vmatpush1.msra.mxu0 %v238
  %269 = vmatprep.subr.mxu0 0.0
  %270 = vmatpush1.msra.mxu0 %v239
  %271 = vmatprep.subr.mxu0 0.0
  %272 = vmatpush1.msra.mxu0 %v240
  %273 = vmatprep.subr.mxu0 0.0
  %274 = vmatpush1.msra.mxu0 0.0
  %275 = vmatprep.subr.mxu0 0.0
  %276 = vmatpush1.msra.mxu0 0.0
  %277 = vmatprep.subr.mxu0 0.0
  %278 = vmatpush1.msra.mxu0 0.0
  %279 = vmatprep.subr.mxu0 0.0
  %280 = vmatpush1.msra.mxu0 0.0
  %281 = vmatprep.subr.mxu0 0.0
  %282 = vmatpush1.msra.mxu0 0.0
  %283 = vmatprep.subr.mxu0 0.0
  %284 = vmatpush1.msra.mxu0 0.0
  %285 = vmatprep.subr.mxu0 0.0
  %286 = vmatpush1.msra.mxu0 0.0
  %287 = vmatprep.subr.mxu0 0.0
  %288 = vmatpush1.msra.mxu0 0.0
  %289 = vmatprep.subr.mxu0 0.0
  %290 = vmatpush1.msra.mxu0 0.0
  %291 = vmatprep.subr.mxu0 0.0
  %292 = vmatpush1.msra.mxu0 0.0
  %293 = vmatprep.subr.mxu0 0.0
  %294 = vmatpush1.msra.mxu0 0.0
  %295 = vmatprep.subr.mxu0 0.0
  %296 = vmatpush1.msra.mxu0 0.0
  %297 = vmatprep.subr.mxu0 0.0
  %298 = vmatpush1.msra.mxu0 0.0
  %299 = vmatprep.subr.mxu0 0.0
  %300 = vmatpush1.msra.mxu0 0.0
  %301 = vmatprep.subr.mxu0 0.0
  %302 = vmatpush1.msra.mxu0 0.0
  %303 = vmatprep.subr.mxu0 0.0
  %304 = vmatpush1.msra.mxu0 0.0
  %305 = vmatprep.mubr.f32.mxu0 0.0
  %306 = vmatmul.mubr.f32.gmra.mrb[0].mxu0 %v135
  %v307 = vpop.f32.mrb[0].mxu0
  %v308 = vadd.f32 0.0, %v307
  %v309 = vpop.f32.mrb[0].mxu0
  %310 = vdwg.mxu0
  %s311 = scalar_lea.vmem %s4, 16
  %v312 = vld [vmem:[%s311] sm:$0xff]
  %v313 = vld [vmem:[%s311 + $0x8] sm:$0xff]
  %vm314 = vcmask 64512
  %v316 = vsel %vm314, %v312, 0
  %v319 = vsel %vm314, %v313, 0
  %321 = vmatprep.subr.mxu0 0.0
  %322 = vmatpush1.msra.mxu0 %v308
  %323 = vmatprep.subr.mxu0 0.0
  %324 = vmatpush1.msra.mxu0 0.0
  %325 = vmatprep.subr.mxu0 0.0
  %326 = vmatpush1.msra.mxu0 0.0
  %327 = vmatprep.subr.mxu0 0.0
  %328 = vmatpush1.msra.mxu0 0.0
  %329 = vmatprep.subr.mxu0 0.0
  %330 = vmatpush1.msra.mxu0 0.0
  %331 = vmatprep.subr.mxu0 0.0
  %332 = vmatpush1.msra.mxu0 0.0
  %333 = vmatprep.subr.mxu0 0.0
  %334 = vmatpush1.msra.mxu0 0.0
  %335 = vmatprep.subr.mxu0 0.0
  %336 = vmatpush1.msra.mxu0 0.0
  %337 = vmatprep.subr.mxu0 0.0
  %338 = vmatpush1.msra.mxu0 0.0
  %339 = vmatprep.subr.mxu0 0.0
  %340 = vmatpush1.msra.mxu0 0.0
  %341 = vmatprep.subr.mxu0 0.0
  %342 = vmatpush1.msra.mxu0 0.0
  %343 = vmatprep.subr.mxu0 0.0
  %344 = vmatpush1.msra.mxu0 0.0
  %345 = vmatprep.subr.mxu0 0.0
  %346 = vmatpush1.msra.mxu0 0.0
  %347 = vmatprep.subr.mxu0 0.0
  %348 = vmatpush1.msra.mxu0 0.0
  %349 = vmatprep.subr.mxu0 0.0
  %350 = vmatpush1.msra.mxu0 0.0
  %351 = vmatprep.subr.mxu0 0.0
  %352 = vmatpush1.msra.mxu0 0.0
  %353 = vmatprep.subr.mxu0 0.0
  %354 = vmatpush1.msra.mxu0 0.0
  %355 = vmatprep.subr.mxu0 0.0
  %356 = vmatpush1.msra.mxu0 0.0
  %357 = vmatprep.subr.mxu0 0.0
  %358 = vmatpush1.msra.mxu0 0.0
  %359 = vmatprep.subr.mxu0 0.0
  %360 = vmatpush1.msra.mxu0 0.0
  %361 = vmatprep.subr.mxu0 0.0
  %362 = vmatpush1.msra.mxu0 0.0
  %363 = vmatprep.subr.mxu0 0.0
  %364 = vmatpush1.msra.mxu0 0.0
  %365 = vmatprep.subr.mxu0 0.0
  %366 = vmatpush1.msra.mxu0 0.0
  %367 = vmatprep.subr.mxu0 0.0
  %368 = vmatpush1.msra.mxu0 0.0
  %369 = vmatprep.subr.mxu0 0.0
  %370 = vmatpush1.msra.mxu0 0.0
  %371 = vmatprep.subr.mxu0 0.0
  %372 = vmatpush1.msra.mxu0 0.0
  %373 = vmatprep.subr.mxu0 0.0
  %374 = vmatpush1.msra.mxu0 0.0
  %375 = vmatprep.subr.mxu0 0.0
  %376 = vmatpush1.msra.mxu0 0.0
  %377 = vmatprep.subr.mxu0 0.0
  %378 = vmatpush1.msra.mxu0 0.0
  %379 = vmatprep.subr.mxu0 0.0
  %380 = vmatpush1.msra.mxu0 0.0
  %381 = vmatprep.subr.mxu0 0.0
  %382 = vmatpush1.msra.mxu0 0.0
  %383 = vmatprep.subr.mxu0 0.0
  %384 = vmatpush1.msra.mxu0 0.0
  %385 = vmatprep.mubr.f32.mxu0 0.0
  %386 = vmatmul.mubr.f32.gmra.mrb[0].mxu0 %v316
  %v387 = vpop.f32.mrb[0].mxu0
  %v388 = vadd.f32 0.0, %v387
  %v389 = vpop.f32.mrb[0].mxu0
  %390 = vmatprep.mubr.f32.mxu0 0.0
  %391 = vmatmul.mubr.f32.gmra.mrb[0].mxu0 %v319
  %v392 = vpop.f32.mrb[0].mxu0
  %v393 = vadd.f32 0.0, %v392
  %v394 = vpop.f32.mrb[0].mxu0
  %395 = vdwg.mxu0
  %v397 = vsel %vm314, %v222, 0
  %v400 = vsel %vm314, %v223, 0
  %402 = vmatprep.subr.mxu0 0.0
  %403 = vmatpush1.msra.mxu0 %v219
  %404 = vmatprep.subr.mxu0 0.0
  %405 = vmatpush1.msra.mxu0 0.0
  %406 = vmatprep.subr.mxu0 0.0
  %407 = vmatpush1.msra.mxu0 0.0
  %408 = vmatprep.subr.mxu0 0.0
  %409 = vmatpush1.msra.mxu0 0.0
  %410 = vmatprep.subr.mxu0 0.0
  %411 = vmatpush1.msra.mxu0 0.0
  %412 = vmatprep.subr.mxu0 0.0
  %413 = vmatpush1.msra.mxu0 0.0
  %414 = vmatprep.subr.mxu0 0.0
  %415 = vmatpush1.msra.mxu0 0.0
  %416 = vmatprep.subr.mxu0 0.0
  %417 = vmatpush1.msra.mxu0 0.0
  %418 = vmatprep.subr.mxu0 0.0
  %419 = vmatpush1.msra.mxu0 0.0
  %420 = vmatprep.subr.mxu0 0.0
  %421 = vmatpush1.msra.mxu0 0.0
  %422 = vmatprep.subr.mxu0 0.0
  %423 = vmatpush1.msra.mxu0 0.0
  %424 = vmatprep.subr.mxu0 0.0
  %425 = vmatpush1.msra.mxu0 0.0
  %426 = vmatprep.subr.mxu0 0.0
  %427 = vmatpush1.msra.mxu0 0.0
  %428 = vmatprep.subr.mxu0 0.0
  %429 = vmatpush1.msra.mxu0 0.0
  %430 = vmatprep.subr.mxu0 0.0
  %431 = vmatpush1.msra.mxu0 0.0
  %432 = vmatprep.subr.mxu0 0.0
  %433 = vmatpush1.msra.mxu0 0.0
  %434 = vmatprep.subr.mxu0 0.0
  %435 = vmatpush1.msra.mxu0 0.0
  %436 = vmatprep.subr.mxu0 0.0
  %437 = vmatpush1.msra.mxu0 0.0
  %438 = vmatprep.subr.mxu0 0.0
  %439 = vmatpush1.msra.mxu0 0.0
  %440 = vmatprep.subr.mxu0 0.0
  %441 = vmatpush1.msra.mxu0 0.0
  %442 = vmatprep.subr.mxu0 0.0
  %443 = vmatpush1.msra.mxu0 0.0
  %444 = vmatprep.subr.mxu0 0.0
  %445 = vmatpush1.msra.mxu0 0.0
  %446 = vmatprep.subr.mxu0 0.0
  %447 = vmatpush1.msra.mxu0 0.0
  %448 = vmatprep.subr.mxu0 0.0
  %449 = vmatpush1.msra.mxu0 0.0
  %450 = vmatprep.subr.mxu0 0.0
  %451 = vmatpush1.msra.mxu0 0.0
  %452 = vmatprep.subr.mxu0 0.0
  %453 = vmatpush1.msra.mxu0 0.0
  %454 = vmatprep.subr.mxu0 0.0
  %455 = vmatpush1.msra.mxu0 0.0
  %456 = vmatprep.subr.mxu0 0.0
  %457 = vmatpush1.msra.mxu0 0.0
  %458 = vmatprep.subr.mxu0 0.0
  %459 = vmatpush1.msra.mxu0 0.0
  %460 = vmatprep.subr.mxu0 0.0
  %461 = vmatpush1.msra.mxu0 0.0
  %462 = vmatprep.subr.mxu0 0.0
  %463 = vmatpush1.msra.mxu0 0.0
  %464 = vmatprep.subr.mxu0 0.0
  %465 = vmatpush1.msra.mxu0 0.0
  %466 = vmatprep.mubr.f32.mxu0 0.0
  %467 = vmatmul.mubr.f32.gmra.mrb[0].mxu0 %v397
  %v468 = vpop.f32.mrb[0].mxu0
  %v469 = vadd.f32 %v388, %v468
  %v470 = vpop.f32.mrb[0].mxu0
  %471 = vmatprep.mubr.f32.mxu0 0.0
  %472 = vmatmul.mubr.f32.gmra.mrb[0].mxu0 %v400
  %v473 = vpop.f32.mrb[0].mxu0
  %v474 = vadd.f32 %v393, %v473
  %v475 = vpop.f32.mrb[0].mxu0
  %476 = vdwg.mxu0
  %s477 = scalar_lea.vmem %s3, 256
  %v478 = vld [vmem:[%s477] sm:$0xff]
  %v479 = vld [vmem:[%s477 + $0x8] sm:$0xff]
  %v480 = vld [vmem:[%s477 + $0x10] sm:$0xff]
  %v481 = vld [vmem:[%s477 + $0x18] sm:$0xff]
  %v482 = vld [vmem:[%s477 + $0x20] sm:$0xff]
  %v483 = vld [vmem:[%s477 + $0x28] sm:$0xff]
  %v484 = vld [vmem:[%s477 + $0x30] sm:$0xff]
  %v485 = vld [vmem:[%s477 + $0x38] sm:$0xff]
  %v486 = vld [vmem:[%s477 + $0x40] sm:$0xff]
  %v487 = vld [vmem:[%s477 + $0x48] sm:$0xff]
  %v488 = vld [vmem:[%s477 + $0x50] sm:$0xff]
  %v489 = vld [vmem:[%s477 + $0x58] sm:$0xff]
  %v490 = vld [vmem:[%s477 + $0x60] sm:$0xff]
  %v491 = vld [vmem:[%s477 + $0x68] sm:$0xff]
  %v492 = vld [vmem:[%s477 + $0x70] sm:$0xff]
  %v493 = vld [vmem:[%s477 + $0x78] sm:$0xff]
  %494 = vmatprep.subr.mxu0 0.0
  %495 = vmatpush1.msra.mxu0 %v478
  %496 = vmatprep.subr.mxu0 0.0
  %497 = vmatpush1.msra.mxu0 %v479
  %498 = vmatprep.subr.mxu0 0.0
  %499 = vmatpush1.msra.mxu0 %v480
  %500 = vmatprep.subr.mxu0 0.0
  %501 = vmatpush1.msra.mxu0 %v481
  %502 = vmatprep.subr.mxu0 0.0
  %503 = vmatpush1.msra.mxu0 %v482
  %504 = vmatprep.subr.mxu0 0.0
  %505 = vmatpush1.msra.mxu0 %v483
  %506 = vmatprep.subr.mxu0 0.0
  %507 = vmatpush1.msra.mxu0 %v484
  %508 = vmatprep.subr.mxu0 0.0
  %509 = vmatpush1.msra.mxu0 %v485
  %510 = vmatprep.subr.mxu0 0.0
  %511 = vmatpush1.msra.mxu0 %v486
  %512 = vmatprep.subr.mxu0 0.0
  %513 = vmatpush1.msra.mxu0 %v487
  %514 = vmatprep.subr.mxu0 0.0
  %515 = vmatpush1.msra.mxu0 %v488
  %516 = vmatprep.subr.mxu0 0.0
  %517 = vmatpush1.msra.mxu0 %v489
  %518 = vmatprep.subr.mxu0 0.0
  %519 = vmatpush1.msra.mxu0 %v490
  %520 = vmatprep.subr.mxu0 0.0
  %521 = vmatpush1.msra.mxu0 %v491
  %522 = vmatprep.subr.mxu0 0.0
  %523 = vmatpush1.msra.mxu0 %v492
  %524 = vmatprep.subr.mxu0 0.0
  %525 = vmatpush1.msra.mxu0 %v493
  %526 = vmatprep.subr.mxu0 0.0
  %527 = vmatpush1.msra.mxu0 0.0
  %528 = vmatprep.subr.mxu0 0.0
  %529 = vmatpush1.msra.mxu0 0.0
  %530 = vmatprep.subr.mxu0 0.0
  %531 = vmatpush1.msra.mxu0 0.0
  %532 = vmatprep.subr.mxu0 0.0
  %533 = vmatpush1.msra.mxu0 0.0
  %534 = vmatprep.subr.mxu0 0.0
  %535 = vmatpush1.msra.mxu0 0.0
  %536 = vmatprep.subr.mxu0 0.0
  %537 = vmatpush1.msra.mxu0 0.0
  %538 = vmatprep.subr.mxu0 0.0
  %539 = vmatpush1.msra.mxu0 0.0
  %540 = vmatprep.subr.mxu0 0.0
  %541 = vmatpush1.msra.mxu0 0.0
  %542 = vmatprep.subr.mxu0 0.0
  %543 = vmatpush1.msra.mxu0 0.0
  %544 = vmatprep.subr.mxu0 0.0
  %545 = vmatpush1.msra.mxu0 0.0
  %546 = vmatprep.subr.mxu0 0.0
  %547 = vmatpush1.msra.mxu0 0.0
  %548 = vmatprep.subr.mxu0 0.0
  %549 = vmatpush1.msra.mxu0 0.0
  %550 = vmatprep.subr.mxu0 0.0
  %551 = vmatpush1.msra.mxu0 0.0
  %552 = vmatprep.subr.mxu0 0.0
  %553 = vmatpush1.msra.mxu0 0.0
  %554 = vmatprep.subr.mxu0 0.0
  %555 = vmatpush1.msra.mxu0 0.0
  %556 = vmatprep.subr.mxu0 0.0
  %557 = vmatpush1.msra.mxu0 0.0
  %558 = vmatprep.mubr.f32.mxu0 0.0
  %559 = vmatmul.mubr.f32.gmra.mrb[0].mxu0 %v135
  %v560 = vpop.f32.mrb[0].mxu0
  %v561 = vadd.f32 0.0, %v560
  %v562 = vpop.f32.mrb[0].mxu0
  %563 = vdwg.mxu0
  %s564 = scalar_lea.vmem %s4, 32
  %v565 = vld [vmem:[%s564] sm:$0xff]
  %v566 = vld [vmem:[%s564 + $0x8] sm:$0xff]
  %v568 = vsel %vm314, %v565, 0
  %v571 = vsel %vm314, %v566, 0
  %573 = vmatprep.subr.mxu0 0.0
  %574 = vmatpush1.msra.mxu0 %v561
  %575 = vmatprep.subr.mxu0 0.0
  %576 = vmatpush1.msra.mxu0 0.0
  %577 = vmatprep.subr.mxu0 0.0
  %578 = vmatpush1.msra.mxu0 0.0
  %579 = vmatprep.subr.mxu0 0.0
  %580 = vmatpush1.msra.mxu0 0.0
  %581 = vmatprep.subr.mxu0 0.0
  %582 = vmatpush1.msra.mxu0 0.0
  %583 = vmatprep.subr.mxu0 0.0
  %584 = vmatpush1.msra.mxu0 0.0
  %585 = vmatprep.subr.mxu0 0.0
  %586 = vmatpush1.msra.mxu0 0.0
  %587 = vmatprep.subr.mxu0 0.0
  %588 = vmatpush1.msra.mxu0 0.0
  %589 = vmatprep.subr.mxu0 0.0
  %590 = vmatpush1.msra.mxu0 0.0
  %591 = vmatprep.subr.mxu0 0.0
  %592 = vmatpush1.msra.mxu0 0.0
  %593 = vmatprep.subr.mxu0 0.0
  %594 = vmatpush1.msra.mxu0 0.0
  %595 = vmatprep.subr.mxu0 0.0
  %596 = vmatpush1.msra.mxu0 0.0
  %597 = vmatprep.subr.mxu0 0.0
  %598 = vmatpush1.msra.mxu0 0.0
  %599 = vmatprep.subr.mxu0 0.0
  %600 = vmatpush1.msra.mxu0 0.0
  %601 = vmatprep.subr.mxu0 0.0
  %602 = vmatpush1.msra.mxu0 0.0
  %603 = vmatprep.subr.mxu0 0.0
  %604 = vmatpush1.msra.mxu0 0.0
  %605 = vmatprep.subr.mxu0 0.0
  %606 = vmatpush1.msra.mxu0 0.0
  %607 = vmatprep.subr.mxu0 0.0
  %608 = vmatpush1.msra.mxu0 0.0
  %609 = vmatprep.subr.mxu0 0.0
  %610 = vmatpush1.msra.mxu0 0.0
  %611 = vmatprep.subr.mxu0 0.0
  %612 = vmatpush1.msra.mxu0 0.0
  %613 = vmatprep.subr.mxu0 0.0
  %614 = vmatpush1.msra.mxu0 0.0
  %615 = vmatprep.subr.mxu0 0.0
  %616 = vmatpush1.msra.mxu0 0.0
  %617 = vmatprep.subr.mxu0 0.0
  %618 = vmatpush1.msra.mxu0 0.0
  %619 = vmatprep.subr.mxu0 0.0
  %620 = vmatpush1.msra.mxu0 0.0
  %621 = vmatprep.subr.mxu0 0.0
  %622 = vmatpush1.msra.mxu0 0.0
  %623 = vmatprep.subr.mxu0 0.0
  %624 = vmatpush1.msra.mxu0 0.0
  %625 = vmatprep.subr.mxu0 0.0
  %626 = vmatpush1.msra.mxu0 0.0
  %627 = vmatprep.subr.mxu0 0.0
  %628 = vmatpush1.msra.mxu0 0.0
  %629 = vmatprep.subr.mxu0 0.0
  %630 = vmatpush1.msra.mxu0 0.0
  %631 = vmatprep.subr.mxu0 0.0
  %632 = vmatpush1.msra.mxu0 0.0
  %633 = vmatprep.subr.mxu0 0.0
  %634 = vmatpush1.msra.mxu0 0.0
  %635 = vmatprep.subr.mxu0 0.0
  %636 = vmatpush1.msra.mxu0 0.0
  %637 = vmatprep.mubr.f32.mxu0 0.0
  %638 = vmatmul.mubr.f32.gmra.mrb[0].mxu0 %v568
  %v639 = vpop.f32.mrb[0].mxu0
  %v640 = vadd.f32 0.0, %v639
  %v641 = vpop.f32.mrb[0].mxu0
  %642 = vmatprep.mubr.f32.mxu0 0.0
  %643 = vmatmul.mubr.f32.gmra.mrb[0].mxu0 %v571
  %v644 = vpop.f32.mrb[0].mxu0
  %v645 = vadd.f32 0.0, %v644
  %v646 = vpop.f32.mrb[0].mxu0
  %647 = vdwg.mxu0
  %v648 = vadd.f32 %v469, %v640
  %v649 = vadd.f32 %v474, %v645
  %s650 = scalar_lea.vmem %s3, 384
  %v651 = vld [vmem:[%s650] sm:$0xff]
  %v652 = vld [vmem:[%s650 + $0x8] sm:$0xff]
  %v653 = vld [vmem:[%s650 + $0x10] sm:$0xff]
  %v654 = vld [vmem:[%s650 + $0x18] sm:$0xff]
  %v655 = vld [vmem:[%s650 + $0x20] sm:$0xff]
  %v656 = vld [vmem:[%s650 + $0x28] sm:$0xff]
  %v657 = vld [vmem:[%s650 + $0x30] sm:$0xff]
  %v658 = vld [vmem:[%s650 + $0x38] sm:$0xff]
  %v659 = vld [vmem:[%s650 + $0x40] sm:$0xff]
  %v660 = vld [vmem:[%s650 + $0x48] sm:$0xff]
  %v661 = vld [vmem:[%s650 + $0x50] sm:$0xff]
  %v662 = vld [vmem:[%s650 + $0x58] sm:$0xff]
  %v663 = vld [vmem:[%s650 + $0x60] sm:$0xff]
  %v664 = vld [vmem:[%s650 + $0x68] sm:$0xff]
  %v665 = vld [vmem:[%s650 + $0x70] sm:$0xff]
  %v666 = vld [vmem:[%s650 + $0x78] sm:$0xff]
  %667 = vmatprep.subr.mxu0 0.0
  %668 = vmatpush1.msra.mxu0 %v651
  %669 = vmatprep.subr.mxu0 0.0
  %670 = vmatpush1.msra.mxu0 %v652
  %671 = vmatprep.subr.mxu0 0.0
  %672 = vmatpush1.msra.mxu0 %v653
  %673 = vmatprep.subr.mxu0 0.0
  %674 = vmatpush1.msra.mxu0 %v654
  %675 = vmatprep.subr.mxu0 0.0
  %676 = vmatpush1.msra.mxu0 %v655
  %677 = vmatprep.subr.mxu0 0.0
  %678 = vmatpush1.msra.mxu0 %v656
  %679 = vmatprep.subr.mxu0 0.0
  %680 = vmatpush1.msra.mxu0 %v657
  %681 = vmatprep.subr.mxu0 0.0
  %682 = vmatpush1.msra.mxu0 %v658
  %683 = vmatprep.subr.mxu0 0.0
  %684 = vmatpush1.msra.mxu0 %v659
  %685 = vmatprep.subr.mxu0 0.0
  %686 = vmatpush1.msra.mxu0 %v660
  %687 = vmatprep.subr.mxu0 0.0
  %688 = vmatpush1.msra.mxu0 %v661
  %689 = vmatprep.subr.mxu0 0.0
  %690 = vmatpush1.msra.mxu0 %v662
  %691 = vmatprep.subr.mxu0 0.0
  %692 = vmatpush1.msra.mxu0 %v663
  %693 = vmatprep.subr.mxu0 0.0
  %694 = vmatpush1.msra.mxu0 %v664
  %695 = vmatprep.subr.mxu0 0.0
  %696 = vmatpush1.msra.mxu0 %v665
  %697 = vmatprep.subr.mxu0 0.0
  %698 = vmatpush1.msra.mxu0 %v666
  %699 = vmatprep.subr.mxu0 0.0
  %700 = vmatpush1.msra.mxu0 0.0
  %701 = vmatprep.subr.mxu0 0.0
  %702 = vmatpush1.msra.mxu0 0.0
  %703 = vmatprep.subr.mxu0 0.0
  %704 = vmatpush1.msra.mxu0 0.0
  %705 = vmatprep.subr.mxu0 0.0
  %706 = vmatpush1.msra.mxu0 0.0
  %707 = vmatprep.subr.mxu0 0.0
  %708 = vmatpush1.msra.mxu0 0.0
  %709 = vmatprep.subr.mxu0 0.0
  %710 = vmatpush1.msra.mxu0 0.0
  %711 = vmatprep.subr.mxu0 0.0
  %712 = vmatpush1.msra.mxu0 0.0
  %713 = vmatprep.subr.mxu0 0.0
  %714 = vmatpush1.msra.mxu0 0.0
  %715 = vmatprep.subr.mxu0 0.0
  %716 = vmatpush1.msra.mxu0 0.0
  %717 = vmatprep.subr.mxu0 0.0
  %718 = vmatpush1.msra.mxu0 0.0
  %719 = vmatprep.subr.mxu0 0.0
  %720 = vmatpush1.msra.mxu0 0.0
  %721 = vmatprep.subr.mxu0 0.0
  %722 = vmatpush1.msra.mxu0 0.0
  %723 = vmatprep.subr.mxu0 0.0
  %724 = vmatpush1.msra.mxu0 0.0
  %725 = vmatprep.subr.mxu0 0.0
  %726 = vmatpush1.msra.mxu0 0.0
  %727 = vmatprep.subr.mxu0 0.0
  %728 = vmatpush1.msra.mxu0 0.0
  %729 = vmatprep.subr.mxu0 0.0
  %730 = vmatpush1.msra.mxu0 0.0
  %731 = vmatprep.mubr.f32.mxu0 0.0
  %732 = vmatmul.mubr.f32.gmra.mrb[0].mxu0 %v135
  %v733 = vpop.f32.mrb[0].mxu0
  %v734 = vadd.f32 0.0, %v733
  %v735 = vpop.f32.mrb[0].mxu0
  %736 = vdwg.mxu0
  %s737 = scalar_lea.vmem %s4, 48
  %v738 = vld [vmem:[%s737] sm:$0xff]
  %v739 = vld [vmem:[%s737 + $0x8] sm:$0xff]
  %v741 = vsel %vm314, %v738, 0
  %v744 = vsel %vm314, %v739, 0
  %746 = vmatprep.subr.mxu0 0.0
  %747 = vmatpush1.msra.mxu0 %v734
  %748 = vmatprep.subr.mxu0 0.0
  %749 = vmatpush1.msra.mxu0 0.0
  %750 = vmatprep.subr.mxu0 0.0
  %751 = vmatpush1.msra.mxu0 0.0
  %752 = vmatprep.subr.mxu0 0.0
  %753 = vmatpush1.msra.mxu0 0.0
  %754 = vmatprep.subr.mxu0 0.0
  %755 = vmatpush1.msra.mxu0 0.0
  %756 = vmatprep.subr.mxu0 0.0
  %757 = vmatpush1.msra.mxu0 0.0
  %758 = vmatprep.subr.mxu0 0.0
  %759 = vmatpush1.msra.mxu0 0.0
  %760 = vmatprep.subr.mxu0 0.0
  %761 = vmatpush1.msra.mxu0 0.0
  %762 = vmatprep.subr.mxu0 0.0
  %763 = vmatpush1.msra.mxu0 0.0
  %764 = vmatprep.subr.mxu0 0.0
  %765 = vmatpush1.msra.mxu0 0.0
  %766 = vmatprep.subr.mxu0 0.0
  %767 = vmatpush1.msra.mxu0 0.0
  %768 = vmatprep.subr.mxu0 0.0
  %769 = vmatpush1.msra.mxu0 0.0
  %770 = vmatprep.subr.mxu0 0.0
  %771 = vmatpush1.msra.mxu0 0.0
  %772 = vmatprep.subr.mxu0 0.0
  %773 = vmatpush1.msra.mxu0 0.0
  %774 = vmatprep.subr.mxu0 0.0
  %775 = vmatpush1.msra.mxu0 0.0
  %776 = vmatprep.subr.mxu0 0.0
  %777 = vmatpush1.msra.mxu0 0.0
  %778 = vmatprep.subr.mxu0 0.0
  %779 = vmatpush1.msra.mxu0 0.0
  %780 = vmatprep.subr.mxu0 0.0
  %781 = vmatpush1.msra.mxu0 0.0
  %782 = vmatprep.subr.mxu0 0.0
  %783 = vmatpush1.msra.mxu0 0.0
  %784 = vmatprep.subr.mxu0 0.0
  %785 = vmatpush1.msra.mxu0 0.0
  %786 = vmatprep.subr.mxu0 0.0
  %787 = vmatpush1.msra.mxu0 0.0
  %788 = vmatprep.subr.mxu0 0.0
  %789 = vmatpush1.msra.mxu0 0.0
  %790 = vmatprep.subr.mxu0 0.0
  %791 = vmatpush1.msra.mxu0 0.0
  %792 = vmatprep.subr.mxu0 0.0
  %793 = vmatpush1.msra.mxu0 0.0
  %794 = vmatprep.subr.mxu0 0.0
  %795 = vmatpush1.msra.mxu0 0.0
  %796 = vmatprep.subr.mxu0 0.0
  %797 = vmatpush1.msra.mxu0 0.0
  %798 = vmatprep.subr.mxu0 0.0
  %799 = vmatpush1.msra.mxu0 0.0
  %800 = vmatprep.subr.mxu0 0.0
  %801 = vmatpush1.msra.mxu0 0.0
  %802 = vmatprep.subr.mxu0 0.0
  %803 = vmatpush1.msra.mxu0 0.0
  %804 = vmatprep.subr.mxu0 0.0
  %805 = vmatpush1.msra.mxu0 0.0
  %806 = vmatprep.subr.mxu0 0.0
  %807 = vmatpush1.msra.mxu0 0.0
  %808 = vmatprep.subr.mxu0 0.0
  %809 = vmatpush1.msra.mxu0 0.0
  %810 = vmatprep.mubr.f32.mxu0 0.0
  %811 = vmatmul.mubr.f32.gmra.mrb[0].mxu0 %v741
  %v812 = vpop.f32.mrb[0].mxu0
  %v813 = vadd.f32 0.0, %v812
  %v814 = vpop.f32.mrb[0].mxu0
  %815 = vmatprep.mubr.f32.mxu0 0.0
  %816 = vmatmul.mubr.f32.gmra.mrb[0].mxu0 %v744
  %v817 = vpop.f32.mrb[0].mxu0
  %v818 = vadd.f32 0.0, %v817
  %v819 = vpop.f32.mrb[0].mxu0
  %820 = vdwg.mxu0
  %v821 = vadd.f32 %v648, %v813
  %v822 = vadd.f32 %v649, %v818
  %s823 = scalar_lea.vmem %s3, 512
  %v824 = vld [vmem:[%s823] sm:$0xff]
  %v825 = vld [vmem:[%s823 + $0x8] sm:$0xff]
  %v826 = vld [vmem:[%s823 + $0x10] sm:$0xff]
  %v827 = vld [vmem:[%s823 + $0x18] sm:$0xff]
  %v828 = vld [vmem:[%s823 + $0x20] sm:$0xff]
  %v829 = vld [vmem:[%s823 + $0x28] sm:$0xff]
  %v830 = vld [vmem:[%s823 + $0x30] sm:$0xff]
  %v831 = vld [vmem:[%s823 + $0x38] sm:$0xff]
  %v832 = vld [vmem:[%s823 + $0x40] sm:$0xff]
  %v833 = vld [vmem:[%s823 + $0x48] sm:$0xff]
  %v834 = vld [vmem:[%s823 + $0x50] sm:$0xff]
  %v835 = vld [vmem:[%s823 + $0x58] sm:$0xff]
  %v836 = vld [vmem:[%s823 + $0x60] sm:$0xff]
  %v837 = vld [vmem:[%s823 + $0x68] sm:$0xff]
  %v838 = vld [vmem:[%s823 + $0x70] sm:$0xff]
  %v839 = vld [vmem:[%s823 + $0x78] sm:$0xff]
  %840 = vmatprep.subr.mxu0 0.0
  %841 = vmatpush1.msra.mxu0 %v824
  %842 = vmatprep.subr.mxu0 0.0
  %843 = vmatpush1.msra.mxu0 %v825
  %844 = vmatprep.subr.mxu0 0.0
  %845 = vmatpush1.msra.mxu0 %v826
  %846 = vmatprep.subr.mxu0 0.0
  %847 = vmatpush1.msra.mxu0 %v827
  %848 = vmatprep.subr.mxu0 0.0
  %849 = vmatpush1.msra.mxu0 %v828
  %850 = vmatprep.subr.mxu0 0.0
  %851 = vmatpush1.msra.mxu0 %v829
  %852 = vmatprep.subr.mxu0 0.0
  %853 = vmatpush1.msra.mxu0 %v830
  %854 = vmatprep.subr.mxu0 0.0
  %855 = vmatpush1.msra.mxu0 %v831
  %856 = vmatprep.subr.mxu0 0.0
  %857 = vmatpush1.msra.mxu0 %v832
  %858 = vmatprep.subr.mxu0 0.0
  %859 = vmatpush1.msra.mxu0 %v833
  %860 = vmatprep.subr.mxu0 0.0
  %861 = vmatpush1.msra.mxu0 %v834
  %862 = vmatprep.subr.mxu0 0.0
  %863 = vmatpush1.msra.mxu0 %v835
  %864 = vmatprep.subr.mxu0 0.0
  %865 = vmatpush1.msra.mxu0 %v836
  %866 = vmatprep.subr.mxu0 0.0
  %867 = vmatpush1.msra.mxu0 %v837
  %868 = vmatprep.subr.mxu0 0.0
  %869 = vmatpush1.msra.mxu0 %v838
  %870 = vmatprep.subr.mxu0 0.0
  %871 = vmatpush1.msra.mxu0 %v839
  %872 = vmatprep.subr.mxu0 0.0
  %873 = vmatpush1.msra.mxu0 0.0
  %874 = vmatprep.subr.mxu0 0.0
  %875 = vmatpush1.msra.mxu0 0.0
  %876 = vmatprep.subr.mxu0 0.0
  %877 = vmatpush1.msra.mxu0 0.0
  %878 = vmatprep.subr.mxu0 0.0
  %879 = vmatpush1.msra.mxu0 0.0
  %880 = vmatprep.subr.mxu0 0.0
  %881 = vmatpush1.msra.mxu0 0.0
  %882 = vmatprep.subr.mxu0 0.0
  %883 = vmatpush1.msra.mxu0 0.0
  %884 = vmatprep.subr.mxu0 0.0
  %885 = vmatpush1.msra.mxu0 0.0
  %886 = vmatprep.subr.mxu0 0.0
  %887 = vmatpush1.msra.mxu0 0.0
  %888 = vmatprep.subr.mxu0 0.0
  %889 = vmatpush1.msra.mxu0 0.0
  %890 = vmatprep.subr.mxu0 0.0
  %891 = vmatpush1.msra.mxu0 0.0
  %892 = vmatprep.subr.mxu0 0.0
  %893 = vmatpush1.msra.mxu0 0.0
  %894 = vmatprep.subr.mxu0 0.0
  %895 = vmatpush1.msra.mxu0 0.0
  %896 = vmatprep.subr.mxu0 0.0
  %897 = vmatpush1.msra.mxu0 0.0
  %898 = vmatprep.subr.mxu0 0.0
  %899 = vmatpush1.msra.mxu0 0.0
  %900 = vmatprep.subr.mxu0 0.0
  %901 = vmatpush1.msra.mxu0 0.0
  %902 = vmatprep.subr.mxu0 0.0
  %903 = vmatpush1.msra.mxu0 0.0
  %904 = vmatprep.mubr.f32.mxu0 0.0
  %905 = vmatmul.mubr.f32.gmra.mrb[0].mxu0 %v135
  %v906 = vpop.f32.mrb[0].mxu0
  %v907 = vadd.f32 0.0, %v906
  %v908 = vpop.f32.mrb[0].mxu0
  %909 = vdwg.mxu0
  %s910 = scalar_lea.vmem %s4, 64
  %v911 = vld [vmem:[%s910] sm:$0xff]
  %v912 = vld [vmem:[%s910 + $0x8] sm:$0xff]
  %v914 = vsel %vm314, %v911, 0
  %v917 = vsel %vm314, %v912, 0
  %919 = vmatprep.subr.mxu0 0.0
  %920 = vmatpush1.msra.mxu0 %v907
  %921 = vmatprep.subr.mxu0 0.0
  %922 = vmatpush1.msra.mxu0 0.0
  %923 = vmatprep.subr.mxu0 0.0
  %924 = vmatpush1.msra.mxu0 0.0
  %925 = vmatprep.subr.mxu0 0.0
  %926 = vmatpush1.msra.mxu0 0.0
  %927 = vmatprep.subr.mxu0 0.0
  %928 = vmatpush1.msra.mxu0 0.0
  %929 = vmatprep.subr.mxu0 0.0
  %930 = vmatpush1.msra.mxu0 0.0
  %931 = vmatprep.subr.mxu0 0.0
  %932 = vmatpush1.msra.mxu0 0.0
  %933 = vmatprep.subr.mxu0 0.0
  %934 = vmatpush1.msra.mxu0 0.0
  %935 = vmatprep.subr.mxu0 0.0
  %936 = vmatpush1.msra.mxu0 0.0
  %937 = vmatprep.subr.mxu0 0.0
  %938 = vmatpush1.msra.mxu0 0.0
  %939 = vmatprep.subr.mxu0 0.0
  %940 = vmatpush1.msra.mxu0 0.0
  %941 = vmatprep.subr.mxu0 0.0
  %942 = vmatpush1.msra.mxu0 0.0
  %943 = vmatprep.subr.mxu0 0.0
  %944 = vmatpush1.msra.mxu0 0.0
  %945 = vmatprep.subr.mxu0 0.0
  %946 = vmatpush1.msra.mxu0 0.0
  %947 = vmatprep.subr.mxu0 0.0
  %948 = vmatpush1.msra.mxu0 0.0
  %949 = vmatprep.subr.mxu0 0.0
  %950 = vmatpush1.msra.mxu0 0.0
  %951 = vmatprep.subr.mxu0 0.0
  %952 = vmatpush1.msra.mxu0 0.0
  %953 = vmatprep.subr.mxu0 0.0
  %954 = vmatpush1.msra.mxu0 0.0
  %955 = vmatprep.subr.mxu0 0.0
  %956 = vmatpush1.msra.mxu0 0.0
  %957 = vmatprep.subr.mxu0 0.0
  %958 = vmatpush1.msra.mxu0 0.0
  %959 = vmatprep.subr.mxu0 0.0
  %960 = vmatpush1.msra.mxu0 0.0
  %961 = vmatprep.subr.mxu0 0.0
  %962 = vmatpush1.msra.mxu0 0.0
  %963 = vmatprep.subr.mxu0 0.0
  %964 = vmatpush1.msra.mxu0 0.0
  %965 = vmatprep.subr.mxu0 0.0
  %966 = vmatpush1.msra.mxu0 0.0
  %967 = vmatprep.subr.mxu0 0.0
  %968 = vmatpush1.msra.mxu0 0.0
  %969 = vmatprep.subr.mxu0 0.0
  %970 = vmatpush1.msra.mxu0 0.0
  %971 = vmatprep.subr.mxu0 0.0
  %972 = vmatpush1.msra.mxu0 0.0
  %973 = vmatprep.subr.mxu0 0.0
  %974 = vmatpush1.msra.mxu0 0.0
  %975 = vmatprep.subr.mxu0 0.0
  %976 = vmatpush1.msra.mxu0 0.0
  %977 = vmatprep.subr.mxu0 0.0
  %978 = vmatpush1.msra.mxu0 0.0
  %979 = vmatprep.subr.mxu0 0.0
  %980 = vmatpush1.msra.mxu0 0.0
  %981 = vmatprep.subr.mxu0 0.0
  %982 = vmatpush1.msra.mxu0 0.0
  %983 = vmatprep.mubr.f32.mxu0 0.0
  %984 = vmatmul.mubr.f32.gmra.mrb[0].mxu0 %v914
  %v985 = vpop.f32.mrb[0].mxu0
  %v986 = vadd.f32 0.0, %v985
  %v987 = vpop.f32.mrb[0].mxu0
  %988 = vmatprep.mubr.f32.mxu0 0.0
  %989 = vmatmul.mubr.f32.gmra.mrb[0].mxu0 %v917
  %v990 = vpop.f32.mrb[0].mxu0
  %v991 = vadd.f32 0.0, %v990
  %v992 = vpop.f32.mrb[0].mxu0
  %993 = vdwg.mxu0
  %v994 = vadd.f32 %v821, %v986
  %v995 = vadd.f32 %v822, %v991
  %s996 = scalar_lea.vmem %s3, 640
  %v997 = vld [vmem:[%s996] sm:$0xff]
  %v998 = vld [vmem:[%s996 + $0x8] sm:$0xff]
  %v999 = vld [vmem:[%s996 + $0x10] sm:$0xff]
  %v1000 = vld [vmem:[%s996 + $0x18] sm:$0xff]
  %v1001 = vld [vmem:[%s996 + $0x20] sm:$0xff]
  %v1002 = vld [vmem:[%s996 + $0x28] sm:$0xff]
  %v1003 = vld [vmem:[%s996 + $0x30] sm:$0xff]
  %v1004 = vld [vmem:[%s996 + $0x38] sm:$0xff]
  %v1005 = vld [vmem:[%s996 + $0x40] sm:$0xff]
  %v1006 = vld [vmem:[%s996 + $0x48] sm:$0xff]
  %v1007 = vld [vmem:[%s996 + $0x50] sm:$0xff]
  %v1008 = vld [vmem:[%s996 + $0x58] sm:$0xff]
  %v1009 = vld [vmem:[%s996 + $0x60] sm:$0xff]
  %v1010 = vld [vmem:[%s996 + $0x68] sm:$0xff]
  %v1011 = vld [vmem:[%s996 + $0x70] sm:$0xff]
  %v1012 = vld [vmem:[%s996 + $0x78] sm:$0xff]
  %1013 = vmatprep.subr.mxu0 0.0
  %1014 = vmatpush1.msra.mxu0 %v997
  %1015 = vmatprep.subr.mxu0 0.0
  %1016 = vmatpush1.msra.mxu0 %v998
  %1017 = vmatprep.subr.mxu0 0.0
  %1018 = vmatpush1.msra.mxu0 %v999
  %1019 = vmatprep.subr.mxu0 0.0
  %1020 = vmatpush1.msra.mxu0 %v1000
  %1021 = vmatprep.subr.mxu0 0.0
  %1022 = vmatpush1.msra.mxu0 %v1001
  %1023 = vmatprep.subr.mxu0 0.0
  %1024 = vmatpush1.msra.mxu0 %v1002
  %1025 = vmatprep.subr.mxu0 0.0
  %1026 = vmatpush1.msra.mxu0 %v1003
  %1027 = vmatprep.subr.mxu0 0.0
  %1028 = vmatpush1.msra.mxu0 %v1004
  %1029 = vmatprep.subr.mxu0 0.0
  %1030 = vmatpush1.msra.mxu0 %v1005
  %1031 = vmatprep.subr.mxu0 0.0
  %1032 = vmatpush1.msra.mxu0 %v1006
  %1033 = vmatprep.subr.mxu0 0.0
  %1034 = vmatpush1.msra.mxu0 %v1007
  %1035 = vmatprep.subr.mxu0 0.0
  %1036 = vmatpush1.msra.mxu0 %v1008
  %1037 = vmatprep.subr.mxu0 0.0
  %1038 = vmatpush1.msra.mxu0 %v1009
  %1039 = vmatprep.subr.mxu0 0.0
  %1040 = vmatpush1.msra.mxu0 %v1010
  %1041 = vmatprep.subr.mxu0 0.0
  %1042 = vmatpush1.msra.mxu0 %v1011
  %1043 = vmatprep.subr.mxu0 0.0
  %1044 = vmatpush1.msra.mxu0 %v1012
  %1045 = vmatprep.subr.mxu0 0.0
  %1046 = vmatpush1.msra.mxu0 0.0
  %1047 = vmatprep.subr.mxu0 0.0
  %1048 = vmatpush1.msra.mxu0 0.0
  %1049 = vmatprep.subr.mxu0 0.0
  %1050 = vmatpush1.msra.mxu0 0.0
  %1051 = vmatprep.subr.mxu0 0.0
  %1052 = vmatpush1.msra.mxu0 0.0
  %1053 = vmatprep.subr.mxu0 0.0
  %1054 = vmatpush1.msra.mxu0 0.0
  %1055 = vmatprep.subr.mxu0 0.0
  %1056 = vmatpush1.msra.mxu0 0.0
  %1057 = vmatprep.subr.mxu0 0.0
  %1058 = vmatpush1.msra.mxu0 0.0
  %1059 = vmatprep.subr.mxu0 0.0
  %1060 = vmatpush1.msra.mxu0 0.0
  %1061 = vmatprep.subr.mxu0 0.0
  %1062 = vmatpush1.msra.mxu0 0.0
  %1063 = vmatprep.subr.mxu0 0.0
  %1064 = vmatpush1.msra.mxu0 0.0
  %1065 = vmatprep.subr.mxu0 0.0
  %1066 = vmatpush1.msra.mxu0 0.0
  %1067 = vmatprep.subr.mxu0 0.0
  %1068 = vmatpush1.msra.mxu0 0.0
  %1069 = vmatprep.subr.mxu0 0.0
  %1070 = vmatpush1.msra.mxu0 0.0
  %1071 = vmatprep.subr.mxu0 0.0
  %1072 = vmatpush1.msra.mxu0 0.0
  %1073 = vmatprep.subr.mxu0 0.0
  %1074 = vmatpush1.msra.mxu0 0.0
  %1075 = vmatprep.subr.mxu0 0.0
  %1076 = vmatpush1.msra.mxu0 0.0
  %1077 = vmatprep.mubr.f32.mxu0 0.0
  %1078 = vmatmul.mubr.f32.gmra.mrb[0].mxu0 %v135
  %v1079 = vpop.f32.mrb[0].mxu0
  %v1080 = vadd.f32 0.0, %v1079
  %v1081 = vpop.f32.mrb[0].mxu0
  %1082 = vdwg.mxu0
  %s1083 = scalar_lea.vmem %s4, 80
  %v1084 = vld [vmem:[%s1083] sm:$0xff]
  %v1085 = vld [vmem:[%s1083 + $0x8] sm:$0xff]
  %v1087 = vsel %vm314, %v1084, 0
  %v1090 = vsel %vm314, %v1085, 0
  %1092 = vmatprep.subr.mxu0 0.0
  %1093 = vmatpush1.msra.mxu0 %v1080
  %1094 = vmatprep.subr.mxu0 0.0
  %1095 = vmatpush1.msra.mxu0 0.0
  %1096 = vmatprep.subr.mxu0 0.0
  %1097 = vmatpush1.msra.mxu0 0.0
  %1098 = vmatprep.subr.mxu0 0.0
  %1099 = vmatpush1.msra.mxu0 0.0
  %1100 = vmatprep.subr.mxu0 0.0
  %1101 = vmatpush1.msra.mxu0 0.0
  %1102 = vmatprep.subr.mxu0 0.0
  %1103 = vmatpush1.msra.mxu0 0.0
  %1104 = vmatprep.subr.mxu0 0.0
  %1105 = vmatpush1.msra.mxu0 0.0
  %1106 = vmatprep.subr.mxu0 0.0
  %1107 = vmatpush1.msra.mxu0 0.0
  %1108 = vmatprep.subr.mxu0 0.0
  %1109 = vmatpush1.msra.mxu0 0.0
  %1110 = vmatprep.subr.mxu0 0.0
  %1111 = vmatpush1.msra.mxu0 0.0
  %1112 = vmatprep.subr.mxu0 0.0
  %1113 = vmatpush1.msra.mxu0 0.0
  %1114 = vmatprep.subr.mxu0 0.0
  %1115 = vmatpush1.msra.mxu0 0.0
  %1116 = vmatprep.subr.mxu0 0.0
  %1117 = vmatpush1.msra.mxu0 0.0
  %1118 = vmatprep.subr.mxu0 0.0
  %1119 = vmatpush1.msra.mxu0 0.0
  %1120 = vmatprep.subr.mxu0 0.0
  %1121 = vmatpush1.msra.mxu0 0.0
  %1122 = vmatprep.subr.mxu0 0.0
  %1123 = vmatpush1.msra.mxu0 0.0
  %1124 = vmatprep.subr.mxu0 0.0
  %1125 = vmatpush1.msra.mxu0 0.0
  %1126 = vmatprep.subr.mxu0 0.0
  %1127 = vmatpush1.msra.mxu0 0.0
  %1128 = vmatprep.subr.mxu0 0.0
  %1129 = vmatpush1.msra.mxu0 0.0
  %1130 = vmatprep.subr.mxu0 0.0
  %1131 = vmatpush1.msra.mxu0 0.0
  %1132 = vmatprep.subr.mxu0 0.0
  %1133 = vmatpush1.msra.mxu0 0.0
  %1134 = vmatprep.subr.mxu0 0.0
  %1135 = vmatpush1.msra.mxu0 0.0
  %1136 = vmatprep.subr.mxu0 0.0
  %1137 = vmatpush1.msra.mxu0 0.0
  %1138 = vmatprep.subr.mxu0 0.0
  %1139 = vmatpush1.msra.mxu0 0.0
  %1140 = vmatprep.subr.mxu0 0.0
  %1141 = vmatpush1.msra.mxu0 0.0
  %1142 = vmatprep.subr.mxu0 0.0
  %1143 = vmatpush1.msra.mxu0 0.0
  %1144 = vmatprep.subr.mxu0 0.0
  %1145 = vmatpush1.msra.mxu0 0.0
  %1146 = vmatprep.subr.mxu0 0.0
  %1147 = vmatpush1.msra.mxu0 0.0
  %1148 = vmatprep.subr.mxu0 0.0
  %1149 = vmatpush1.msra.mxu0 0.0
  %1150 = vmatprep.subr.mxu0 0.0
  %1151 = vmatpush1.msra.mxu0 0.0
  %1152 = vmatprep.subr.mxu0 0.0
  %1153 = vmatpush1.msra.mxu0 0.0
  %1154 = vmatprep.subr.mxu0 0.0
  %1155 = vmatpush1.msra.mxu0 0.0
  %1156 = vmatprep.mubr.f32.mxu0 0.0
  %1157 = vmatmul.mubr.f32.gmra.mrb[0].mxu0 %v1087
  %v1158 = vpop.f32.mrb[0].mxu0
  %v1159 = vadd.f32 0.0, %v1158
  %v1160 = vpop.f32.mrb[0].mxu0
  %1161 = vmatprep.mubr.f32.mxu0 0.0
  %1162 = vmatmul.mubr.f32.gmra.mrb[0].mxu0 %v1090
  %v1163 = vpop.f32.mrb[0].mxu0
  %v1164 = vadd.f32 0.0, %v1163
  %v1165 = vpop.f32.mrb[0].mxu0
  %1166 = vdwg.mxu0
  %v1167 = vadd.f32 %v994, %v1159
  %v1168 = vadd.f32 %v995, %v1164
  %s1169 = scalar_lea.vmem %s3, 768
  %v1170 = vld [vmem:[%s1169] sm:$0xff]
  %v1171 = vld [vmem:[%s1169 + $0x8] sm:$0xff]
  %v1172 = vld [vmem:[%s1169 + $0x10] sm:$0xff]
  %v1173 = vld [vmem:[%s1169 + $0x18] sm:$0xff]
  %v1174 = vld [vmem:[%s1169 + $0x20] sm:$0xff]
  %v1175 = vld [vmem:[%s1169 + $0x28] sm:$0xff]
  %v1176 = vld [vmem:[%s1169 + $0x30] sm:$0xff]
  %v1177 = vld [vmem:[%s1169 + $0x38] sm:$0xff]
  %v1178 = vld [vmem:[%s1169 + $0x40] sm:$0xff]
  %v1179 = vld [vmem:[%s1169 + $0x48] sm:$0xff]
  %v1180 = vld [vmem:[%s1169 + $0x50] sm:$0xff]
  %v1181 = vld [vmem:[%s1169 + $0x58] sm:$0xff]
  %v1182 = vld [vmem:[%s1169 + $0x60] sm:$0xff]
  %v1183 = vld [vmem:[%s1169 + $0x68] sm:$0xff]
  %v1184 = vld [vmem:[%s1169 + $0x70] sm:$0xff]
  %v1185 = vld [vmem:[%s1169 + $0x78] sm:$0xff]
  %1186 = vmatprep.subr.mxu0 0.0
  %1187 = vmatpush1.msra.mxu0 %v1170
  %1188 = vmatprep.subr.mxu0 0.0
  %1189 = vmatpush1.msra.mxu0 %v1171
  %1190 = vmatprep.subr.mxu0 0.0
  %1191 = vmatpush1.msra.mxu0 %v1172
  %1192 = vmatprep.subr.mxu0 0.0
  %1193 = vmatpush1.msra.mxu0 %v1173
  %1194 = vmatprep.subr.mxu0 0.0
  %1195 = vmatpush1.msra.mxu0 %v1174
  %1196 = vmatprep.subr.mxu0 0.0
  %1197 = vmatpush1.msra.mxu0 %v1175
  %1198 = vmatprep.subr.mxu0 0.0
  %1199 = vmatpush1.msra.mxu0 %v1176
  %1200 = vmatprep.subr.mxu0 0.0
  %1201 = vmatpush1.msra.mxu0 %v1177
  %1202 = vmatprep.subr.mxu0 0.0
  %1203 = vmatpush1.msra.mxu0 %v1178
  %1204 = vmatprep.subr.mxu0 0.0
  %1205 = vmatpush1.msra.mxu0 %v1179
  %1206 = vmatprep.subr.mxu0 0.0
  %1207 = vmatpush1.msra.mxu0 %v1180
  %1208 = vmatprep.subr.mxu0 0.0
  %1209 = vmatpush1.msra.mxu0 %v1181
  %1210 = vmatprep.subr.mxu0 0.0
  %1211 = vmatpush1.msra.mxu0 %v1182
  %1212 = vmatprep.subr.mxu0 0.0
  %1213 = vmatpush1.msra.mxu0 %v1183
  %1214 = vmatprep.subr.mxu0 0.0
  %1215 = vmatpush1.msra.mxu0 %v1184
  %1216 = vmatprep.subr.mxu0 0.0
  %1217 = vmatpush1.msra.mxu0 %v1185
  %1218 = vmatprep.subr.mxu0 0.0
  %1219 = vmatpush1.msra.mxu0 0.0
  %1220 = vmatprep.subr.mxu0 0.0
  %1221 = vmatpush1.msra.mxu0 0.0
  %1222 = vmatprep.subr.mxu0 0.0
  %1223 = vmatpush1.msra.mxu0 0.0
  %1224 = vmatprep.subr.mxu0 0.0
  %1225 = vmatpush1.msra.mxu0 0.0
  %1226 = vmatprep.subr.mxu0 0.0
  %1227 = vmatpush1.msra.mxu0 0.0
  %1228 = vmatprep.subr.mxu0 0.0
  %1229 = vmatpush1.msra.mxu0 0.0
  %1230 = vmatprep.subr.mxu0 0.0
  %1231 = vmatpush1.msra.mxu0 0.0
  %1232 = vmatprep.subr.mxu0 0.0
  %1233 = vmatpush1.msra.mxu0 0.0
  %1234 = vmatprep.subr.mxu0 0.0
  %1235 = vmatpush1.msra.mxu0 0.0
  %1236 = vmatprep.subr.mxu0 0.0
  %1237 = vmatpush1.msra.mxu0 0.0
  %1238 = vmatprep.subr.mxu0 0.0
  %1239 = vmatpush1.msra.mxu0 0.0
  %1240 = vmatprep.subr.mxu0 0.0
  %1241 = vmatpush1.msra.mxu0 0.0
  %1242 = vmatprep.subr.mxu0 0.0
  %1243 = vmatpush1.msra.mxu0 0.0
  %1244 = vmatprep.subr.mxu0 0.0
  %1245 = vmatpush1.msra.mxu0 0.0
  %1246 = vmatprep.subr.mxu0 0.0
  %1247 = vmatpush1.msra.mxu0 0.0
  %1248 = vmatprep.subr.mxu0 0.0
  %1249 = vmatpush1.msra.mxu0 0.0
  %1250 = vmatprep.mubr.f32.mxu0 0.0
  %1251 = vmatmul.mubr.f32.gmra.mrb[0].mxu0 %v135
  %v1252 = vpop.f32.mrb[0].mxu0
  %v1253 = vadd.f32 0.0, %v1252
  %v1254 = vpop.f32.mrb[0].mxu0
  %1255 = vdwg.mxu0
  %s1256 = scalar_lea.vmem %s4, 96
  %v1257 = vld [vmem:[%s1256] sm:$0xff]
  %v1258 = vld [vmem:[%s1256 + $0x8] sm:$0xff]
  %v1260 = vsel %vm314, %v1257, 0
  %v1263 = vsel %vm314, %v1258, 0
  %1265 = vmatprep.subr.mxu0 0.0
  %1266 = vmatpush1.msra.mxu0 %v1253
  %1267 = vmatprep.subr.mxu0 0.0
  %1268 = vmatpush1.msra.mxu0 0.0
  %1269 = vmatprep.subr.mxu0 0.0
  %1270 = vmatpush1.msra.mxu0 0.0
  %1271 = vmatprep.subr.mxu0 0.0
  %1272 = vmatpush1.msra.mxu0 0.0
  %1273 = vmatprep.subr.mxu0 0.0
  %1274 = vmatpush1.msra.mxu0 0.0
  %1275 = vmatprep.subr.mxu0 0.0
  %1276 = vmatpush1.msra.mxu0 0.0
  %1277 = vmatprep.subr.mxu0 0.0
  %1278 = vmatpush1.msra.mxu0 0.0
  %1279 = vmatprep.subr.mxu0 0.0
  %1280 = vmatpush1.msra.mxu0 0.0
  %1281 = vmatprep.subr.mxu0 0.0
  %1282 = vmatpush1.msra.mxu0 0.0
  %1283 = vmatprep.subr.mxu0 0.0
  %1284 = vmatpush1.msra.mxu0 0.0
  %1285 = vmatprep.subr.mxu0 0.0
  %1286 = vmatpush1.msra.mxu0 0.0
  %1287 = vmatprep.subr.mxu0 0.0
  %1288 = vmatpush1.msra.mxu0 0.0
  %1289 = vmatprep.subr.mxu0 0.0
  %1290 = vmatpush1.msra.mxu0 0.0
  %1291 = vmatprep.subr.mxu0 0.0
  %1292 = vmatpush1.msra.mxu0 0.0
  %1293 = vmatprep.subr.mxu0 0.0
  %1294 = vmatpush1.msra.mxu0 0.0
  %1295 = vmatprep.subr.mxu0 0.0
  %1296 = vmatpush1.msra.mxu0 0.0
  %1297 = vmatprep.subr.mxu0 0.0
  %1298 = vmatpush1.msra.mxu0 0.0
  %1299 = vmatprep.subr.mxu0 0.0
  %1300 = vmatpush1.msra.mxu0 0.0
  %1301 = vmatprep.subr.mxu0 0.0
  %1302 = vmatpush1.msra.mxu0 0.0
  %1303 = vmatprep.subr.mxu0 0.0
  %1304 = vmatpush1.msra.mxu0 0.0
  %1305 = vmatprep.subr.mxu0 0.0
  %1306 = vmatpush1.msra.mxu0 0.0
  %1307 = vmatprep.subr.mxu0 0.0
  %1308 = vmatpush1.msra.mxu0 0.0
  %1309 = vmatprep.subr.mxu0 0.0
  %1310 = vmatpush1.msra.mxu0 0.0
  %1311 = vmatprep.subr.mxu0 0.0
  %1312 = vmatpush1.msra.mxu0 0.0
  %1313 = vmatprep.subr.mxu0 0.0
  %1314 = vmatpush1.msra.mxu0 0.0
  %1315 = vmatprep.subr.mxu0 0.0
  %1316 = vmatpush1.msra.mxu0 0.0
  %1317 = vmatprep.subr.mxu0 0.0
  %1318 = vmatpush1.msra.mxu0 0.0
  %1319 = vmatprep.subr.mxu0 0.0
  %1320 = vmatpush1.msra.mxu0 0.0
  %1321 = vmatprep.subr.mxu0 0.0
  %1322 = vmatpush1.msra.mxu0 0.0
  %1323 = vmatprep.subr.mxu0 0.0
  %1324 = vmatpush1.msra.mxu0 0.0
  %1325 = vmatprep.subr.mxu0 0.0
  %1326 = vmatpush1.msra.mxu0 0.0
  %1327 = vmatprep.subr.mxu0 0.0
  %1328 = vmatpush1.msra.mxu0 0.0
  %1329 = vmatprep.mubr.f32.mxu0 0.0
  %1330 = vmatmul.mubr.f32.gmra.mrb[0].mxu0 %v1260
  %v1331 = vpop.f32.mrb[0].mxu0
  %v1332 = vadd.f32 0.0, %v1331
  %v1333 = vpop.f32.mrb[0].mxu0
  %1334 = vmatprep.mubr.f32.mxu0 0.0
  %1335 = vmatmul.mubr.f32.gmra.mrb[0].mxu0 %v1263
  %v1336 = vpop.f32.mrb[0].mxu0
  %v1337 = vadd.f32 0.0, %v1336
  %v1338 = vpop.f32.mrb[0].mxu0
  %1339 = vdwg.mxu0
  %v1340 = vadd.f32 %v1167, %v1332
  %v1341 = vadd.f32 %v1168, %v1337
  %s1342 = scalar_lea.vmem %s3, 896
  %v1343 = vld [vmem:[%s1342] sm:$0xff]
  %v1344 = vld [vmem:[%s1342 + $0x8] sm:$0xff]
  %v1345 = vld [vmem:[%s1342 + $0x10] sm:$0xff]
  %v1346 = vld [vmem:[%s1342 + $0x18] sm:$0xff]
  %v1347 = vld [vmem:[%s1342 + $0x20] sm:$0xff]
  %v1348 = vld [vmem:[%s1342 + $0x28] sm:$0xff]
  %v1349 = vld [vmem:[%s1342 + $0x30] sm:$0xff]
  %v1350 = vld [vmem:[%s1342 + $0x38] sm:$0xff]
  %v1351 = vld [vmem:[%s1342 + $0x40] sm:$0xff]
  %v1352 = vld [vmem:[%s1342 + $0x48] sm:$0xff]
  %v1353 = vld [vmem:[%s1342 + $0x50] sm:$0xff]
  %v1354 = vld [vmem:[%s1342 + $0x58] sm:$0xff]
  %v1355 = vld [vmem:[%s1342 + $0x60] sm:$0xff]
  %v1356 = vld [vmem:[%s1342 + $0x68] sm:$0xff]
  %v1357 = vld [vmem:[%s1342 + $0x70] sm:$0xff]
  %v1358 = vld [vmem:[%s1342 + $0x78] sm:$0xff]
  %1359 = vmatprep.subr.mxu0 0.0
  %1360 = vmatpush1.msra.mxu0 %v1343
  %1361 = vmatprep.subr.mxu0 0.0
  %1362 = vmatpush1.msra.mxu0 %v1344
  %1363 = vmatprep.subr.mxu0 0.0
  %1364 = vmatpush1.msra.mxu0 %v1345
  %1365 = vmatprep.subr.mxu0 0.0
  %1366 = vmatpush1.msra.mxu0 %v1346
  %1367 = vmatprep.subr.mxu0 0.0
  %1368 = vmatpush1.msra.mxu0 %v1347
  %1369 = vmatprep.subr.mxu0 0.0
  %1370 = vmatpush1.msra.mxu0 %v1348
  %1371 = vmatprep.subr.mxu0 0.0
  %1372 = vmatpush1.msra.mxu0 %v1349
  %1373 = vmatprep.subr.mxu0 0.0
  %1374 = vmatpush1.msra.mxu0 %v1350
  %1375 = vmatprep.subr.mxu0 0.0
  %1376 = vmatpush1.msra.mxu0 %v1351
  %1377 = vmatprep.subr.mxu0 0.0
  %1378 = vmatpush1.msra.mxu0 %v1352
  %1379 = vmatprep.subr.mxu0 0.0
  %1380 = vmatpush1.msra.mxu0 %v1353
  %1381 = vmatprep.subr.mxu0 0.0
  %1382 = vmatpush1.msra.mxu0 %v1354
  %1383 = vmatprep.subr.mxu0 0.0
  %1384 = vmatpush1.msra.mxu0 %v1355
  %1385 = vmatprep.subr.mxu0 0.0
  %1386 = vmatpush1.msra.mxu0 %v1356
  %1387 = vmatprep.subr.mxu0 0.0
  %1388 = vmatpush1.msra.mxu0 %v1357
  %1389 = vmatprep.subr.mxu0 0.0
  %1390 = vmatpush1.msra.mxu0 %v1358
  %1391 = vmatprep.subr.mxu0 0.0
  %1392 = vmatpush1.msra.mxu0 0.0
  %1393 = vmatprep.subr.mxu0 0.0
  %1394 = vmatpush1.msra.mxu0 0.0
  %1395 = vmatprep.subr.mxu0 0.0
  %1396 = vmatpush1.msra.mxu0 0.0
  %1397 = vmatprep.subr.mxu0 0.0
  %1398 = vmatpush1.msra.mxu0 0.0
  %1399 = vmatprep.subr.mxu0 0.0
  %1400 = vmatpush1.msra.mxu0 0.0
  %1401 = vmatprep.subr.mxu0 0.0
  %1402 = vmatpush1.msra.mxu0 0.0
  %1403 = vmatprep.subr.mxu0 0.0
  %1404 = vmatpush1.msra.mxu0 0.0
  %1405 = vmatprep.subr.mxu0 0.0
  %1406 = vmatpush1.msra.mxu0 0.0
  %1407 = vmatprep.subr.mxu0 0.0
  %1408 = vmatpush1.msra.mxu0 0.0
  %1409 = vmatprep.subr.mxu0 0.0
  %1410 = vmatpush1.msra.mxu0 0.0
  %1411 = vmatprep.subr.mxu0 0.0
  %1412 = vmatpush1.msra.mxu0 0.0
  %1413 = vmatprep.subr.mxu0 0.0
  %1414 = vmatpush1.msra.mxu0 0.0
  %1415 = vmatprep.subr.mxu0 0.0
  %1416 = vmatpush1.msra.mxu0 0.0
  %1417 = vmatprep.subr.mxu0 0.0
  %1418 = vmatpush1.msra.mxu0 0.0
  %1419 = vmatprep.subr.mxu0 0.0
  %1420 = vmatpush1.msra.mxu0 0.0
  %1421 = vmatprep.subr.mxu0 0.0
  %1422 = vmatpush1.msra.mxu0 0.0
  %1423 = vmatprep.mubr.f32.mxu0 0.0
  %1424 = vmatmul.mubr.f32.gmra.mrb[0].mxu0 %v135
  %v1425 = vpop.f32.mrb[0].mxu0
  %v1426 = vadd.f32 0.0, %v1425
  %v1427 = vpop.f32.mrb[0].mxu0
  %1428 = vdwg.mxu0
  %s1429 = scalar_lea.vmem %s4, 112
  %v1430 = vld [vmem:[%s1429] sm:$0xff]
  %v1431 = vld [vmem:[%s1429 + $0x8] sm:$0xff]
  %v1433 = vsel %vm314, %v1430, 0
  %v1436 = vsel %vm314, %v1431, 0
  %1438 = vmatprep.subr.mxu0 0.0
  %1439 = vmatpush1.msra.mxu0 %v1426
  %1440 = vmatprep.subr.mxu0 0.0
  %1441 = vmatpush1.msra.mxu0 0.0
  %1442 = vmatprep.subr.mxu0 0.0
  %1443 = vmatpush1.msra.mxu0 0.0
  %1444 = vmatprep.subr.mxu0 0.0
  %1445 = vmatpush1.msra.mxu0 0.0
  %1446 = vmatprep.subr.mxu0 0.0
  %1447 = vmatpush1.msra.mxu0 0.0
  %1448 = vmatprep.subr.mxu0 0.0
  %1449 = vmatpush1.msra.mxu0 0.0
  %1450 = vmatprep.subr.mxu0 0.0
  %1451 = vmatpush1.msra.mxu0 0.0
  %1452 = vmatprep.subr.mxu0 0.0
  %1453 = vmatpush1.msra.mxu0 0.0
  %1454 = vmatprep.subr.mxu0 0.0
  %1455 = vmatpush1.msra.mxu0 0.0
  %1456 = vmatprep.subr.mxu0 0.0
  %1457 = vmatpush1.msra.mxu0 0.0
  %1458 = vmatprep.subr.mxu0 0.0
  %1459 = vmatpush1.msra.mxu0 0.0
  %1460 = vmatprep.subr.mxu0 0.0
  %1461 = vmatpush1.msra.mxu0 0.0
  %1462 = vmatprep.subr.mxu0 0.0
  %1463 = vmatpush1.msra.mxu0 0.0
  %1464 = vmatprep.subr.mxu0 0.0
  %1465 = vmatpush1.msra.mxu0 0.0
  %1466 = vmatprep.subr.mxu0 0.0
  %1467 = vmatpush1.msra.mxu0 0.0
  %1468 = vmatprep.subr.mxu0 0.0
  %1469 = vmatpush1.msra.mxu0 0.0
  %1470 = vmatprep.subr.mxu0 0.0
  %1471 = vmatpush1.msra.mxu0 0.0
  %1472 = vmatprep.subr.mxu0 0.0
  %1473 = vmatpush1.msra.mxu0 0.0
  %1474 = vmatprep.subr.mxu0 0.0
  %1475 = vmatpush1.msra.mxu0 0.0
  %1476 = vmatprep.subr.mxu0 0.0
  %1477 = vmatpush1.msra.mxu0 0.0
  %1478 = vmatprep.subr.mxu0 0.0
  %1479 = vmatpush1.msra.mxu0 0.0
  %1480 = vmatprep.subr.mxu0 0.0
  %1481 = vmatpush1.msra.mxu0 0.0
  %1482 = vmatprep.subr.mxu0 0.0
  %1483 = vmatpush1.msra.mxu0 0.0
  %1484 = vmatprep.subr.mxu0 0.0
  %1485 = vmatpush1.msra.mxu0 0.0
  %1486 = vmatprep.subr.mxu0 0.0
  %1487 = vmatpush1.msra.mxu0 0.0
  %1488 = vmatprep.subr.mxu0 0.0
  %1489 = vmatpush1.msra.mxu0 0.0
  %1490 = vmatprep.subr.mxu0 0.0
  %1491 = vmatpush1.msra.mxu0 0.0
  %1492 = vmatprep.subr.mxu0 0.0
  %1493 = vmatpush1.msra.mxu0 0.0
  %1494 = vmatprep.subr.mxu0 0.0
  %1495 = vmatpush1.msra.mxu0 0.0
  %1496 = vmatprep.subr.mxu0 0.0
  %1497 = vmatpush1.msra.mxu0 0.0
  %1498 = vmatprep.subr.mxu0 0.0
  %1499 = vmatpush1.msra.mxu0 0.0
  %1500 = vmatprep.subr.mxu0 0.0
  %1501 = vmatpush1.msra.mxu0 0.0
  %1502 = vmatprep.mubr.f32.mxu0 0.0
  %1503 = vmatmul.mubr.f32.gmra.mrb[0].mxu0 %v1433
  %v1504 = vpop.f32.mrb[0].mxu0
  %v1505 = vadd.f32 0.0, %v1504
  %v1506 = vpop.f32.mrb[0].mxu0
  %1507 = vmatprep.mubr.f32.mxu0 0.0
  %1508 = vmatmul.mubr.f32.gmra.mrb[0].mxu0 %v1436
  %v1509 = vpop.f32.mrb[0].mxu0
  %v1510 = vadd.f32 0.0, %v1509
  %v1511 = vpop.f32.mrb[0].mxu0
  %1512 = vdwg.mxu0
  %v1513 = vadd.f32 %v1340, %v1505
  %v1514 = vadd.f32 %v1341, %v1510
  %s1515 = scalar_lea.vmem %s3, 1024
  %v1516 = vld [vmem:[%s1515] sm:$0xff]
  %v1517 = vld [vmem:[%s1515 + $0x8] sm:$0xff]
  %v1518 = vld [vmem:[%s1515 + $0x10] sm:$0xff]
  %v1519 = vld [vmem:[%s1515 + $0x18] sm:$0xff]
  %v1520 = vld [vmem:[%s1515 + $0x20] sm:$0xff]
  %v1521 = vld [vmem:[%s1515 + $0x28] sm:$0xff]
  %v1522 = vld [vmem:[%s1515 + $0x30] sm:$0xff]
  %v1523 = vld [vmem:[%s1515 + $0x38] sm:$0xff]
  %v1524 = vld [vmem:[%s1515 + $0x40] sm:$0xff]
  %v1525 = vld [vmem:[%s1515 + $0x48] sm:$0xff]
  %v1526 = vld [vmem:[%s1515 + $0x50] sm:$0xff]
  %v1527 = vld [vmem:[%s1515 + $0x58] sm:$0xff]
  %v1528 = vld [vmem:[%s1515 + $0x60] sm:$0xff]
  %v1529 = vld [vmem:[%s1515 + $0x68] sm:$0xff]
  %v1530 = vld [vmem:[%s1515 + $0x70] sm:$0xff]
  %v1531 = vld [vmem:[%s1515 + $0x78] sm:$0xff]
  %1532 = vmatprep.subr.mxu0 0.0
  %1533 = vmatpush1.msra.mxu0 %v1516
  %1534 = vmatprep.subr.mxu0 0.0
  %1535 = vmatpush1.msra.mxu0 %v1517
  %1536 = vmatprep.subr.mxu0 0.0
  %1537 = vmatpush1.msra.mxu0 %v1518
  %1538 = vmatprep.subr.mxu0 0.0
  %1539 = vmatpush1.msra.mxu0 %v1519
  %1540 = vmatprep.subr.mxu0 0.0
  %1541 = vmatpush1.msra.mxu0 %v1520
  %1542 = vmatprep.subr.mxu0 0.0
  %1543 = vmatpush1.msra.mxu0 %v1521
  %1544 = vmatprep.subr.mxu0 0.0
  %1545 = vmatpush1.msra.mxu0 %v1522
  %1546 = vmatprep.subr.mxu0 0.0
  %1547 = vmatpush1.msra.mxu0 %v1523
  %1548 = vmatprep.subr.mxu0 0.0
  %1549 = vmatpush1.msra.mxu0 %v1524
  %1550 = vmatprep.subr.mxu0 0.0
  %1551 = vmatpush1.msra.mxu0 %v1525
  %1552 = vmatprep.subr.mxu0 0.0
  %1553 = vmatpush1.msra.mxu0 %v1526
  %1554 = vmatprep.subr.mxu0 0.0
  %1555 = vmatpush1.msra.mxu0 %v1527
  %1556 = vmatprep.subr.mxu0 0.0
  %1557 = vmatpush1.msra.mxu0 %v1528
  %1558 = vmatprep.subr.mxu0 0.0
  %1559 = vmatpush1.msra.mxu0 %v1529
  %1560 = vmatprep.subr.mxu0 0.0
  %1561 = vmatpush1.msra.mxu0 %v1530
  %1562 = vmatprep.subr.mxu0 0.0
  %1563 = vmatpush1.msra.mxu0 %v1531
  %1564 = vmatprep.subr.mxu0 0.0
  %1565 = vmatpush1.msra.mxu0 0.0
  %1566 = vmatprep.subr.mxu0 0.0
  %1567 = vmatpush1.msra.mxu0 0.0
  %1568 = vmatprep.subr.mxu0 0.0
  %1569 = vmatpush1.msra.mxu0 0.0
  %1570 = vmatprep.subr.mxu0 0.0
  %1571 = vmatpush1.msra.mxu0 0.0
  %1572 = vmatprep.subr.mxu0 0.0
  %1573 = vmatpush1.msra.mxu0 0.0
  %1574 = vmatprep.subr.mxu0 0.0
  %1575 = vmatpush1.msra.mxu0 0.0
  %1576 = vmatprep.subr.mxu0 0.0
  %1577 = vmatpush1.msra.mxu0 0.0
  %1578 = vmatprep.subr.mxu0 0.0
  %1579 = vmatpush1.msra.mxu0 0.0
  %1580 = vmatprep.subr.mxu0 0.0
  %1581 = vmatpush1.msra.mxu0 0.0
  %1582 = vmatprep.subr.mxu0 0.0
  %1583 = vmatpush1.msra.mxu0 0.0
  %1584 = vmatprep.subr.mxu0 0.0
  %1585 = vmatpush1.msra.mxu0 0.0
  %1586 = vmatprep.subr.mxu0 0.0
  %1587 = vmatpush1.msra.mxu0 0.0
  %1588 = vmatprep.subr.mxu0 0.0
  %1589 = vmatpush1.msra.mxu0 0.0
  %1590 = vmatprep.subr.mxu0 0.0
  %1591 = vmatpush1.msra.mxu0 0.0
  %1592 = vmatprep.subr.mxu0 0.0
  %1593 = vmatpush1.msra.mxu0 0.0
  %1594 = vmatprep.subr.mxu0 0.0
  %1595 = vmatpush1.msra.mxu0 0.0
  %1596 = vmatprep.mubr.f32.mxu0 0.0
  %1597 = vmatmul.mubr.f32.gmra.mrb[0].mxu0 %v135
  %v1598 = vpop.f32.mrb[0].mxu0
  %v1599 = vadd.f32 0.0, %v1598
  %v1600 = vpop.f32.mrb[0].mxu0
  %1601 = vdwg.mxu0
  %s1602 = scalar_lea.vmem %s4, 128
  %v1603 = vld [vmem:[%s1602] sm:$0xff]
  %v1604 = vld [vmem:[%s1602 + $0x8] sm:$0xff]
  %v1606 = vsel %vm314, %v1603, 0
  %v1609 = vsel %vm314, %v1604, 0
  %1611 = vmatprep.subr.mxu0 0.0
  %1612 = vmatpush1.msra.mxu0 %v1599
  %1613 = vmatprep.subr.mxu0 0.0
  %1614 = vmatpush1.msra.mxu0 0.0
  %1615 = vmatprep.subr.mxu0 0.0
  %1616 = vmatpush1.msra.mxu0 0.0
  %1617 = vmatprep.subr.mxu0 0.0
  %1618 = vmatpush1.msra.mxu0 0.0
  %1619 = vmatprep.subr.mxu0 0.0
  %1620 = vmatpush1.msra.mxu0 0.0
  %1621 = vmatprep.subr.mxu0 0.0
  %1622 = vmatpush1.msra.mxu0 0.0
  %1623 = vmatprep.subr.mxu0 0.0
  %1624 = vmatpush1.msra.mxu0 0.0
  %1625 = vmatprep.subr.mxu0 0.0
  %1626 = vmatpush1.msra.mxu0 0.0
  %1627 = vmatprep.subr.mxu0 0.0
  %1628 = vmatpush1.msra.mxu0 0.0
  %1629 = vmatprep.subr.mxu0 0.0
  %1630 = vmatpush1.msra.mxu0 0.0
  %1631 = vmatprep.subr.mxu0 0.0
  %1632 = vmatpush1.msra.mxu0 0.0
  %1633 = vmatprep.subr.mxu0 0.0
  %1634 = vmatpush1.msra.mxu0 0.0
  %1635 = vmatprep.subr.mxu0 0.0
  %1636 = vmatpush1.msra.mxu0 0.0
  %1637 = vmatprep.subr.mxu0 0.0
  %1638 = vmatpush1.msra.mxu0 0.0
  %1639 = vmatprep.subr.mxu0 0.0
  %1640 = vmatpush1.msra.mxu0 0.0
  %1641 = vmatprep.subr.mxu0 0.0
  %1642 = vmatpush1.msra.mxu0 0.0
  %1643 = vmatprep.subr.mxu0 0.0
  %1644 = vmatpush1.msra.mxu0 0.0
  %1645 = vmatprep.subr.mxu0 0.0
  %1646 = vmatpush1.msra.mxu0 0.0
  %1647 = vmatprep.subr.mxu0 0.0
  %1648 = vmatpush1.msra.mxu0 0.0
  %1649 = vmatprep.subr.mxu0 0.0
  %1650 = vmatpush1.msra.mxu0 0.0
  %1651 = vmatprep.subr.mxu0 0.0
  %1652 = vmatpush1.msra.mxu0 0.0
  %1653 = vmatprep.subr.mxu0 0.0
  %1654 = vmatpush1.msra.mxu0 0.0
  %1655 = vmatprep.subr.mxu0 0.0
  %1656 = vmatpush1.msra.mxu0 0.0
  %1657 = vmatprep.subr.mxu0 0.0
  %1658 = vmatpush1.msra.mxu0 0.0
  %1659 = vmatprep.subr.mxu0 0.0
  %1660 = vmatpush1.msra.mxu0 0.0
  %1661 = vmatprep.subr.mxu0 0.0
  %1662 = vmatpush1.msra.mxu0 0.0
  %1663 = vmatprep.subr.mxu0 0.0
  %1664 = vmatpush1.msra.mxu0 0.0
  %1665 = vmatprep.subr.mxu0 0.0
  %1666 = vmatpush1.msra.mxu0 0.0
  %1667 = vmatprep.subr.mxu0 0.0
  %1668 = vmatpush1.msra.mxu0 0.0
  %1669 = vmatprep.subr.mxu0 0.0
  %1670 = vmatpush1.msra.mxu0 0.0
  %1671 = vmatprep.subr.mxu0 0.0
  %1672 = vmatpush1.msra.mxu0 0.0
  %1673 = vmatprep.subr.mxu0 0.0
  %1674 = vmatpush1.msra.mxu0 0.0
  %1675 = vmatprep.mubr.f32.mxu0 0.0
  %1676 = vmatmul.mubr.f32.gmra.mrb[0].mxu0 %v1606
  %v1677 = vpop.f32.mrb[0].mxu0
  %v1678 = vadd.f32 0.0, %v1677
  %v1679 = vpop.f32.mrb[0].mxu0
  %1680 = vmatprep.mubr.f32.mxu0 0.0
  %1681 = vmatmul.mubr.f32.gmra.mrb[0].mxu0 %v1609
  %v1682 = vpop.f32.mrb[0].mxu0
  %v1683 = vadd.f32 0.0, %v1682
  %v1684 = vpop.f32.mrb[0].mxu0
  %1685 = vdwg.mxu0
  %v1686 = vadd.f32 %v1513, %v1678
  %v1687 = vadd.f32 %v1514, %v1683
  %v1688 = vld [vmem:[%s5] sm:$0xff]
  %v1689 = vld [vmem:[%s5 + $0x8] sm:$0xff]
  %1691 = vset.pattern.permute.xlu0 0
  %1692 = vperm.xlu0 %1691, %v1688
  %v1693 = vpop.permute.xlu0 %1692
  %1696 = vset.pattern.permute.xlu0 0
  %1697 = vperm.xlu0 %1696, %v1689
  %v1698 = vpop.permute.xlu0 %1697
  %v1700 = vadd.f32 %v1686, %v1693
  %v1701 = vadd.f32 %v1687, %v1698
  %v1702 = vmax.f32 %v1700, 0.0
  %v1703 = vmax.f32 %v1701, 0.0
  %v1704 = vld [vmem:[%s6] sm:$0xff]
  %v1705 = vld [vmem:[%s6 + $0x8] sm:$0xff]
  %v1706 = vld [vmem:[%s6 + $0x10] sm:$0xff]
  %v1707 = vld [vmem:[%s6 + $0x18] sm:$0xff]
  %v1709 = vsel %vm61, %v1702, 0
  %v1712 = vsel %vm61, %v1703, 0
  %1714 = vmatprep.subr.mxu0 0.0
  %1715 = vmatpush1.msra.mxu0 %v1704
  %1716 = vmatprep.subr.mxu0 0.0
  %1717 = vmatpush1.msra.mxu0 %v1705
  %1718 = vmatprep.subr.mxu0 0.0
  %1719 = vmatpush1.msra.mxu0 %v1706
  %1720 = vmatprep.subr.mxu0 0.0
  %1721 = vmatpush1.msra.mxu0 %v1707
  %1722 = vmatprep.subr.mxu0 0.0
  %1723 = vmatpush1.msra.mxu0 0.0
  %1724 = vmatprep.subr.mxu0 0.0
  %1725 = vmatpush1.msra.mxu0 0.0
  %1726 = vmatprep.subr.mxu0 0.0
  %1727 = vmatpush1.msra.mxu0 0.0
  %1728 = vmatprep.subr.mxu0 0.0
  %1729 = vmatpush1.msra.mxu0 0.0
  %1730 = vmatprep.subr.mxu0 0.0
  %1731 = vmatpush1.msra.mxu0 0.0
  %1732 = vmatprep.subr.mxu0 0.0
  %1733 = vmatpush1.msra.mxu0 0.0
  %1734 = vmatprep.subr.mxu0 0.0
  %1735 = vmatpush1.msra.mxu0 0.0
  %1736 = vmatprep.subr.mxu0 0.0
  %1737 = vmatpush1.msra.mxu0 0.0
  %1738 = vmatprep.subr.mxu0 0.0
  %1739 = vmatpush1.msra.mxu0 0.0
  %1740 = vmatprep.subr.mxu0 0.0
  %1741 = vmatpush1.msra.mxu0 0.0
  %1742 = vmatprep.subr.mxu0 0.0
  %1743 = vmatpush1.msra.mxu0 0.0
  %1744 = vmatprep.subr.mxu0 0.0
  %1745 = vmatpush1.msra.mxu0 0.0
  %1746 = vmatprep.subr.mxu0 0.0
  %1747 = vmatpush1.msra.mxu0 0.0
  %1748 = vmatprep.subr.mxu0 0.0
  %1749 = vmatpush1.msra.mxu0 0.0
  %1750 = vmatprep.subr.mxu0 0.0
  %1751 = vmatpush1.msra.mxu0 0.0
  %1752 = vmatprep.subr.mxu0 0.0
  %1753 = vmatpush1.msra.mxu0 0.0
  %1754 = vmatprep.subr.mxu0 0.0
  %1755 = vmatpush1.msra.mxu0 0.0
  %1756 = vmatprep.subr.mxu0 0.0
  %1757 = vmatpush1.msra.mxu0 0.0
  %1758 = vmatprep.subr.mxu0 0.0
  %1759 = vmatpush1.msra.mxu0 0.0
  %1760 = vmatprep.subr.mxu0 0.0
  %1761 = vmatpush1.msra.mxu0 0.0
  %1762 = vmatprep.subr.mxu0 0.0
  %1763 = vmatpush1.msra.mxu0 0.0
  %1764 = vmatprep.subr.mxu0 0.0
  %1765 = vmatpush1.msra.mxu0 0.0
  %1766 = vmatprep.subr.mxu0 0.0
  %1767 = vmatpush1.msra.mxu0 0.0
  %1768 = vmatprep.subr.mxu0 0.0
  %1769 = vmatpush1.msra.mxu0 0.0
  %1770 = vmatprep.subr.mxu0 0.0
  %1771 = vmatpush1.msra.mxu0 0.0
  %1772 = vmatprep.subr.mxu0 0.0
  %1773 = vmatpush1.msra.mxu0 0.0
  %1774 = vmatprep.subr.mxu0 0.0
  %1775 = vmatpush1.msra.mxu0 0.0
  %1776 = vmatprep.subr.mxu0 0.0
  %1777 = vmatpush1.msra.mxu0 0.0
  %1778 = vmatprep.mubr.f32.mxu0 0.0
  %1779 = vmatmul.mubr.f32.gmra.mrb[0].mxu0 %v1709
  %v1780 = vpop.f32.mrb[0].mxu0
  %v1781 = vadd.f32 0.0, %v1780
  %v1782 = vpop.f32.mrb[0].mxu0
  %1783 = vmatprep.mubr.f32.mxu0 0.0
  %1784 = vmatmul.mubr.f32.gmra.mrb[0].mxu0 %v1712
  %v1785 = vpop.f32.mrb[0].mxu0
  %v1786 = vadd.f32 0.0, %v1785
  %v1787 = vpop.f32.mrb[0].mxu0
  %1788 = vdwg.mxu0
  %v1789 = vld [vmem:[%s7] sm:$0xff]
  %v1790 = vld [vmem:[%s7 + $0x8] sm:$0xff]
  %v1791 = vld [vmem:[%s7 + $0x10] sm:$0xff]
  %v1792 = vld [vmem:[%s7 + $0x18] sm:$0xff]
  %s1793 = scalar_lea.vmem %s6, 32
  %v1794 = vld [vmem:[%s1793] sm:$0xff]
  %v1795 = vld [vmem:[%s1793 + $0x8] sm:$0xff]
  %v1796 = vld [vmem:[%s1793 + $0x10] sm:$0xff]
  %v1797 = vld [vmem:[%s1793 + $0x18] sm:$0xff]
  %1798 = vmatprep.subr.mxu0 0.0
  %1799 = vmatpush1.msra.mxu0 %v1794
  %1800 = vmatprep.subr.mxu0 0.0
  %1801 = vmatpush1.msra.mxu0 %v1795
  %1802 = vmatprep.subr.mxu0 0.0
  %1803 = vmatpush1.msra.mxu0 %v1796
  %1804 = vmatprep.subr.mxu0 0.0
  %1805 = vmatpush1.msra.mxu0 %v1797
  %1806 = vmatprep.subr.mxu0 0.0
  %1807 = vmatpush1.msra.mxu0 0.0
  %1808 = vmatprep.subr.mxu0 0.0
  %1809 = vmatpush1.msra.mxu0 0.0
  %1810 = vmatprep.subr.mxu0 0.0
  %1811 = vmatpush1.msra.mxu0 0.0
  %1812 = vmatprep.subr.mxu0 0.0
  %1813 = vmatpush1.msra.mxu0 0.0
  %1814 = vmatprep.subr.mxu0 0.0
  %1815 = vmatpush1.msra.mxu0 0.0
  %1816 = vmatprep.subr.mxu0 0.0
  %1817 = vmatpush1.msra.mxu0 0.0
  %1818 = vmatprep.subr.mxu0 0.0
  %1819 = vmatpush1.msra.mxu0 0.0
  %1820 = vmatprep.subr.mxu0 0.0
  %1821 = vmatpush1.msra.mxu0 0.0
  %1822 = vmatprep.subr.mxu0 0.0
  %1823 = vmatpush1.msra.mxu0 0.0
  %1824 = vmatprep.subr.mxu0 0.0
  %1825 = vmatpush1.msra.mxu0 0.0
  %1826 = vmatprep.subr.mxu0 0.0
  %1827 = vmatpush1.msra.mxu0 0.0
  %1828 = vmatprep.subr.mxu0 0.0
  %1829 = vmatpush1.msra.mxu0 0.0
  %1830 = vmatprep.subr.mxu0 0.0
  %1831 = vmatpush1.msra.mxu0 0.0
  %1832 = vmatprep.subr.mxu0 0.0
  %1833 = vmatpush1.msra.mxu0 0.0
  %1834 = vmatprep.subr.mxu0 0.0
  %1835 = vmatpush1.msra.mxu0 0.0
  %1836 = vmatprep.subr.mxu0 0.0
  %1837 = vmatpush1.msra.mxu0 0.0
  %1838 = vmatprep.subr.mxu0 0.0
  %1839 = vmatpush1.msra.mxu0 0.0
  %1840 = vmatprep.subr.mxu0 0.0
  %1841 = vmatpush1.msra.mxu0 0.0
  %1842 = vmatprep.subr.mxu0 0.0
  %1843 = vmatpush1.msra.mxu0 0.0
  %1844 = vmatprep.subr.mxu0 0.0
  %1845 = vmatpush1.msra.mxu0 0.0
  %1846 = vmatprep.subr.mxu0 0.0
  %1847 = vmatpush1.msra.mxu0 0.0
  %1848 = vmatprep.subr.mxu0 0.0
  %1849 = vmatpush1.msra.mxu0 0.0
  %1850 = vmatprep.subr.mxu0 0.0
  %1851 = vmatpush1.msra.mxu0 0.0
  %1852 = vmatprep.subr.mxu0 0.0
  %1853 = vmatpush1.msra.mxu0 0.0
  %1854 = vmatprep.subr.mxu0 0.0
  %1855 = vmatpush1.msra.mxu0 0.0
  %1856 = vmatprep.subr.mxu0 0.0
  %1857 = vmatpush1.msra.mxu0 0.0
  %1858 = vmatprep.subr.mxu0 0.0
  %1859 = vmatpush1.msra.mxu0 0.0
  %1860 = vmatprep.subr.mxu0 0.0
  %1861 = vmatpush1.msra.mxu0 0.0
  %1862 = vmatprep.mubr.f32.mxu0 0.0
  %1863 = vmatmul.mubr.f32.gmra.mrb[0].mxu0 %v1709
  %v1864 = vpop.f32.mrb[0].mxu0
  %v1865 = vadd.f32 0.0, %v1864
  %v1866 = vpop.f32.mrb[0].mxu0
  %1867 = vmatprep.mubr.f32.mxu0 0.0
  %1868 = vmatmul.mubr.f32.gmra.mrb[0].mxu0 %v1712
  %v1869 = vpop.f32.mrb[0].mxu0
  %v1870 = vadd.f32 0.0, %v1869
  %v1871 = vpop.f32.mrb[0].mxu0
  %1872 = vdwg.mxu0
  %s1873 = scalar_lea.vmem %s7, 32
  %v1874 = vld [vmem:[%s1873] sm:$0xff]
  %v1875 = vld [vmem:[%s1873 + $0x8] sm:$0xff]
  %v1876 = vld [vmem:[%s1873 + $0x10] sm:$0xff]
  %v1877 = vld [vmem:[%s1873 + $0x18] sm:$0xff]
  %vm1878 = vcmask 130048
  %v1880 = vsel %vm1878, %v1874, 0
  %v1883 = vsel %vm1878, %v1875, 0
  %v1886 = vsel %vm1878, %v1876, 0
  %v1889 = vsel %vm1878, %v1877, 0
  %1891 = vmatprep.subr.mxu0 0.0
  %1892 = vmatpush1.msra.mxu0 %v1865
  %1893 = vmatprep.subr.mxu0 0.0
  %1894 = vmatpush1.msra.mxu0 %v1870
  %1895 = vmatprep.subr.mxu0 0.0
  %1896 = vmatpush1.msra.mxu0 0.0
  %1897 = vmatprep.subr.mxu0 0.0
  %1898 = vmatpush1.msra.mxu0 0.0
  %1899 = vmatprep.subr.mxu0 0.0
  %1900 = vmatpush1.msra.mxu0 0.0
  %1901 = vmatprep.subr.mxu0 0.0
  %1902 = vmatpush1.msra.mxu0 0.0
  %1903 = vmatprep.subr.mxu0 0.0
  %1904 = vmatpush1.msra.mxu0 0.0
  %1905 = vmatprep.subr.mxu0 0.0
  %1906 = vmatpush1.msra.mxu0 0.0
  %1907 = vmatprep.subr.mxu0 0.0
  %1908 = vmatpush1.msra.mxu0 0.0
  %1909 = vmatprep.subr.mxu0 0.0
  %1910 = vmatpush1.msra.mxu0 0.0
  %1911 = vmatprep.subr.mxu0 0.0
  %1912 = vmatpush1.msra.mxu0 0.0
  %1913 = vmatprep.subr.mxu0 0.0
  %1914 = vmatpush1.msra.mxu0 0.0
  %1915 = vmatprep.subr.mxu0 0.0
  %1916 = vmatpush1.msra.mxu0 0.0
  %1917 = vmatprep.subr.mxu0 0.0
  %1918 = vmatpush1.msra.mxu0 0.0
  %1919 = vmatprep.subr.mxu0 0.0
  %1920 = vmatpush1.msra.mxu0 0.0
  %1921 = vmatprep.subr.mxu0 0.0
  %1922 = vmatpush1.msra.mxu0 0.0
  %1923 = vmatprep.subr.mxu0 0.0
  %1924 = vmatpush1.msra.mxu0 0.0
  %1925 = vmatprep.subr.mxu0 0.0
  %1926 = vmatpush1.msra.mxu0 0.0
  %1927 = vmatprep.subr.mxu0 0.0
  %1928 = vmatpush1.msra.mxu0 0.0
  %1929 = vmatprep.subr.mxu0 0.0
  %1930 = vmatpush1.msra.mxu0 0.0
  %1931 = vmatprep.subr.mxu0 0.0
  %1932 = vmatpush1.msra.mxu0 0.0
  %1933 = vmatprep.subr.mxu0 0.0
  %1934 = vmatpush1.msra.mxu0 0.0
  %1935 = vmatprep.subr.mxu0 0.0
  %1936 = vmatpush1.msra.mxu0 0.0
  %1937 = vmatprep.subr.mxu0 0.0
  %1938 = vmatpush1.msra.mxu0 0.0
  %1939 = vmatprep.subr.mxu0 0.0
  %1940 = vmatpush1.msra.mxu0 0.0
  %1941 = vmatprep.subr.mxu0 0.0
  %1942 = vmatpush1.msra.mxu0 0.0
  %1943 = vmatprep.subr.mxu0 0.0
  %1944 = vmatpush1.msra.mxu0 0.0
  %1945 = vmatprep.subr.mxu0 0.0
  %1946 = vmatpush1.msra.mxu0 0.0
  %1947 = vmatprep.subr.mxu0 0.0
  %1948 = vmatpush1.msra.mxu0 0.0
  %1949 = vmatprep.subr.mxu0 0.0
  %1950 = vmatpush1.msra.mxu0 0.0
  %1951 = vmatprep.subr.mxu0 0.0
  %1952 = vmatpush1.msra.mxu0 0.0
  %1953 = vmatprep.subr.mxu0 0.0
  %1954 = vmatpush1.msra.mxu0 0.0
  %1955 = vmatprep.mubr.f32.mxu0 0.0
  %1956 = vmatmul.mubr.f32.gmra.mrb[0].mxu0 %v1880
  %v1957 = vpop.f32.mrb[0].mxu0
  %v1958 = vadd.f32 0.0, %v1957
  %v1959 = vpop.f32.mrb[0].mxu0
  %1960 = vmatprep.mubr.f32.mxu0 0.0
  %1961 = vmatmul.mubr.f32.gmra.mrb[0].mxu0 %v1883
  %v1962 = vpop.f32.mrb[0].mxu0
  %v1963 = vadd.f32 0.0, %v1962
  %v1964 = vpop.f32.mrb[0].mxu0
  %1965 = vmatprep.mubr.f32.mxu0 0.0
  %1966 = vmatmul.mubr.f32.gmra.mrb[0].mxu0 %v1886
  %v1967 = vpop.f32.mrb[0].mxu0
  %v1968 = vadd.f32 0.0, %v1967
  %v1969 = vpop.f32.mrb[0].mxu0
  %1970 = vmatprep.mubr.f32.mxu0 0.0
  %1971 = vmatmul.mubr.f32.gmra.mrb[0].mxu0 %v1889
  %v1972 = vpop.f32.mrb[0].mxu0
  %v1973 = vadd.f32 0.0, %v1972
  %v1974 = vpop.f32.mrb[0].mxu0
  %1975 = vdwg.mxu0
  %v1977 = vsel %vm1878, %v1789, 0
  %v1980 = vsel %vm1878, %v1790, 0
  %v1983 = vsel %vm1878, %v1791, 0
  %v1986 = vsel %vm1878, %v1792, 0
  %1988 = vmatprep.subr.mxu0 0.0
  %1989 = vmatpush1.msra.mxu0 %v1781
  %1990 = vmatprep.subr.mxu0 0.0
  %1991 = vmatpush1.msra.mxu0 %v1786
  %1992 = vmatprep.subr.mxu0 0.0
  %1993 = vmatpush1.msra.mxu0 0.0
  %1994 = vmatprep.subr.mxu0 0.0
  %1995 = vmatpush1.msra.mxu0 0.0
  %1996 = vmatprep.subr.mxu0 0.0
  %1997 = vmatpush1.msra.mxu0 0.0
  %1998 = vmatprep.subr.mxu0 0.0
  %1999 = vmatpush1.msra.mxu0 0.0
  %2000 = vmatprep.subr.mxu0 0.0
  %2001 = vmatpush1.msra.mxu0 0.0
  %2002 = vmatprep.subr.mxu0 0.0
  %2003 = vmatpush1.msra.mxu0 0.0
  %2004 = vmatprep.subr.mxu0 0.0
  %2005 = vmatpush1.msra.mxu0 0.0
  %2006 = vmatprep.subr.mxu0 0.0
  %2007 = vmatpush1.msra.mxu0 0.0
  %2008 = vmatprep.subr.mxu0 0.0
  %2009 = vmatpush1.msra.mxu0 0.0
  %2010 = vmatprep.subr.mxu0 0.0
  %2011 = vmatpush1.msra.mxu0 0.0
  %2012 = vmatprep.subr.mxu0 0.0
  %2013 = vmatpush1.msra.mxu0 0.0
  %2014 = vmatprep.subr.mxu0 0.0
  %2015 = vmatpush1.msra.mxu0 0.0
  %2016 = vmatprep.subr.mxu0 0.0
  %2017 = vmatpush1.msra.mxu0 0.0
  %2018 = vmatprep.subr.mxu0 0.0
  %2019 = vmatpush1.msra.mxu0 0.0
  %2020 = vmatprep.subr.mxu0 0.0
  %2021 = vmatpush1.msra.mxu0 0.0
  %2022 = vmatprep.subr.mxu0 0.0
  %2023 = vmatpush1.msra.mxu0 0.0
  %2024 = vmatprep.subr.mxu0 0.0
  %2025 = vmatpush1.msra.mxu0 0.0
  %2026 = vmatprep.subr.mxu0 0.0
  %2027 = vmatpush1.msra.mxu0 0.0
  %2028 = vmatprep.subr.mxu0 0.0
  %2029 = vmatpush1.msra.mxu0 0.0
  %2030 = vmatprep.subr.mxu0 0.0
  %2031 = vmatpush1.msra.mxu0 0.0
  %2032 = vmatprep.subr.mxu0 0.0
  %2033 = vmatpush1.msra.mxu0 0.0
  %2034 = vmatprep.subr.mxu0 0.0
  %2035 = vmatpush1.msra.mxu0 0.0
  %2036 = vmatprep.subr.mxu0 0.0
  %2037 = vmatpush1.msra.mxu0 0.0
  %2038 = vmatprep.subr.mxu0 0.0
  %2039 = vmatpush1.msra.mxu0 0.0
  %2040 = vmatprep.subr.mxu0 0.0
  %2041 = vmatpush1.msra.mxu0 0.0
  %2042 = vmatprep.subr.mxu0 0.0
  %2043 = vmatpush1.msra.mxu0 0.0
  %2044 = vmatprep.subr.mxu0 0.0
  %2045 = vmatpush1.msra.mxu0 0.0
  %2046 = vmatprep.subr.mxu0 0.0
  %2047 = vmatpush1.msra.mxu0 0.0
  %2048 = vmatprep.subr.mxu0 0.0
  %2049 = vmatpush1.msra.mxu0 0.0
  %2050 = vmatprep.subr.mxu0 0.0
  %2051 = vmatpush1.msra.mxu0 0.0
  %2052 = vmatprep.mubr.f32.mxu0 0.0
  %2053 = vmatmul.mubr.f32.gmra.mrb[0].mxu0 %v1977
  %v2054 = vpop.f32.mrb[0].mxu0
  %v2055 = vadd.f32 %v1958, %v2054
  %v2056 = vpop.f32.mrb[0].mxu0
  %2057 = vmatprep.mubr.f32.mxu0 0.0
  %2058 = vmatmul.mubr.f32.gmra.mrb[0].mxu0 %v1980
  %v2059 = vpop.f32.mrb[0].mxu0
  %v2060 = vadd.f32 %v1963, %v2059
  %v2061 = vpop.f32.mrb[0].mxu0
  %2062 = vmatprep.mubr.f32.mxu0 0.0
  %2063 = vmatmul.mubr.f32.gmra.mrb[0].mxu0 %v1983
  %v2064 = vpop.f32.mrb[0].mxu0
  %v2065 = vadd.f32 %v1968, %v2064
  %v2066 = vpop.f32.mrb[0].mxu0
  %2067 = vmatprep.mubr.f32.mxu0 0.0
  %2068 = vmatmul.mubr.f32.gmra.mrb[0].mxu0 %v1986
  %v2069 = vpop.f32.mrb[0].mxu0
  %v2070 = vadd.f32 %v1973, %v2069
  %v2071 = vpop.f32.mrb[0].mxu0
  %2072 = vdwg.mxu0
  %s2073 = scalar_lea.vmem %s6, 64
  %v2074 = vld [vmem:[%s2073] sm:$0xff]
  %v2075 = vld [vmem:[%s2073 + $0x8] sm:$0xff]
  %v2076 = vld [vmem:[%s2073 + $0x10] sm:$0xff]
  %v2077 = vld [vmem:[%s2073 + $0x18] sm:$0xff]
  %2078 = vmatprep.subr.mxu0 0.0
  %2079 = vmatpush1.msra.mxu0 %v2074
  %2080 = vmatprep.subr.mxu0 0.0
  %2081 = vmatpush1.msra.mxu0 %v2075
  %2082 = vmatprep.subr.mxu0 0.0
  %2083 = vmatpush1.msra.mxu0 %v2076
  %2084 = vmatprep.subr.mxu0 0.0
  %2085 = vmatpush1.msra.mxu0 %v2077
  %2086 = vmatprep.subr.mxu0 0.0
  %2087 = vmatpush1.msra.mxu0 0.0
  %2088 = vmatprep.subr.mxu0 0.0
  %2089 = vmatpush1.msra.mxu0 0.0
  %2090 = vmatprep.subr.mxu0 0.0
  %2091 = vmatpush1.msra.mxu0 0.0
  %2092 = vmatprep.subr.mxu0 0.0
  %2093 = vmatpush1.msra.mxu0 0.0
  %2094 = vmatprep.subr.mxu0 0.0
  %2095 = vmatpush1.msra.mxu0 0.0
  %2096 = vmatprep.subr.mxu0 0.0
  %2097 = vmatpush1.msra.mxu0 0.0
  %2098 = vmatprep.subr.mxu0 0.0
  %2099 = vmatpush1.msra.mxu0 0.0
  %2100 = vmatprep.subr.mxu0 0.0
  %2101 = vmatpush1.msra.mxu0 0.0
  %2102 = vmatprep.subr.mxu0 0.0
  %2103 = vmatpush1.msra.mxu0 0.0
  %2104 = vmatprep.subr.mxu0 0.0
  %2105 = vmatpush1.msra.mxu0 0.0
  %2106 = vmatprep.subr.mxu0 0.0
  %2107 = vmatpush1.msra.mxu0 0.0
  %2108 = vmatprep.subr.mxu0 0.0
  %2109 = vmatpush1.msra.mxu0 0.0
  %2110 = vmatprep.subr.mxu0 0.0
  %2111 = vmatpush1.msra.mxu0 0.0
  %2112 = vmatprep.subr.mxu0 0.0
  %2113 = vmatpush1.msra.mxu0 0.0
  %2114 = vmatprep.subr.mxu0 0.0
  %2115 = vmatpush1.msra.mxu0 0.0
  %2116 = vmatprep.subr.mxu0 0.0
  %2117 = vmatpush1.msra.mxu0 0.0
  %2118 = vmatprep.subr.mxu0 0.0
  %2119 = vmatpush1.msra.mxu0 0.0
  %2120 = vmatprep.subr.mxu0 0.0
  %2121 = vmatpush1.msra.mxu0 0.0
  %2122 = vmatprep.subr.mxu0 0.0
  %2123 = vmatpush1.msra.mxu0 0.0
  %2124 = vmatprep.subr.mxu0 0.0
  %2125 = vmatpush1.msra.mxu0 0.0
  %2126 = vmatprep.subr.mxu0 0.0
  %2127 = vmatpush1.msra.mxu0 0.0
  %2128 = vmatprep.subr.mxu0 0.0
  %2129 = vmatpush1.msra.mxu0 0.0
  %2130 = vmatprep.subr.mxu0 0.0
  %2131 = vmatpush1.msra.mxu0 0.0
  %2132 = vmatprep.subr.mxu0 0.0
  %2133 = vmatpush1.msra.mxu0 0.0
  %2134 = vmatprep.subr.mxu0 0.0
  %2135 = vmatpush1.msra.mxu0 0.0
  %2136 = vmatprep.subr.mxu0 0.0
  %2137 = vmatpush1.msra.mxu0 0.0
  %2138 = vmatprep.subr.mxu0 0.0
  %2139 = vmatpush1.msra.mxu0 0.0
  %2140 = vmatprep.subr.mxu0 0.0
  %2141 = vmatpush1.msra.mxu0 0.0
  %2142 = vmatprep.mubr.f32.mxu0 0.0
  %2143 = vmatmul.mubr.f32.gmra.mrb[0].mxu0 %v1709
  %v2144 = vpop.f32.mrb[0].mxu0
  %v2145 = vadd.f32 0.0, %v2144
  %v2146 = vpop.f32.mrb[0].mxu0
  %2147 = vmatprep.mubr.f32.mxu0 0.0
  %2148 = vmatmul.mubr.f32.gmra.mrb[0].mxu0 %v1712
  %v2149 = vpop.f32.mrb[0].mxu0
  %v2150 = vadd.f32 0.0, %v2149
  %v2151 = vpop.f32.mrb[0].mxu0
  %2152 = vdwg.mxu0
  %s2153 = scalar_lea.vmem %s7, 64
  %v2154 = vld [vmem:[%s2153] sm:$0xff]
  %v2155 = vld [vmem:[%s2153 + $0x8] sm:$0xff]
  %v2156 = vld [vmem:[%s2153 + $0x10] sm:$0xff]
  %v2157 = vld [vmem:[%s2153 + $0x18] sm:$0xff]
  %v2159 = vsel %vm1878, %v2154, 0
  %v2162 = vsel %vm1878, %v2155, 0
  %v2165 = vsel %vm1878, %v2156, 0
  %v2168 = vsel %vm1878, %v2157, 0
  %2170 = vmatprep.subr.mxu0 0.0
  %2171 = vmatpush1.msra.mxu0 %v2145
  %2172 = vmatprep.subr.mxu0 0.0
  %2173 = vmatpush1.msra.mxu0 %v2150
  %2174 = vmatprep.subr.mxu0 0.0
  %2175 = vmatpush1.msra.mxu0 0.0
  %2176 = vmatprep.subr.mxu0 0.0
  %2177 = vmatpush1.msra.mxu0 0.0
  %2178 = vmatprep.subr.mxu0 0.0
  %2179 = vmatpush1.msra.mxu0 0.0
  %2180 = vmatprep.subr.mxu0 0.0
  %2181 = vmatpush1.msra.mxu0 0.0
  %2182 = vmatprep.subr.mxu0 0.0
  %2183 = vmatpush1.msra.mxu0 0.0
  %2184 = vmatprep.subr.mxu0 0.0
  %2185 = vmatpush1.msra.mxu0 0.0
  %2186 = vmatprep.subr.mxu0 0.0
  %2187 = vmatpush1.msra.mxu0 0.0
  %2188 = vmatprep.subr.mxu0 0.0
  %2189 = vmatpush1.msra.mxu0 0.0
  %2190 = vmatprep.subr.mxu0 0.0
  %2191 = vmatpush1.msra.mxu0 0.0
  %2192 = vmatprep.subr.mxu0 0.0
  %2193 = vmatpush1.msra.mxu0 0.0
  %2194 = vmatprep.subr.mxu0 0.0
  %2195 = vmatpush1.msra.mxu0 0.0
  %2196 = vmatprep.subr.mxu0 0.0
  %2197 = vmatpush1.msra.mxu0 0.0
  %2198 = vmatprep.subr.mxu0 0.0
  %2199 = vmatpush1.msra.mxu0 0.0
  %2200 = vmatprep.subr.mxu0 0.0
  %2201 = vmatpush1.msra.mxu0 0.0
  %2202 = vmatprep.subr.mxu0 0.0
  %2203 = vmatpush1.msra.mxu0 0.0
  %2204 = vmatprep.subr.mxu0 0.0
  %2205 = vmatpush1.msra.mxu0 0.0
  %2206 = vmatprep.subr.mxu0 0.0
  %2207 = vmatpush1.msra.mxu0 0.0
  %2208 = vmatprep.subr.mxu0 0.0
  %2209 = vmatpush1.msra.mxu0 0.0
  %2210 = vmatprep.subr.mxu0 0.0
  %2211 = vmatpush1.msra.mxu0 0.0
  %2212 = vmatprep.subr.mxu0 0.0
  %2213 = vmatpush1.msra.mxu0 0.0
  %2214 = vmatprep.subr.mxu0 0.0
  %2215 = vmatpush1.msra.mxu0 0.0
  %2216 = vmatprep.subr.mxu0 0.0
  %2217 = vmatpush1.msra.mxu0 0.0
  %2218 = vmatprep.subr.mxu0 0.0
  %2219 = vmatpush1.msra.mxu0 0.0
  %2220 = vmatprep.subr.mxu0 0.0
  %2221 = vmatpush1.msra.mxu0 0.0
  %2222 = vmatprep.subr.mxu0 0.0
  %2223 = vmatpush1.msra.mxu0 0.0
  %2224 = vmatprep.subr.mxu0 0.0
  %2225 = vmatpush1.msra.mxu0 0.0
  %2226 = vmatprep.subr.mxu0 0.0
  %2227 = vmatpush1.msra.mxu0 0.0
  %2228 = vmatprep.subr.mxu0 0.0
  %2229 = vmatpush1.msra.mxu0 0.0
  %2230 = vmatprep.subr.mxu0 0.0
  %2231 = vmatpush1.msra.mxu0 0.0
  %2232 = vmatprep.subr.mxu0 0.0
  %2233 = vmatpush1.msra.mxu0 0.0
  %2234 = vmatprep.mubr.f32.mxu0 0.0
  %2235 = vmatmul.mubr.f32.gmra.mrb[0].mxu0 %v2159
  %v2236 = vpop.f32.mrb[0].mxu0
  %v2237 = vadd.f32 0.0, %v2236
  %v2238 = vpop.f32.mrb[0].mxu0
  %2239 = vmatprep.mubr.f32.mxu0 0.0
  %2240 = vmatmul.mubr.f32.gmra.mrb[0].mxu0 %v2162
  %v2241 = vpop.f32.mrb[0].mxu0
  %v2242 = vadd.f32 0.0, %v2241
  %v2243 = vpop.f32.mrb[0].mxu0
  %2244 = vmatprep.mubr.f32.mxu0 0.0
  %2245 = vmatmul.mubr.f32.gmra.mrb[0].mxu0 %v2165
  %v2246 = vpop.f32.mrb[0].mxu0
  %v2247 = vadd.f32 0.0, %v2246
  %v2248 = vpop.f32.mrb[0].mxu0
  %2249 = vmatprep.mubr.f32.mxu0 0.0
  %2250 = vmatmul.mubr.f32.gmra.mrb[0].mxu0 %v2168
  %v2251 = vpop.f32.mrb[0].mxu0
  %v2252 = vadd.f32 0.0, %v2251
  %v2253 = vpop.f32.mrb[0].mxu0
  %2254 = vdwg.mxu0
  %v2255 = vadd.f32 %v2055, %v2237
  %v2256 = vadd.f32 %v2060, %v2242
  %v2257 = vadd.f32 %v2065, %v2247
  %v2258 = vadd.f32 %v2070, %v2252
  %s2259 = scalar_lea.vmem %s6, 96
  %v2260 = vld [vmem:[%s2259] sm:$0xff]
  %v2261 = vld [vmem:[%s2259 + $0x8] sm:$0xff]
  %v2262 = vld [vmem:[%s2259 + $0x10] sm:$0xff]
  %v2263 = vld [vmem:[%s2259 + $0x18] sm:$0xff]
  %2264 = vmatprep.subr.mxu0 0.0
  %2265 = vmatpush1.msra.mxu0 %v2260
  %2266 = vmatprep.subr.mxu0 0.0
  %2267 = vmatpush1.msra.mxu0 %v2261
  %2268 = vmatprep.subr.mxu0 0.0
  %2269 = vmatpush1.msra.mxu0 %v2262
  %2270 = vmatprep.subr.mxu0 0.0
  %2271 = vmatpush1.msra.mxu0 %v2263
  %2272 = vmatprep.subr.mxu0 0.0
  %2273 = vmatpush1.msra.mxu0 0.0
  %2274 = vmatprep.subr.mxu0 0.0
  %2275 = vmatpush1.msra.mxu0 0.0
  %2276 = vmatprep.subr.mxu0 0.0
  %2277 = vmatpush1.msra.mxu0 0.0
  %2278 = vmatprep.subr.mxu0 0.0
  %2279 = vmatpush1.msra.mxu0 0.0
  %2280 = vmatprep.subr.mxu0 0.0
  %2281 = vmatpush1.msra.mxu0 0.0
  %2282 = vmatprep.subr.mxu0 0.0
  %2283 = vmatpush1.msra.mxu0 0.0
  %2284 = vmatprep.subr.mxu0 0.0
  %2285 = vmatpush1.msra.mxu0 0.0
  %2286 = vmatprep.subr.mxu0 0.0
  %2287 = vmatpush1.msra.mxu0 0.0
  %2288 = vmatprep.subr.mxu0 0.0
  %2289 = vmatpush1.msra.mxu0 0.0
  %2290 = vmatprep.subr.mxu0 0.0
  %2291 = vmatpush1.msra.mxu0 0.0
  %2292 = vmatprep.subr.mxu0 0.0
  %2293 = vmatpush1.msra.mxu0 0.0
  %2294 = vmatprep.subr.mxu0 0.0
  %2295 = vmatpush1.msra.mxu0 0.0
  %2296 = vmatprep.subr.mxu0 0.0
  %2297 = vmatpush1.msra.mxu0 0.0
  %2298 = vmatprep.subr.mxu0 0.0
  %2299 = vmatpush1.msra.mxu0 0.0
  %2300 = vmatprep.subr.mxu0 0.0
  %2301 = vmatpush1.msra.mxu0 0.0
  %2302 = vmatprep.subr.mxu0 0.0
  %2303 = vmatpush1.msra.mxu0 0.0
  %2304 = vmatprep.subr.mxu0 0.0
  %2305 = vmatpush1.msra.mxu0 0.0
  %2306 = vmatprep.subr.mxu0 0.0
  %2307 = vmatpush1.msra.mxu0 0.0
  %2308 = vmatprep.subr.mxu0 0.0
  %2309 = vmatpush1.msra.mxu0 0.0
  %2310 = vmatprep.subr.mxu0 0.0
  %2311 = vmatpush1.msra.mxu0 0.0
  %2312 = vmatprep.subr.mxu0 0.0
  %2313 = vmatpush1.msra.mxu0 0.0
  %2314 = vmatprep.subr.mxu0 0.0
  %2315 = vmatpush1.msra.mxu0 0.0
  %2316 = vmatprep.subr.mxu0 0.0
  %2317 = vmatpush1.msra.mxu0 0.0
  %2318 = vmatprep.subr.mxu0 0.0
  %2319 = vmatpush1.msra.mxu0 0.0
  %2320 = vmatprep.subr.mxu0 0.0
  %2321 = vmatpush1.msra.mxu0 0.0
  %2322 = vmatprep.subr.mxu0 0.0
  %2323 = vmatpush1.msra.mxu0 0.0
  %2324 = vmatprep.subr.mxu0 0.0
  %2325 = vmatpush1.msra.mxu0 0.0
  %2326 = vmatprep.subr.mxu0 0.0
  %2327 = vmatpush1.msra.mxu0 0.0
  %2328 = vmatprep.mubr.f32.mxu0 0.0
  %2329 = vmatmul.mubr.f32.gmra.mrb[0].mxu0 %v1709
  %v2330 = vpop.f32.mrb[0].mxu0
  %v2331 = vadd.f32 0.0, %v2330
  %v2332 = vpop.f32.mrb[0].mxu0
  %2333 = vmatprep.mubr.f32.mxu0 0.0
  %2334 = vmatmul.mubr.f32.gmra.mrb[0].mxu0 %v1712
  %v2335 = vpop.f32.mrb[0].mxu0
  %v2336 = vadd.f32 0.0, %v2335
  %v2337 = vpop.f32.mrb[0].mxu0
  %2338 = vdwg.mxu0
  %s2339 = scalar_lea.vmem %s7, 96
  %v2340 = vld [vmem:[%s2339] sm:$0xff]
  %v2341 = vld [vmem:[%s2339 + $0x8] sm:$0xff]
  %v2342 = vld [vmem:[%s2339 + $0x10] sm:$0xff]
  %v2343 = vld [vmem:[%s2339 + $0x18] sm:$0xff]
  %v2345 = vsel %vm1878, %v2340, 0
  %v2348 = vsel %vm1878, %v2341, 0
  %v2351 = vsel %vm1878, %v2342, 0
  %v2354 = vsel %vm1878, %v2343, 0
  %2356 = vmatprep.subr.mxu0 0.0
  %2357 = vmatpush1.msra.mxu0 %v2331
  %2358 = vmatprep.subr.mxu0 0.0
  %2359 = vmatpush1.msra.mxu0 %v2336
  %2360 = vmatprep.subr.mxu0 0.0
  %2361 = vmatpush1.msra.mxu0 0.0
  %2362 = vmatprep.subr.mxu0 0.0
  %2363 = vmatpush1.msra.mxu0 0.0
  %2364 = vmatprep.subr.mxu0 0.0
  %2365 = vmatpush1.msra.mxu0 0.0
  %2366 = vmatprep.subr.mxu0 0.0
  %2367 = vmatpush1.msra.mxu0 0.0
  %2368 = vmatprep.subr.mxu0 0.0
  %2369 = vmatpush1.msra.mxu0 0.0
  %2370 = vmatprep.subr.mxu0 0.0
  %2371 = vmatpush1.msra.mxu0 0.0
  %2372 = vmatprep.subr.mxu0 0.0
  %2373 = vmatpush1.msra.mxu0 0.0
  %2374 = vmatprep.subr.mxu0 0.0
  %2375 = vmatpush1.msra.mxu0 0.0
  %2376 = vmatprep.subr.mxu0 0.0
  %2377 = vmatpush1.msra.mxu0 0.0
  %2378 = vmatprep.subr.mxu0 0.0
  %2379 = vmatpush1.msra.mxu0 0.0
  %2380 = vmatprep.subr.mxu0 0.0
  %2381 = vmatpush1.msra.mxu0 0.0
  %2382 = vmatprep.subr.mxu0 0.0
  %2383 = vmatpush1.msra.mxu0 0.0
  %2384 = vmatprep.subr.mxu0 0.0
  %2385 = vmatpush1.msra.mxu0 0.0
  %2386 = vmatprep.subr.mxu0 0.0
  %2387 = vmatpush1.msra.mxu0 0.0
  %2388 = vmatprep.subr.mxu0 0.0
  %2389 = vmatpush1.msra.mxu0 0.0
  %2390 = vmatprep.subr.mxu0 0.0
  %2391 = vmatpush1.msra.mxu0 0.0
  %2392 = vmatprep.subr.mxu0 0.0
  %2393 = vmatpush1.msra.mxu0 0.0
  %2394 = vmatprep.subr.mxu0 0.0
  %2395 = vmatpush1.msra.mxu0 0.0
  %2396 = vmatprep.subr.mxu0 0.0
  %2397 = vmatpush1.msra.mxu0 0.0
  %2398 = vmatprep.subr.mxu0 0.0
  %2399 = vmatpush1.msra.mxu0 0.0
  %2400 = vmatprep.subr.mxu0 0.0
  %2401 = vmatpush1.msra.mxu0 0.0
  %2402 = vmatprep.subr.mxu0 0.0
  %2403 = vmatpush1.msra.mxu0 0.0
  %2404 = vmatprep.subr.mxu0 0.0
  %2405 = vmatpush1.msra.mxu0 0.0
  %2406 = vmatprep.subr.mxu0 0.0
  %2407 = vmatpush1.msra.mxu0 0.0
  %2408 = vmatprep.subr.mxu0 0.0
  %2409 = vmatpush1.msra.mxu0 0.0
  %2410 = vmatprep.subr.mxu0 0.0
  %2411 = vmatpush1.msra.mxu0 0.0
  %2412 = vmatprep.subr.mxu0 0.0
  %2413 = vmatpush1.msra.mxu0 0.0
  %2414 = vmatprep.subr.mxu0 0.0
  %2415 = vmatpush1.msra.mxu0 0.0
  %2416 = vmatprep.subr.mxu0 0.0
  %2417 = vmatpush1.msra.mxu0 0.0
  %2418 = vmatprep.subr.mxu0 0.0
  %2419 = vmatpush1.msra.mxu0 0.0
  %2420 = vmatprep.mubr.f32.mxu0 0.0
  %2421 = vmatmul.mubr.f32.gmra.mrb[0].mxu0 %v2345
  %v2422 = vpop.f32.mrb[0].mxu0
  %v2423 = vadd.f32 0.0, %v2422
  %v2424 = vpop.f32.mrb[0].mxu0
  %2425 = vmatprep.mubr.f32.mxu0 0.0
  %2426 = vmatmul.mubr.f32.gmra.mrb[0].mxu0 %v2348
  %v2427 = vpop.f32.mrb[0].mxu0
  %v2428 = vadd.f32 0.0, %v2427
  %v2429 = vpop.f32.mrb[0].mxu0
  %2430 = vmatprep.mubr.f32.mxu0 0.0
  %2431 = vmatmul.mubr.f32.gmra.mrb[0].mxu0 %v2351
  %v2432 = vpop.f32.mrb[0].mxu0
  %v2433 = vadd.f32 0.0, %v2432
  %v2434 = vpop.f32.mrb[0].mxu0
  %2435 = vmatprep.mubr.f32.mxu0 0.0
  %2436 = vmatmul.mubr.f32.gmra.mrb[0].mxu0 %v2354
  %v2437 = vpop.f32.mrb[0].mxu0
  %v2438 = vadd.f32 0.0, %v2437
  %v2439 = vpop.f32.mrb[0].mxu0
  %2440 = vdwg.mxu0
  %v2441 = vadd.f32 %v2255, %v2423
  %v2442 = vadd.f32 %v2256, %v2428
  %v2443 = vadd.f32 %v2257, %v2433
  %v2444 = vadd.f32 %v2258, %v2438
  %s2445 = scalar_lea.vmem %s6, 128
  %v2446 = vld [vmem:[%s2445] sm:$0xff]
  %v2447 = vld [vmem:[%s2445 + $0x8] sm:$0xff]
  %v2448 = vld [vmem:[%s2445 + $0x10] sm:$0xff]
  %v2449 = vld [vmem:[%s2445 + $0x18] sm:$0xff]
  %2450 = vmatprep.subr.mxu0 0.0
  %2451 = vmatpush1.msra.mxu0 %v2446
  %2452 = vmatprep.subr.mxu0 0.0
  %2453 = vmatpush1.msra.mxu0 %v2447
  %2454 = vmatprep.subr.mxu0 0.0
  %2455 = vmatpush1.msra.mxu0 %v2448
  %2456 = vmatprep.subr.mxu0 0.0
  %2457 = vmatpush1.msra.mxu0 %v2449
  %2458 = vmatprep.subr.mxu0 0.0
  %2459 = vmatpush1.msra.mxu0 0.0
  %2460 = vmatprep.subr.mxu0 0.0
  %2461 = vmatpush1.msra.mxu0 0.0
  %2462 = vmatprep.subr.mxu0 0.0
  %2463 = vmatpush1.msra.mxu0 0.0
  %2464 = vmatprep.subr.mxu0 0.0
  %2465 = vmatpush1.msra.mxu0 0.0
  %2466 = vmatprep.subr.mxu0 0.0
  %2467 = vmatpush1.msra.mxu0 0.0
  %2468 = vmatprep.subr.mxu0 0.0
  %2469 = vmatpush1.msra.mxu0 0.0
  %2470 = vmatprep.subr.mxu0 0.0
  %2471 = vmatpush1.msra.mxu0 0.0
  %2472 = vmatprep.subr.mxu0 0.0
  %2473 = vmatpush1.msra.mxu0 0.0
  %2474 = vmatprep.subr.mxu0 0.0
  %2475 = vmatpush1.msra.mxu0 0.0
  %2476 = vmatprep.subr.mxu0 0.0
  %2477 = vmatpush1.msra.mxu0 0.0
  %2478 = vmatprep.subr.mxu0 0.0
  %2479 = vmatpush1.msra.mxu0 0.0
  %2480 = vmatprep.subr.mxu0 0.0
  %2481 = vmatpush1.msra.mxu0 0.0
  %2482 = vmatprep.subr.mxu0 0.0
  %2483 = vmatpush1.msra.mxu0 0.0
  %2484 = vmatprep.subr.mxu0 0.0
  %2485 = vmatpush1.msra.mxu0 0.0
  %2486 = vmatprep.subr.mxu0 0.0
  %2487 = vmatpush1.msra.mxu0 0.0
  %2488 = vmatprep.subr.mxu0 0.0
  %2489 = vmatpush1.msra.mxu0 0.0
  %2490 = vmatprep.subr.mxu0 0.0
  %2491 = vmatpush1.msra.mxu0 0.0
  %2492 = vmatprep.subr.mxu0 0.0
  %2493 = vmatpush1.msra.mxu0 0.0
  %2494 = vmatprep.subr.mxu0 0.0
  %2495 = vmatpush1.msra.mxu0 0.0
  %2496 = vmatprep.subr.mxu0 0.0
  %2497 = vmatpush1.msra.mxu0 0.0
  %2498 = vmatprep.subr.mxu0 0.0
  %2499 = vmatpush1.msra.mxu0 0.0
  %2500 = vmatprep.subr.mxu0 0.0
  %2501 = vmatpush1.msra.mxu0 0.0
  %2502 = vmatprep.subr.mxu0 0.0
  %2503 = vmatpush1.msra.mxu0 0.0
  %2504 = vmatprep.subr.mxu0 0.0
  %2505 = vmatpush1.msra.mxu0 0.0
  %2506 = vmatprep.subr.mxu0 0.0
  %2507 = vmatpush1.msra.mxu0 0.0
  %2508 = vmatprep.subr.mxu0 0.0
  %2509 = vmatpush1.msra.mxu0 0.0
  %2510 = vmatprep.subr.mxu0 0.0
  %2511 = vmatpush1.msra.mxu0 0.0
  %2512 = vmatprep.subr.mxu0 0.0
  %2513 = vmatpush1.msra.mxu0 0.0
  %2514 = vmatprep.mubr.f32.mxu0 0.0
  %2515 = vmatmul.mubr.f32.gmra.mrb[0].mxu0 %v1709
  %v2516 = vpop.f32.mrb[0].mxu0
  %v2517 = vadd.f32 0.0, %v2516
  %v2518 = vpop.f32.mrb[0].mxu0
  %2519 = vmatprep.mubr.f32.mxu0 0.0
  %2520 = vmatmul.mubr.f32.gmra.mrb[0].mxu0 %v1712
  %v2521 = vpop.f32.mrb[0].mxu0
  %v2522 = vadd.f32 0.0, %v2521
  %v2523 = vpop.f32.mrb[0].mxu0
  %2524 = vdwg.mxu0
  %s2525 = scalar_lea.vmem %s7, 128
  %v2526 = vld [vmem:[%s2525] sm:$0xff]
  %v2527 = vld [vmem:[%s2525 + $0x8] sm:$0xff]
  %v2528 = vld [vmem:[%s2525 + $0x10] sm:$0xff]
  %v2529 = vld [vmem:[%s2525 + $0x18] sm:$0xff]
  %v2531 = vsel %vm1878, %v2526, 0
  %v2534 = vsel %vm1878, %v2527, 0
  %v2537 = vsel %vm1878, %v2528, 0
  %v2540 = vsel %vm1878, %v2529, 0
  %2542 = vmatprep.subr.mxu0 0.0
  %2543 = vmatpush1.msra.mxu0 %v2517
  %2544 = vmatprep.subr.mxu0 0.0
  %2545 = vmatpush1.msra.mxu0 %v2522
  %2546 = vmatprep.subr.mxu0 0.0
  %2547 = vmatpush1.msra.mxu0 0.0
  %2548 = vmatprep.subr.mxu0 0.0
  %2549 = vmatpush1.msra.mxu0 0.0
  %2550 = vmatprep.subr.mxu0 0.0
  %2551 = vmatpush1.msra.mxu0 0.0
  %2552 = vmatprep.subr.mxu0 0.0
  %2553 = vmatpush1.msra.mxu0 0.0
  %2554 = vmatprep.subr.mxu0 0.0
  %2555 = vmatpush1.msra.mxu0 0.0
  %2556 = vmatprep.subr.mxu0 0.0
  %2557 = vmatpush1.msra.mxu0 0.0
  %2558 = vmatprep.subr.mxu0 0.0
  %2559 = vmatpush1.msra.mxu0 0.0
  %2560 = vmatprep.subr.mxu0 0.0
  %2561 = vmatpush1.msra.mxu0 0.0
  %2562 = vmatprep.subr.mxu0 0.0
  %2563 = vmatpush1.msra.mxu0 0.0
  %2564 = vmatprep.subr.mxu0 0.0
  %2565 = vmatpush1.msra.mxu0 0.0
  %2566 = vmatprep.subr.mxu0 0.0
  %2567 = vmatpush1.msra.mxu0 0.0
  %2568 = vmatprep.subr.mxu0 0.0
  %2569 = vmatpush1.msra.mxu0 0.0
  %2570 = vmatprep.subr.mxu0 0.0
  %2571 = vmatpush1.msra.mxu0 0.0
  %2572 = vmatprep.subr.mxu0 0.0
  %2573 = vmatpush1.msra.mxu0 0.0
  %2574 = vmatprep.subr.mxu0 0.0
  %2575 = vmatpush1.msra.mxu0 0.0
  %2576 = vmatprep.subr.mxu0 0.0
  %2577 = vmatpush1.msra.mxu0 0.0
  %2578 = vmatprep.subr.mxu0 0.0
  %2579 = vmatpush1.msra.mxu0 0.0
  %2580 = vmatprep.subr.mxu0 0.0
  %2581 = vmatpush1.msra.mxu0 0.0
  %2582 = vmatprep.subr.mxu0 0.0
  %2583 = vmatpush1.msra.mxu0 0.0
  %2584 = vmatprep.subr.mxu0 0.0
  %2585 = vmatpush1.msra.mxu0 0.0
  %2586 = vmatprep.subr.mxu0 0.0
  %2587 = vmatpush1.msra.mxu0 0.0
  %2588 = vmatprep.subr.mxu0 0.0
  %2589 = vmatpush1.msra.mxu0 0.0
  %2590 = vmatprep.subr.mxu0 0.0
  %2591 = vmatpush1.msra.mxu0 0.0
  %2592 = vmatprep.subr.mxu0 0.0
  %2593 = vmatpush1.msra.mxu0 0.0
  %2594 = vmatprep.subr.mxu0 0.0
  %2595 = vmatpush1.msra.mxu0 0.0
  %2596 = vmatprep.subr.mxu0 0.0
  %2597 = vmatpush1.msra.mxu0 0.0
  %2598 = vmatprep.subr.mxu0 0.0
  %2599 = vmatpush1.msra.mxu0 0.0
  %2600 = vmatprep.subr.mxu0 0.0
  %2601 = vmatpush1.msra.mxu0 0.0
  %2602 = vmatprep.subr.mxu0 0.0
  %2603 = vmatpush1.msra.mxu0 0.0
  %2604 = vmatprep.subr.mxu0 0.0
  %2605 = vmatpush1.msra.mxu0 0.0
  %2606 = vmatprep.mubr.f32.mxu0 0.0
  %2607 = vmatmul.mubr.f32.gmra.mrb[0].mxu0 %v2531
  %v2608 = vpop.f32.mrb[0].mxu0
  %v2609 = vadd.f32 0.0, %v2608
  %v2610 = vpop.f32.mrb[0].mxu0
  %2611 = vmatprep.mubr.f32.mxu0 0.0
  %2612 = vmatmul.mubr.f32.gmra.mrb[0].mxu0 %v2534
  %v2613 = vpop.f32.mrb[0].mxu0
  %v2614 = vadd.f32 0.0, %v2613
  %v2615 = vpop.f32.mrb[0].mxu0
  %2616 = vmatprep.mubr.f32.mxu0 0.0
  %2617 = vmatmul.mubr.f32.gmra.mrb[0].mxu0 %v2537
  %v2618 = vpop.f32.mrb[0].mxu0
  %v2619 = vadd.f32 0.0, %v2618
  %v2620 = vpop.f32.mrb[0].mxu0
  %2621 = vmatprep.mubr.f32.mxu0 0.0
  %2622 = vmatmul.mubr.f32.gmra.mrb[0].mxu0 %v2540
  %v2623 = vpop.f32.mrb[0].mxu0
  %v2624 = vadd.f32 0.0, %v2623
  %v2625 = vpop.f32.mrb[0].mxu0
  %2626 = vdwg.mxu0
  %v2627 = vadd.f32 %v2441, %v2609
  %v2628 = vadd.f32 %v2442, %v2614
  %v2629 = vadd.f32 %v2443, %v2619
  %v2630 = vadd.f32 %v2444, %v2624
  %s2631 = scalar_lea.vmem %s6, 160
  %v2632 = vld [vmem:[%s2631] sm:$0xff]
  %v2633 = vld [vmem:[%s2631 + $0x8] sm:$0xff]
  %v2634 = vld [vmem:[%s2631 + $0x10] sm:$0xff]
  %v2635 = vld [vmem:[%s2631 + $0x18] sm:$0xff]
  %2636 = vmatprep.subr.mxu0 0.0
  %2637 = vmatpush1.msra.mxu0 %v2632
  %2638 = vmatprep.subr.mxu0 0.0
  %2639 = vmatpush1.msra.mxu0 %v2633
  %2640 = vmatprep.subr.mxu0 0.0
  %2641 = vmatpush1.msra.mxu0 %v2634
  %2642 = vmatprep.subr.mxu0 0.0
  %2643 = vmatpush1.msra.mxu0 %v2635
  %2644 = vmatprep.subr.mxu0 0.0
  %2645 = vmatpush1.msra.mxu0 0.0
  %2646 = vmatprep.subr.mxu0 0.0
  %2647 = vmatpush1.msra.mxu0 0.0
  %2648 = vmatprep.subr.mxu0 0.0
  %2649 = vmatpush1.msra.mxu0 0.0
  %2650 = vmatprep.subr.mxu0 0.0
  %2651 = vmatpush1.msra.mxu0 0.0
  %2652 = vmatprep.subr.mxu0 0.0
  %2653 = vmatpush1.msra.mxu0 0.0
  %2654 = vmatprep.subr.mxu0 0.0
  %2655 = vmatpush1.msra.mxu0 0.0
  %2656 = vmatprep.subr.mxu0 0.0
  %2657 = vmatpush1.msra.mxu0 0.0
  %2658 = vmatprep.subr.mxu0 0.0
  %2659 = vmatpush1.msra.mxu0 0.0
  %2660 = vmatprep.subr.mxu0 0.0
  %2661 = vmatpush1.msra.mxu0 0.0
  %2662 = vmatprep.subr.mxu0 0.0
  %2663 = vmatpush1.msra.mxu0 0.0
  %2664 = vmatprep.subr.mxu0 0.0
  %2665 = vmatpush1.msra.mxu0 0.0
  %2666 = vmatprep.subr.mxu0 0.0
  %2667 = vmatpush1.msra.mxu0 0.0
  %2668 = vmatprep.subr.mxu0 0.0
  %2669 = vmatpush1.msra.mxu0 0.0
  %2670 = vmatprep.subr.mxu0 0.0
  %2671 = vmatpush1.msra.mxu0 0.0
  %2672 = vmatprep.subr.mxu0 0.0
  %2673 = vmatpush1.msra.mxu0 0.0
  %2674 = vmatprep.subr.mxu0 0.0
  %2675 = vmatpush1.msra.mxu0 0.0
  %2676 = vmatprep.subr.mxu0 0.0
  %2677 = vmatpush1.msra.mxu0 0.0
  %2678 = vmatprep.subr.mxu0 0.0
  %2679 = vmatpush1.msra.mxu0 0.0
  %2680 = vmatprep.subr.mxu0 0.0
  %2681 = vmatpush1.msra.mxu0 0.0
  %2682 = vmatprep.subr.mxu0 0.0
  %2683 = vmatpush1.msra.mxu0 0.0
  %2684 = vmatprep.subr.mxu0 0.0
  %2685 = vmatpush1.msra.mxu0 0.0
  %2686 = vmatprep.subr.mxu0 0.0
  %2687 = vmatpush1.msra.mxu0 0.0
  %2688 = vmatprep.subr.mxu0 0.0
  %2689 = vmatpush1.msra.mxu0 0.0
  %2690 = vmatprep.subr.mxu0 0.0
  %2691 = vmatpush1.msra.mxu0 0.0
  %2692 = vmatprep.subr.mxu0 0.0
  %2693 = vmatpush1.msra.mxu0 0.0
  %2694 = vmatprep.subr.mxu0 0.0
  %2695 = vmatpush1.msra.mxu0 0.0
  %2696 = vmatprep.subr.mxu0 0.0
  %2697 = vmatpush1.msra.mxu0 0.0
  %2698 = vmatprep.subr.mxu0 0.0
  %2699 = vmatpush1.msra.mxu0 0.0
  %2700 = vmatprep.mubr.f32.mxu0 0.0
  %2701 = vmatmul.mubr.f32.gmra.mrb[0].mxu0 %v1709
  %v2702 = vpop.f32.mrb[0].mxu0
  %v2703 = vadd.f32 0.0, %v2702
  %v2704 = vpop.f32.mrb[0].mxu0
  %2705 = vmatprep.mubr.f32.mxu0 0.0
  %2706 = vmatmul.mubr.f32.gmra.mrb[0].mxu0 %v1712
  %v2707 = vpop.f32.mrb[0].mxu0
  %v2708 = vadd.f32 0.0, %v2707
  %v2709 = vpop.f32.mrb[0].mxu0
  %2710 = vdwg.mxu0
  %s2711 = scalar_lea.vmem %s7, 160
  %v2712 = vld [vmem:[%s2711] sm:$0xff]
  %v2713 = vld [vmem:[%s2711 + $0x8] sm:$0xff]
  %v2714 = vld [vmem:[%s2711 + $0x10] sm:$0xff]
  %v2715 = vld [vmem:[%s2711 + $0x18] sm:$0xff]
  %v2717 = vsel %vm1878, %v2712, 0
  %v2720 = vsel %vm1878, %v2713, 0
  %v2723 = vsel %vm1878, %v2714, 0
  %v2726 = vsel %vm1878, %v2715, 0
  %2728 = vmatprep.subr.mxu0 0.0
  %2729 = vmatpush1.msra.mxu0 %v2703
  %2730 = vmatprep.subr.mxu0 0.0
  %2731 = vmatpush1.msra.mxu0 %v2708
  %2732 = vmatprep.subr.mxu0 0.0
  %2733 = vmatpush1.msra.mxu0 0.0
  %2734 = vmatprep.subr.mxu0 0.0
  %2735 = vmatpush1.msra.mxu0 0.0
  %2736 = vmatprep.subr.mxu0 0.0
  %2737 = vmatpush1.msra.mxu0 0.0
  %2738 = vmatprep.subr.mxu0 0.0
  %2739 = vmatpush1.msra.mxu0 0.0
  %2740 = vmatprep.subr.mxu0 0.0
  %2741 = vmatpush1.msra.mxu0 0.0
  %2742 = vmatprep.subr.mxu0 0.0
  %2743 = vmatpush1.msra.mxu0 0.0
  %2744 = vmatprep.subr.mxu0 0.0
  %2745 = vmatpush1.msra.mxu0 0.0
  %2746 = vmatprep.subr.mxu0 0.0
  %2747 = vmatpush1.msra.mxu0 0.0
  %2748 = vmatprep.subr.mxu0 0.0
  %2749 = vmatpush1.msra.mxu0 0.0
  %2750 = vmatprep.subr.mxu0 0.0
  %2751 = vmatpush1.msra.mxu0 0.0
  %2752 = vmatprep.subr.mxu0 0.0
  %2753 = vmatpush1.msra.mxu0 0.0
  %2754 = vmatprep.subr.mxu0 0.0
  %2755 = vmatpush1.msra.mxu0 0.0
  %2756 = vmatprep.subr.mxu0 0.0
  %2757 = vmatpush1.msra.mxu0 0.0
  %2758 = vmatprep.subr.mxu0 0.0
  %2759 = vmatpush1.msra.mxu0 0.0
  %2760 = vmatprep.subr.mxu0 0.0
  %2761 = vmatpush1.msra.mxu0 0.0
  %2762 = vmatprep.subr.mxu0 0.0
  %2763 = vmatpush1.msra.mxu0 0.0
  %2764 = vmatprep.subr.mxu0 0.0
  %2765 = vmatpush1.msra.mxu0 0.0
  %2766 = vmatprep.subr.mxu0 0.0
  %2767 = vmatpush1.msra.mxu0 0.0
  %2768 = vmatprep.subr.mxu0 0.0
  %2769 = vmatpush1.msra.mxu0 0.0
  %2770 = vmatprep.subr.mxu0 0.0
  %2771 = vmatpush1.msra.mxu0 0.0
  %2772 = vmatprep.subr.mxu0 0.0
  %2773 = vmatpush1.msra.mxu0 0.0
  %2774 = vmatprep.subr.mxu0 0.0
  %2775 = vmatpush1.msra.mxu0 0.0
  %2776 = vmatprep.subr.mxu0 0.0
  %2777 = vmatpush1.msra.mxu0 0.0
  %2778 = vmatprep.subr.mxu0 0.0
  %2779 = vmatpush1.msra.mxu0 0.0
  %2780 = vmatprep.subr.mxu0 0.0
  %2781 = vmatpush1.msra.mxu0 0.0
  %2782 = vmatprep.subr.mxu0 0.0
  %2783 = vmatpush1.msra.mxu0 0.0
  %2784 = vmatprep.subr.mxu0 0.0
  %2785 = vmatpush1.msra.mxu0 0.0
  %2786 = vmatprep.subr.mxu0 0.0
  %2787 = vmatpush1.msra.mxu0 0.0
  %2788 = vmatprep.subr.mxu0 0.0
  %2789 = vmatpush1.msra.mxu0 0.0
  %2790 = vmatprep.subr.mxu0 0.0
  %2791 = vmatpush1.msra.mxu0 0.0
  %2792 = vmatprep.mubr.f32.mxu0 0.0
  %2793 = vmatmul.mubr.f32.gmra.mrb[0].mxu0 %v2717
  %v2794 = vpop.f32.mrb[0].mxu0
  %v2795 = vadd.f32 0.0, %v2794
  %v2796 = vpop.f32.mrb[0].mxu0
  %2797 = vmatprep.mubr.f32.mxu0 0.0
  %2798 = vmatmul.mubr.f32.gmra.mrb[0].mxu0 %v2720
  %v2799 = vpop.f32.mrb[0].mxu0
  %v2800 = vadd.f32 0.0, %v2799
  %v2801 = vpop.f32.mrb[0].mxu0
  %2802 = vmatprep.mubr.f32.mxu0 0.0
  %2803 = vmatmul.mubr.f32.gmra.mrb[0].mxu0 %v2723
  %v2804 = vpop.f32.mrb[0].mxu0
  %v2805 = vadd.f32 0.0, %v2804
  %v2806 = vpop.f32.mrb[0].mxu0
  %2807 = vmatprep.mubr.f32.mxu0 0.0
  %2808 = vmatmul.mubr.f32.gmra.mrb[0].mxu0 %v2726
  %v2809 = vpop.f32.mrb[0].mxu0
  %v2810 = vadd.f32 0.0, %v2809
  %v2811 = vpop.f32.mrb[0].mxu0
  %2812 = vdwg.mxu0
  %v2813 = vadd.f32 %v2627, %v2795
  %v2814 = vadd.f32 %v2628, %v2800
  %v2815 = vadd.f32 %v2629, %v2805
  %v2816 = vadd.f32 %v2630, %v2810
  %s2817 = scalar_lea.vmem %s6, 192
  %v2818 = vld [vmem:[%s2817] sm:$0xff]
  %v2819 = vld [vmem:[%s2817 + $0x8] sm:$0xff]
  %v2820 = vld [vmem:[%s2817 + $0x10] sm:$0xff]
  %v2821 = vld [vmem:[%s2817 + $0x18] sm:$0xff]
  %2822 = vmatprep.subr.mxu0 0.0
  %2823 = vmatpush1.msra.mxu0 %v2818
  %2824 = vmatprep.subr.mxu0 0.0
  %2825 = vmatpush1.msra.mxu0 %v2819
  %2826 = vmatprep.subr.mxu0 0.0
  %2827 = vmatpush1.msra.mxu0 %v2820
  %2828 = vmatprep.subr.mxu0 0.0
  %2829 = vmatpush1.msra.mxu0 %v2821
  %2830 = vmatprep.subr.mxu0 0.0
  %2831 = vmatpush1.msra.mxu0 0.0
  %2832 = vmatprep.subr.mxu0 0.0
  %2833 = vmatpush1.msra.mxu0 0.0
  %2834 = vmatprep.subr.mxu0 0.0
  %2835 = vmatpush1.msra.mxu0 0.0
  %2836 = vmatprep.subr.mxu0 0.0
  %2837 = vmatpush1.msra.mxu0 0.0
  %2838 = vmatprep.subr.mxu0 0.0
  %2839 = vmatpush1.msra.mxu0 0.0
  %2840 = vmatprep.subr.mxu0 0.0
  %2841 = vmatpush1.msra.mxu0 0.0
  %2842 = vmatprep.subr.mxu0 0.0
  %2843 = vmatpush1.msra.mxu0 0.0
  %2844 = vmatprep.subr.mxu0 0.0
  %2845 = vmatpush1.msra.mxu0 0.0
  %2846 = vmatprep.subr.mxu0 0.0
  %2847 = vmatpush1.msra.mxu0 0.0
  %2848 = vmatprep.subr.mxu0 0.0
  %2849 = vmatpush1.msra.mxu0 0.0
  %2850 = vmatprep.subr.mxu0 0.0
  %2851 = vmatpush1.msra.mxu0 0.0
  %2852 = vmatprep.subr.mxu0 0.0
  %2853 = vmatpush1.msra.mxu0 0.0
  %2854 = vmatprep.subr.mxu0 0.0
  %2855 = vmatpush1.msra.mxu0 0.0
  %2856 = vmatprep.subr.mxu0 0.0
  %2857 = vmatpush1.msra.mxu0 0.0
  %2858 = vmatprep.subr.mxu0 0.0
  %2859 = vmatpush1.msra.mxu0 0.0
  %2860 = vmatprep.subr.mxu0 0.0
  %2861 = vmatpush1.msra.mxu0 0.0
  %2862 = vmatprep.subr.mxu0 0.0
  %2863 = vmatpush1.msra.mxu0 0.0
  %2864 = vmatprep.subr.mxu0 0.0
  %2865 = vmatpush1.msra.mxu0 0.0
  %2866 = vmatprep.subr.mxu0 0.0
  %2867 = vmatpush1.msra.mxu0 0.0
  %2868 = vmatprep.subr.mxu0 0.0
  %2869 = vmatpush1.msra.mxu0 0.0
  %2870 = vmatprep.subr.mxu0 0.0
  %2871 = vmatpush1.msra.mxu0 0.0
  %2872 = vmatprep.subr.mxu0 0.0
  %2873 = vmatpush1.msra.mxu0 0.0
  %2874 = vmatprep.subr.mxu0 0.0
  %2875 = vmatpush1.msra.mxu0 0.0
  %2876 = vmatprep.subr.mxu0 0.0
  %2877 = vmatpush1.msra.mxu0 0.0
  %2878 = vmatprep.subr.mxu0 0.0
  %2879 = vmatpush1.msra.mxu0 0.0
  %2880 = vmatprep.subr.mxu0 0.0
  %2881 = vmatpush1.msra.mxu0 0.0
  %2882 = vmatprep.subr.mxu0 0.0
  %2883 = vmatpush1.msra.mxu0 0.0
  %2884 = vmatprep.subr.mxu0 0.0
  %2885 = vmatpush1.msra.mxu0 0.0
  %2886 = vmatprep.mubr.f32.mxu0 0.0
  %2887 = vmatmul.mubr.f32.gmra.mrb[0].mxu0 %v1709
  %v2888 = vpop.f32.mrb[0].mxu0
  %v2889 = vadd.f32 0.0, %v2888
  %v2890 = vpop.f32.mrb[0].mxu0
  %2891 = vmatprep.mubr.f32.mxu0 0.0
  %2892 = vmatmul.mubr.f32.gmra.mrb[0].mxu0 %v1712
  %v2893 = vpop.f32.mrb[0].mxu0
  %v2894 = vadd.f32 0.0, %v2893
  %v2895 = vpop.f32.mrb[0].mxu0
  %2896 = vdwg.mxu0
  %s2897 = scalar_lea.vmem %s7, 192
  %v2898 = vld [vmem:[%s2897] sm:$0xff]
  %v2899 = vld [vmem:[%s2897 + $0x8] sm:$0xff]
  %v2900 = vld [vmem:[%s2897 + $0x10] sm:$0xff]
  %v2901 = vld [vmem:[%s2897 + $0x18] sm:$0xff]
  %v2903 = vsel %vm1878, %v2898, 0
  %v2906 = vsel %vm1878, %v2899, 0
  %v2909 = vsel %vm1878, %v2900, 0
  %v2912 = vsel %vm1878, %v2901, 0
  %2914 = vmatprep.subr.mxu0 0.0
  %2915 = vmatpush1.msra.mxu0 %v2889
  %2916 = vmatprep.subr.mxu0 0.0
  %2917 = vmatpush1.msra.mxu0 %v2894
  %2918 = vmatprep.subr.mxu0 0.0
  %2919 = vmatpush1.msra.mxu0 0.0
  %2920 = vmatprep.subr.mxu0 0.0
  %2921 = vmatpush1.msra.mxu0 0.0
  %2922 = vmatprep.subr.mxu0 0.0
  %2923 = vmatpush1.msra.mxu0 0.0
  %2924 = vmatprep.subr.mxu0 0.0
  %2925 = vmatpush1.msra.mxu0 0.0
  %2926 = vmatprep.subr.mxu0 0.0
  %2927 = vmatpush1.msra.mxu0 0.0
  %2928 = vmatprep.subr.mxu0 0.0
  %2929 = vmatpush1.msra.mxu0 0.0
  %2930 = vmatprep.subr.mxu0 0.0
  %2931 = vmatpush1.msra.mxu0 0.0
  %2932 = vmatprep.subr.mxu0 0.0
  %2933 = vmatpush1.msra.mxu0 0.0
  %2934 = vmatprep.subr.mxu0 0.0
  %2935 = vmatpush1.msra.mxu0 0.0
  %2936 = vmatprep.subr.mxu0 0.0
  %2937 = vmatpush1.msra.mxu0 0.0
  %2938 = vmatprep.subr.mxu0 0.0
  %2939 = vmatpush1.msra.mxu0 0.0
  %2940 = vmatprep.subr.mxu0 0.0
  %2941 = vmatpush1.msra.mxu0 0.0
  %2942 = vmatprep.subr.mxu0 0.0
  %2943 = vmatpush1.msra.mxu0 0.0
  %2944 = vmatprep.subr.mxu0 0.0
  %2945 = vmatpush1.msra.mxu0 0.0
  %2946 = vmatprep.subr.mxu0 0.0
  %2947 = vmatpush1.msra.mxu0 0.0
  %2948 = vmatprep.subr.mxu0 0.0
  %2949 = vmatpush1.msra.mxu0 0.0
  %2950 = vmatprep.subr.mxu0 0.0
  %2951 = vmatpush1.msra.mxu0 0.0
  %2952 = vmatprep.subr.mxu0 0.0
  %2953 = vmatpush1.msra.mxu0 0.0
  %2954 = vmatprep.subr.mxu0 0.0
  %2955 = vmatpush1.msra.mxu0 0.0
  %2956 = vmatprep.subr.mxu0 0.0
  %2957 = vmatpush1.msra.mxu0 0.0
  %2958 = vmatprep.subr.mxu0 0.0
  %2959 = vmatpush1.msra.mxu0 0.0
  %2960 = vmatprep.subr.mxu0 0.0
  %2961 = vmatpush1.msra.mxu0 0.0
  %2962 = vmatprep.subr.mxu0 0.0
  %2963 = vmatpush1.msra.mxu0 0.0
  %2964 = vmatprep.subr.mxu0 0.0
  %2965 = vmatpush1.msra.mxu0 0.0
  %2966 = vmatprep.subr.mxu0 0.0
  %2967 = vmatpush1.msra.mxu0 0.0
  %2968 = vmatprep.subr.mxu0 0.0
  %2969 = vmatpush1.msra.mxu0 0.0
  %2970 = vmatprep.subr.mxu0 0.0
  %2971 = vmatpush1.msra.mxu0 0.0
  %2972 = vmatprep.subr.mxu0 0.0
  %2973 = vmatpush1.msra.mxu0 0.0
  %2974 = vmatprep.subr.mxu0 0.0
  %2975 = vmatpush1.msra.mxu0 0.0
  %2976 = vmatprep.subr.mxu0 0.0
  %2977 = vmatpush1.msra.mxu0 0.0
  %2978 = vmatprep.mubr.f32.mxu0 0.0
  %2979 = vmatmul.mubr.f32.gmra.mrb[0].mxu0 %v2903
  %v2980 = vpop.f32.mrb[0].mxu0
  %v2981 = vadd.f32 0.0, %v2980
  %v2982 = vpop.f32.mrb[0].mxu0
  %2983 = vmatprep.mubr.f32.mxu0 0.0
  %2984 = vmatmul.mubr.f32.gmra.mrb[0].mxu0 %v2906
  %v2985 = vpop.f32.mrb[0].mxu0
  %v2986 = vadd.f32 0.0, %v2985
  %v2987 = vpop.f32.mrb[0].mxu0
  %2988 = vmatprep.mubr.f32.mxu0 0.0
  %2989 = vmatmul.mubr.f32.gmra.mrb[0].mxu0 %v2909
  %v2990 = vpop.f32.mrb[0].mxu0
  %v2991 = vadd.f32 0.0, %v2990
  %v2992 = vpop.f32.mrb[0].mxu0
  %2993 = vmatprep.mubr.f32.mxu0 0.0
  %2994 = vmatmul.mubr.f32.gmra.mrb[0].mxu0 %v2912
  %v2995 = vpop.f32.mrb[0].mxu0
  %v2996 = vadd.f32 0.0, %v2995
  %v2997 = vpop.f32.mrb[0].mxu0
  %2998 = vdwg.mxu0
  %v2999 = vadd.f32 %v2813, %v2981
  %v3000 = vadd.f32 %v2814, %v2986
  %v3001 = vadd.f32 %v2815, %v2991
  %v3002 = vadd.f32 %v2816, %v2996
  %s3003 = scalar_lea.vmem %s6, 224
  %v3004 = vld [vmem:[%s3003] sm:$0xff]
  %v3005 = vld [vmem:[%s3003 + $0x8] sm:$0xff]
  %v3006 = vld [vmem:[%s3003 + $0x10] sm:$0xff]
  %v3007 = vld [vmem:[%s3003 + $0x18] sm:$0xff]
  %3008 = vmatprep.subr.mxu0 0.0
  %3009 = vmatpush1.msra.mxu0 %v3004
  %3010 = vmatprep.subr.mxu0 0.0
  %3011 = vmatpush1.msra.mxu0 %v3005
  %3012 = vmatprep.subr.mxu0 0.0
  %3013 = vmatpush1.msra.mxu0 %v3006
  %3014 = vmatprep.subr.mxu0 0.0
  %3015 = vmatpush1.msra.mxu0 %v3007
  %3016 = vmatprep.subr.mxu0 0.0
  %3017 = vmatpush1.msra.mxu0 0.0
  %3018 = vmatprep.subr.mxu0 0.0
  %3019 = vmatpush1.msra.mxu0 0.0
  %3020 = vmatprep.subr.mxu0 0.0
  %3021 = vmatpush1.msra.mxu0 0.0
  %3022 = vmatprep.subr.mxu0 0.0
  %3023 = vmatpush1.msra.mxu0 0.0
  %3024 = vmatprep.subr.mxu0 0.0
  %3025 = vmatpush1.msra.mxu0 0.0
  %3026 = vmatprep.subr.mxu0 0.0
  %3027 = vmatpush1.msra.mxu0 0.0
  %3028 = vmatprep.subr.mxu0 0.0
  %3029 = vmatpush1.msra.mxu0 0.0
  %3030 = vmatprep.subr.mxu0 0.0
  %3031 = vmatpush1.msra.mxu0 0.0
  %3032 = vmatprep.subr.mxu0 0.0
  %3033 = vmatpush1.msra.mxu0 0.0
  %3034 = vmatprep.subr.mxu0 0.0
  %3035 = vmatpush1.msra.mxu0 0.0
  %3036 = vmatprep.subr.mxu0 0.0
  %3037 = vmatpush1.msra.mxu0 0.0
  %3038 = vmatprep.subr.mxu0 0.0
  %3039 = vmatpush1.msra.mxu0 0.0
  %3040 = vmatprep.subr.mxu0 0.0
  %3041 = vmatpush1.msra.mxu0 0.0
  %3042 = vmatprep.subr.mxu0 0.0
  %3043 = vmatpush1.msra.mxu0 0.0
  %3044 = vmatprep.subr.mxu0 0.0
  %3045 = vmatpush1.msra.mxu0 0.0
  %3046 = vmatprep.subr.mxu0 0.0
  %3047 = vmatpush1.msra.mxu0 0.0
  %3048 = vmatprep.subr.mxu0 0.0
  %3049 = vmatpush1.msra.mxu0 0.0
  %3050 = vmatprep.subr.mxu0 0.0
  %3051 = vmatpush1.msra.mxu0 0.0
  %3052 = vmatprep.subr.mxu0 0.0
  %3053 = vmatpush1.msra.mxu0 0.0
  %3054 = vmatprep.subr.mxu0 0.0
  %3055 = vmatpush1.msra.mxu0 0.0
  %3056 = vmatprep.subr.mxu0 0.0
  %3057 = vmatpush1.msra.mxu0 0.0
  %3058 = vmatprep.subr.mxu0 0.0
  %3059 = vmatpush1.msra.mxu0 0.0
  %3060 = vmatprep.subr.mxu0 0.0
  %3061 = vmatpush1.msra.mxu0 0.0
  %3062 = vmatprep.subr.mxu0 0.0
  %3063 = vmatpush1.msra.mxu0 0.0
  %3064 = vmatprep.subr.mxu0 0.0
  %3065 = vmatpush1.msra.mxu0 0.0
  %3066 = vmatprep.subr.mxu0 0.0
  %3067 = vmatpush1.msra.mxu0 0.0
  %3068 = vmatprep.subr.mxu0 0.0
  %3069 = vmatpush1.msra.mxu0 0.0
  %3070 = vmatprep.subr.mxu0 0.0
  %3071 = vmatpush1.msra.mxu0 0.0
  %3072 = vmatprep.mubr.f32.mxu0 0.0
  %3073 = vmatmul.mubr.f32.gmra.mrb[0].mxu0 %v1709
  %v3074 = vpop.f32.mrb[0].mxu0
  %v3075 = vadd.f32 0.0, %v3074
  %v3076 = vpop.f32.mrb[0].mxu0
  %3077 = vmatprep.mubr.f32.mxu0 0.0
  %3078 = vmatmul.mubr.f32.gmra.mrb[0].mxu0 %v1712
  %v3079 = vpop.f32.mrb[0].mxu0
  %v3080 = vadd.f32 0.0, %v3079
  %v3081 = vpop.f32.mrb[0].mxu0
  %3082 = vdwg.mxu0
  %s3083 = scalar_lea.vmem %s7, 224
  %v3084 = vld [vmem:[%s3083] sm:$0xff]
  %v3085 = vld [vmem:[%s3083 + $0x8] sm:$0xff]
  %v3086 = vld [vmem:[%s3083 + $0x10] sm:$0xff]
  %v3087 = vld [vmem:[%s3083 + $0x18] sm:$0xff]
  %v3089 = vsel %vm1878, %v3084, 0
  %v3092 = vsel %vm1878, %v3085, 0
  %v3095 = vsel %vm1878, %v3086, 0
  %v3098 = vsel %vm1878, %v3087, 0
  %3100 = vmatprep.subr.mxu0 0.0
  %3101 = vmatpush1.msra.mxu0 %v3075
  %3102 = vmatprep.subr.mxu0 0.0
  %3103 = vmatpush1.msra.mxu0 %v3080
  %3104 = vmatprep.subr.mxu0 0.0
  %3105 = vmatpush1.msra.mxu0 0.0
  %3106 = vmatprep.subr.mxu0 0.0
  %3107 = vmatpush1.msra.mxu0 0.0
  %3108 = vmatprep.subr.mxu0 0.0
  %3109 = vmatpush1.msra.mxu0 0.0
  %3110 = vmatprep.subr.mxu0 0.0
  %3111 = vmatpush1.msra.mxu0 0.0
  %3112 = vmatprep.subr.mxu0 0.0
  %3113 = vmatpush1.msra.mxu0 0.0
  %3114 = vmatprep.subr.mxu0 0.0
  %3115 = vmatpush1.msra.mxu0 0.0
  %3116 = vmatprep.subr.mxu0 0.0
  %3117 = vmatpush1.msra.mxu0 0.0
  %3118 = vmatprep.subr.mxu0 0.0
  %3119 = vmatpush1.msra.mxu0 0.0
  %3120 = vmatprep.subr.mxu0 0.0
  %3121 = vmatpush1.msra.mxu0 0.0
  %3122 = vmatprep.subr.mxu0 0.0
  %3123 = vmatpush1.msra.mxu0 0.0
  %3124 = vmatprep.subr.mxu0 0.0
  %3125 = vmatpush1.msra.mxu0 0.0
  %3126 = vmatprep.subr.mxu0 0.0
  %3127 = vmatpush1.msra.mxu0 0.0
  %3128 = vmatprep.subr.mxu0 0.0
  %3129 = vmatpush1.msra.mxu0 0.0
  %3130 = vmatprep.subr.mxu0 0.0
  %3131 = vmatpush1.msra.mxu0 0.0
  %3132 = vmatprep.subr.mxu0 0.0
  %3133 = vmatpush1.msra.mxu0 0.0
  %3134 = vmatprep.subr.mxu0 0.0
  %3135 = vmatpush1.msra.mxu0 0.0
  %3136 = vmatprep.subr.mxu0 0.0
  %3137 = vmatpush1.msra.mxu0 0.0
  %3138 = vmatprep.subr.mxu0 0.0
  %3139 = vmatpush1.msra.mxu0 0.0
  %3140 = vmatprep.subr.mxu0 0.0
  %3141 = vmatpush1.msra.mxu0 0.0
  %3142 = vmatprep.subr.mxu0 0.0
  %3143 = vmatpush1.msra.mxu0 0.0
  %3144 = vmatprep.subr.mxu0 0.0
  %3145 = vmatpush1.msra.mxu0 0.0
  %3146 = vmatprep.subr.mxu0 0.0
  %3147 = vmatpush1.msra.mxu0 0.0
  %3148 = vmatprep.subr.mxu0 0.0
  %3149 = vmatpush1.msra.mxu0 0.0
  %3150 = vmatprep.subr.mxu0 0.0
  %3151 = vmatpush1.msra.mxu0 0.0
  %3152 = vmatprep.subr.mxu0 0.0
  %3153 = vmatpush1.msra.mxu0 0.0
  %3154 = vmatprep.subr.mxu0 0.0
  %3155 = vmatpush1.msra.mxu0 0.0
  %3156 = vmatprep.subr.mxu0 0.0
  %3157 = vmatpush1.msra.mxu0 0.0
  %3158 = vmatprep.subr.mxu0 0.0
  %3159 = vmatpush1.msra.mxu0 0.0
  %3160 = vmatprep.subr.mxu0 0.0
  %3161 = vmatpush1.msra.mxu0 0.0
  %3162 = vmatprep.subr.mxu0 0.0
  %3163 = vmatpush1.msra.mxu0 0.0
  %3164 = vmatprep.mubr.f32.mxu0 0.0
  %3165 = vmatmul.mubr.f32.gmra.mrb[0].mxu0 %v3089
  %v3166 = vpop.f32.mrb[0].mxu0
  %v3167 = vadd.f32 0.0, %v3166
  %v3168 = vpop.f32.mrb[0].mxu0
  %3169 = vmatprep.mubr.f32.mxu0 0.0
  %3170 = vmatmul.mubr.f32.gmra.mrb[0].mxu0 %v3092
  %v3171 = vpop.f32.mrb[0].mxu0
  %v3172 = vadd.f32 0.0, %v3171
  %v3173 = vpop.f32.mrb[0].mxu0
  %3174 = vmatprep.mubr.f32.mxu0 0.0
  %3175 = vmatmul.mubr.f32.gmra.mrb[0].mxu0 %v3095
  %v3176 = vpop.f32.mrb[0].mxu0
  %v3177 = vadd.f32 0.0, %v3176
  %v3178 = vpop.f32.mrb[0].mxu0
  %3179 = vmatprep.mubr.f32.mxu0 0.0
  %3180 = vmatmul.mubr.f32.gmra.mrb[0].mxu0 %v3098
  %v3181 = vpop.f32.mrb[0].mxu0
  %v3182 = vadd.f32 0.0, %v3181
  %v3183 = vpop.f32.mrb[0].mxu0
  %3184 = vdwg.mxu0
  %v3185 = vadd.f32 %v2999, %v3167
  %v3186 = vadd.f32 %v3000, %v3172
  %v3187 = vadd.f32 %v3001, %v3177
  %v3188 = vadd.f32 %v3002, %v3182
  %s3189 = scalar_lea.vmem %s6, 256
  %v3190 = vld [vmem:[%s3189] sm:$0xff]
  %v3191 = vld [vmem:[%s3189 + $0x8] sm:$0xff]
  %v3192 = vld [vmem:[%s3189 + $0x10] sm:$0xff]
  %v3193 = vld [vmem:[%s3189 + $0x18] sm:$0xff]
  %3194 = vmatprep.subr.mxu0 0.0
  %3195 = vmatpush1.msra.mxu0 %v3190
  %3196 = vmatprep.subr.mxu0 0.0
  %3197 = vmatpush1.msra.mxu0 %v3191
  %3198 = vmatprep.subr.mxu0 0.0
  %3199 = vmatpush1.msra.mxu0 %v3192
  %3200 = vmatprep.subr.mxu0 0.0
  %3201 = vmatpush1.msra.mxu0 %v3193
  %3202 = vmatprep.subr.mxu0 0.0
  %3203 = vmatpush1.msra.mxu0 0.0
  %3204 = vmatprep.subr.mxu0 0.0
  %3205 = vmatpush1.msra.mxu0 0.0
  %3206 = vmatprep.subr.mxu0 0.0
  %3207 = vmatpush1.msra.mxu0 0.0
  %3208 = vmatprep.subr.mxu0 0.0
  %3209 = vmatpush1.msra.mxu0 0.0
  %3210 = vmatprep.subr.mxu0 0.0
  %3211 = vmatpush1.msra.mxu0 0.0
  %3212 = vmatprep.subr.mxu0 0.0
  %3213 = vmatpush1.msra.mxu0 0.0
  %3214 = vmatprep.subr.mxu0 0.0
  %3215 = vmatpush1.msra.mxu0 0.0
  %3216 = vmatprep.subr.mxu0 0.0
  %3217 = vmatpush1.msra.mxu0 0.0
  %3218 = vmatprep.subr.mxu0 0.0
  %3219 = vmatpush1.msra.mxu0 0.0
  %3220 = vmatprep.subr.mxu0 0.0
  %3221 = vmatpush1.msra.mxu0 0.0
  %3222 = vmatprep.subr.mxu0 0.0
  %3223 = vmatpush1.msra.mxu0 0.0
  %3224 = vmatprep.subr.mxu0 0.0
  %3225 = vmatpush1.msra.mxu0 0.0
  %3226 = vmatprep.subr.mxu0 0.0
  %3227 = vmatpush1.msra.mxu0 0.0
  %3228 = vmatprep.subr.mxu0 0.0
  %3229 = vmatpush1.msra.mxu0 0.0
  %3230 = vmatprep.subr.mxu0 0.0
  %3231 = vmatpush1.msra.mxu0 0.0
  %3232 = vmatprep.subr.mxu0 0.0
  %3233 = vmatpush1.msra.mxu0 0.0
  %3234 = vmatprep.subr.mxu0 0.0
  %3235 = vmatpush1.msra.mxu0 0.0
  %3236 = vmatprep.subr.mxu0 0.0
  %3237 = vmatpush1.msra.mxu0 0.0
  %3238 = vmatprep.subr.mxu0 0.0
  %3239 = vmatpush1.msra.mxu0 0.0
  %3240 = vmatprep.subr.mxu0 0.0
  %3241 = vmatpush1.msra.mxu0 0.0
  %3242 = vmatprep.subr.mxu0 0.0
  %3243 = vmatpush1.msra.mxu0 0.0
  %3244 = vmatprep.subr.mxu0 0.0
  %3245 = vmatpush1.msra.mxu0 0.0
  %3246 = vmatprep.subr.mxu0 0.0
  %3247 = vmatpush1.msra.mxu0 0.0
  %3248 = vmatprep.subr.mxu0 0.0
  %3249 = vmatpush1.msra.mxu0 0.0
  %3250 = vmatprep.subr.mxu0 0.0
  %3251 = vmatpush1.msra.mxu0 0.0
  %3252 = vmatprep.subr.mxu0 0.0
  %3253 = vmatpush1.msra.mxu0 0.0
  %3254 = vmatprep.subr.mxu0 0.0
  %3255 = vmatpush1.msra.mxu0 0.0
  %3256 = vmatprep.subr.mxu0 0.0
  %3257 = vmatpush1.msra.mxu0 0.0
  %3258 = vmatprep.mubr.f32.mxu0 0.0
  %3259 = vmatmul.mubr.f32.gmra.mrb[0].mxu0 %v1709
  %v3260 = vpop.f32.mrb[0].mxu0
  %v3261 = vadd.f32 0.0, %v3260
  %v3262 = vpop.f32.mrb[0].mxu0
  %3263 = vmatprep.mubr.f32.mxu0 0.0
  %3264 = vmatmul.mubr.f32.gmra.mrb[0].mxu0 %v1712
  %v3265 = vpop.f32.mrb[0].mxu0
  %v3266 = vadd.f32 0.0, %v3265
  %v3267 = vpop.f32.mrb[0].mxu0
  %3268 = vdwg.mxu0
  %s3269 = scalar_lea.vmem %s7, 256
  %v3270 = vld [vmem:[%s3269] sm:$0xff]
  %v3271 = vld [vmem:[%s3269 + $0x8] sm:$0xff]
  %v3272 = vld [vmem:[%s3269 + $0x10] sm:$0xff]
  %v3273 = vld [vmem:[%s3269 + $0x18] sm:$0xff]
  %v3275 = vsel %vm1878, %v3270, 0
  %v3278 = vsel %vm1878, %v3271, 0
  %v3281 = vsel %vm1878, %v3272, 0
  %v3284 = vsel %vm1878, %v3273, 0
  %3286 = vmatprep.subr.mxu0 0.0
  %3287 = vmatpush1.msra.mxu0 %v3261
  %3288 = vmatprep.subr.mxu0 0.0
  %3289 = vmatpush1.msra.mxu0 %v3266
  %3290 = vmatprep.subr.mxu0 0.0
  %3291 = vmatpush1.msra.mxu0 0.0
  %3292 = vmatprep.subr.mxu0 0.0
  %3293 = vmatpush1.msra.mxu0 0.0
  %3294 = vmatprep.subr.mxu0 0.0
  %3295 = vmatpush1.msra.mxu0 0.0
  %3296 = vmatprep.subr.mxu0 0.0
  %3297 = vmatpush1.msra.mxu0 0.0
  %3298 = vmatprep.subr.mxu0 0.0
  %3299 = vmatpush1.msra.mxu0 0.0
  %3300 = vmatprep.subr.mxu0 0.0
  %3301 = vmatpush1.msra.mxu0 0.0
  %3302 = vmatprep.subr.mxu0 0.0
  %3303 = vmatpush1.msra.mxu0 0.0
  %3304 = vmatprep.subr.mxu0 0.0
  %3305 = vmatpush1.msra.mxu0 0.0
  %3306 = vmatprep.subr.mxu0 0.0
  %3307 = vmatpush1.msra.mxu0 0.0
  %3308 = vmatprep.subr.mxu0 0.0
  %3309 = vmatpush1.msra.mxu0 0.0
  %3310 = vmatprep.subr.mxu0 0.0
  %3311 = vmatpush1.msra.mxu0 0.0
  %3312 = vmatprep.subr.mxu0 0.0
  %3313 = vmatpush1.msra.mxu0 0.0
  %3314 = vmatprep.subr.mxu0 0.0
  %3315 = vmatpush1.msra.mxu0 0.0
  %3316 = vmatprep.subr.mxu0 0.0
  %3317 = vmatpush1.msra.mxu0 0.0
  %3318 = vmatprep.subr.mxu0 0.0
  %3319 = vmatpush1.msra.mxu0 0.0
  %3320 = vmatprep.subr.mxu0 0.0
  %3321 = vmatpush1.msra.mxu0 0.0
  %3322 = vmatprep.subr.mxu0 0.0
  %3323 = vmatpush1.msra.mxu0 0.0
  %3324 = vmatprep.subr.mxu0 0.0
  %3325 = vmatpush1.msra.mxu0 0.0
  %3326 = vmatprep.subr.mxu0 0.0
  %3327 = vmatpush1.msra.mxu0 0.0
  %3328 = vmatprep.subr.mxu0 0.0
  %3329 = vmatpush1.msra.mxu0 0.0
  %3330 = vmatprep.subr.mxu0 0.0
  %3331 = vmatpush1.msra.mxu0 0.0
  %3332 = vmatprep.subr.mxu0 0.0
  %3333 = vmatpush1.msra.mxu0 0.0
  %3334 = vmatprep.subr.mxu0 0.0
  %3335 = vmatpush1.msra.mxu0 0.0
  %3336 = vmatprep.subr.mxu0 0.0
  %3337 = vmatpush1.msra.mxu0 0.0
  %3338 = vmatprep.subr.mxu0 0.0
  %3339 = vmatpush1.msra.mxu0 0.0
  %3340 = vmatprep.subr.mxu0 0.0
  %3341 = vmatpush1.msra.mxu0 0.0
  %3342 = vmatprep.subr.mxu0 0.0
  %3343 = vmatpush1.msra.mxu0 0.0
  %3344 = vmatprep.subr.mxu0 0.0
  %3345 = vmatpush1.msra.mxu0 0.0
  %3346 = vmatprep.subr.mxu0 0.0
  %3347 = vmatpush1.msra.mxu0 0.0
  %3348 = vmatprep.subr.mxu0 0.0
  %3349 = vmatpush1.msra.mxu0 0.0
  %3350 = vmatprep.mubr.f32.mxu0 0.0
  %3351 = vmatmul.mubr.f32.gmra.mrb[0].mxu0 %v3275
  %v3352 = vpop.f32.mrb[0].mxu0
  %v3353 = vadd.f32 0.0, %v3352
  %v3354 = vpop.f32.mrb[0].mxu0
  %3355 = vmatprep.mubr.f32.mxu0 0.0
  %3356 = vmatmul.mubr.f32.gmra.mrb[0].mxu0 %v3278
  %v3357 = vpop.f32.mrb[0].mxu0
  %v3358 = vadd.f32 0.0, %v3357
  %v3359 = vpop.f32.mrb[0].mxu0
  %3360 = vmatprep.mubr.f32.mxu0 0.0
  %3361 = vmatmul.mubr.f32.gmra.mrb[0].mxu0 %v3281
  %v3362 = vpop.f32.mrb[0].mxu0
  %v3363 = vadd.f32 0.0, %v3362
  %v3364 = vpop.f32.mrb[0].mxu0
  %3365 = vmatprep.mubr.f32.mxu0 0.0
  %3366 = vmatmul.mubr.f32.gmra.mrb[0].mxu0 %v3284
  %v3367 = vpop.f32.mrb[0].mxu0
  %v3368 = vadd.f32 0.0, %v3367
  %v3369 = vpop.f32.mrb[0].mxu0
  %3370 = vdwg.mxu0
  %v3371 = vadd.f32 %v3185, %v3353
  %v3372 = vadd.f32 %v3186, %v3358
  %v3373 = vadd.f32 %v3187, %v3363
  %v3374 = vadd.f32 %v3188, %v3368
  %v3375 = vld [vmem:[%s8] sm:$0xff]
  %v3376 = vld [vmem:[%s8 + $0x8] sm:$0xff]
  %v3377 = vld [vmem:[%s8 + $0x10] sm:$0xff]
  %v3378 = vld [vmem:[%s8 + $0x18] sm:$0xff]
  %3380 = vset.pattern.permute.xlu0 0
  %3381 = vperm.xlu0 %3380, %v3375
  %v3382 = vpop.permute.xlu0 %3381
  %3385 = vset.pattern.permute.xlu0 0
  %3386 = vperm.xlu0 %3385, %v3376
  %v3387 = vpop.permute.xlu0 %3386
  %3390 = vset.pattern.permute.xlu0 0
  %3391 = vperm.xlu0 %3390, %v3377
  %v3392 = vpop.permute.xlu0 %3391
  %3395 = vset.pattern.permute.xlu0 0
  %3396 = vperm.xlu0 %3395, %v3378
  %v3397 = vpop.permute.xlu0 %3396
  %v3399 = vadd.f32 %v3371, %v3382
  %v3400 = vadd.f32 %v3372, %v3387
  %v3401 = vadd.f32 %v3373, %v3392
  %v3402 = vadd.f32 %v3374, %v3397
  %v3403 = vmax.f32 %v3399, 0.0
  %v3404 = vmax.f32 %v3400, 0.0
  %v3405 = vmax.f32 %v3401, 0.0
  %v3406 = vmax.f32 %v3402, 0.0
  %v3407 = vld [vmem:[%s9] sm:$0xff]
  %v3409 = vsel %vm314, %v3403, 0
  %v3412 = vsel %vm314, %v3404, 0
  %v3415 = vsel %vm314, %v3405, 0
  %v3418 = vsel %vm314, %v3406, 0
  %3420 = vmatprep.subr.mxu0 0.0
  %3421 = vmatpush1.msra.mxu0 %v3407
  %3422 = vmatprep.subr.mxu0 0.0
  %3423 = vmatpush1.msra.mxu0 0.0
  %3424 = vmatprep.subr.mxu0 0.0
  %3425 = vmatpush1.msra.mxu0 0.0
  %3426 = vmatprep.subr.mxu0 0.0
  %3427 = vmatpush1.msra.mxu0 0.0
  %3428 = vmatprep.subr.mxu0 0.0
  %3429 = vmatpush1.msra.mxu0 0.0
  %3430 = vmatprep.subr.mxu0 0.0
  %3431 = vmatpush1.msra.mxu0 0.0
  %3432 = vmatprep.subr.mxu0 0.0
  %3433 = vmatpush1.msra.mxu0 0.0
  %3434 = vmatprep.subr.mxu0 0.0
  %3435 = vmatpush1.msra.mxu0 0.0
  %3436 = vmatprep.subr.mxu0 0.0
  %3437 = vmatpush1.msra.mxu0 0.0
  %3438 = vmatprep.subr.mxu0 0.0
  %3439 = vmatpush1.msra.mxu0 0.0
  %3440 = vmatprep.subr.mxu0 0.0
  %3441 = vmatpush1.msra.mxu0 0.0
  %3442 = vmatprep.subr.mxu0 0.0
  %3443 = vmatpush1.msra.mxu0 0.0
  %3444 = vmatprep.subr.mxu0 0.0
  %3445 = vmatpush1.msra.mxu0 0.0
  %3446 = vmatprep.subr.mxu0 0.0
  %3447 = vmatpush1.msra.mxu0 0.0
  %3448 = vmatprep.subr.mxu0 0.0
  %3449 = vmatpush1.msra.mxu0 0.0
  %3450 = vmatprep.subr.mxu0 0.0
  %3451 = vmatpush1.msra.mxu0 0.0
  %3452 = vmatprep.subr.mxu0 0.0
  %3453 = vmatpush1.msra.mxu0 0.0
  %3454 = vmatprep.subr.mxu0 0.0
  %3455 = vmatpush1.msra.mxu0 0.0
  %3456 = vmatprep.subr.mxu0 0.0
  %3457 = vmatpush1.msra.mxu0 0.0
  %3458 = vmatprep.subr.mxu0 0.0
  %3459 = vmatpush1.msra.mxu0 0.0
  %3460 = vmatprep.subr.mxu0 0.0
  %3461 = vmatpush1.msra.mxu0 0.0
  %3462 = vmatprep.subr.mxu0 0.0
  %3463 = vmatpush1.msra.mxu0 0.0
  %3464 = vmatprep.subr.mxu0 0.0
  %3465 = vmatpush1.msra.mxu0 0.0
  %3466 = vmatprep.subr.mxu0 0.0
  %3467 = vmatpush1.msra.mxu0 0.0
  %3468 = vmatprep.subr.mxu0 0.0
  %3469 = vmatpush1.msra.mxu0 0.0
  %3470 = vmatprep.subr.mxu0 0.0
  %3471 = vmatpush1.msra.mxu0 0.0
  %3472 = vmatprep.subr.mxu0 0.0
  %3473 = vmatpush1.msra.mxu0 0.0
  %3474 = vmatprep.subr.mxu0 0.0
  %3475 = vmatpush1.msra.mxu0 0.0
  %3476 = vmatprep.subr.mxu0 0.0
  %3477 = vmatpush1.msra.mxu0 0.0
  %3478 = vmatprep.subr.mxu0 0.0
  %3479 = vmatpush1.msra.mxu0 0.0
  %3480 = vmatprep.subr.mxu0 0.0
  %3481 = vmatpush1.msra.mxu0 0.0
  %3482 = vmatprep.subr.mxu0 0.0
  %3483 = vmatpush1.msra.mxu0 0.0
  %3484 = vmatprep.mubr.f32.mxu0 0.0
  %3485 = vmatmul.mubr.f32.gmra.mrb[0].mxu0 %v3409
  %v3486 = vpop.f32.mrb[0].mxu0
  %v3487 = vadd.f32 0.0, %v3486
  %v3488 = vpop.f32.mrb[0].mxu0
  %3489 = vmatprep.mubr.f32.mxu0 0.0
  %3490 = vmatmul.mubr.f32.gmra.mrb[0].mxu0 %v3412
  %v3491 = vpop.f32.mrb[0].mxu0
  %v3492 = vadd.f32 0.0, %v3491
  %v3493 = vpop.f32.mrb[0].mxu0
  %3494 = vmatprep.mubr.f32.mxu0 0.0
  %3495 = vmatmul.mubr.f32.gmra.mrb[0].mxu0 %v3415
  %v3496 = vpop.f32.mrb[0].mxu0
  %v3497 = vadd.f32 0.0, %v3496
  %v3498 = vpop.f32.mrb[0].mxu0
  %3499 = vmatprep.mubr.f32.mxu0 0.0
  %3500 = vmatmul.mubr.f32.gmra.mrb[0].mxu0 %v3418
  %v3501 = vpop.f32.mrb[0].mxu0
  %v3502 = vadd.f32 0.0, %v3501
  %v3503 = vpop.f32.mrb[0].mxu0
  %3504 = vdwg.mxu0
  %v3505 = vld [vmem:[%s10] sm:$0xff]
  %v3506 = vld [vmem:[%s10 + $0x8] sm:$0xff]
  %v3507 = vld [vmem:[%s10 + $0x10] sm:$0xff]
  %v3508 = vld [vmem:[%s10 + $0x18] sm:$0xff]
  %s3509 = scalar_lea.vmem %s9, 8
  %v3510 = vld [vmem:[%s3509] sm:$0xff]
  %3511 = vmatprep.subr.mxu0 0.0
  %3512 = vmatpush1.msra.mxu0 %v3510
  %3513 = vmatprep.subr.mxu0 0.0
  %3514 = vmatpush1.msra.mxu0 0.0
  %3515 = vmatprep.subr.mxu0 0.0
  %3516 = vmatpush1.msra.mxu0 0.0
  %3517 = vmatprep.subr.mxu0 0.0
  %3518 = vmatpush1.msra.mxu0 0.0
  %3519 = vmatprep.subr.mxu0 0.0
  %3520 = vmatpush1.msra.mxu0 0.0
  %3521 = vmatprep.subr.mxu0 0.0
  %3522 = vmatpush1.msra.mxu0 0.0
  %3523 = vmatprep.subr.mxu0 0.0
  %3524 = vmatpush1.msra.mxu0 0.0
  %3525 = vmatprep.subr.mxu0 0.0
  %3526 = vmatpush1.msra.mxu0 0.0
  %3527 = vmatprep.subr.mxu0 0.0
  %3528 = vmatpush1.msra.mxu0 0.0
  %3529 = vmatprep.subr.mxu0 0.0
  %3530 = vmatpush1.msra.mxu0 0.0
  %3531 = vmatprep.subr.mxu0 0.0
  %3532 = vmatpush1.msra.mxu0 0.0
  %3533 = vmatprep.subr.mxu0 0.0
  %3534 = vmatpush1.msra.mxu0 0.0
  %3535 = vmatprep.subr.mxu0 0.0
  %3536 = vmatpush1.msra.mxu0 0.0
  %3537 = vmatprep.subr.mxu0 0.0
  %3538 = vmatpush1.msra.mxu0 0.0
  %3539 = vmatprep.subr.mxu0 0.0
  %3540 = vmatpush1.msra.mxu0 0.0
  %3541 = vmatprep.subr.mxu0 0.0
  %3542 = vmatpush1.msra.mxu0 0.0
  %3543 = vmatprep.subr.mxu0 0.0
  %3544 = vmatpush1.msra.mxu0 0.0
  %3545 = vmatprep.subr.mxu0 0.0
  %3546 = vmatpush1.msra.mxu0 0.0
  %3547 = vmatprep.subr.mxu0 0.0
  %3548 = vmatpush1.msra.mxu0 0.0
  %3549 = vmatprep.subr.mxu0 0.0
  %3550 = vmatpush1.msra.mxu0 0.0
  %3551 = vmatprep.subr.mxu0 0.0
  %3552 = vmatpush1.msra.mxu0 0.0
  %3553 = vmatprep.subr.mxu0 0.0
  %3554 = vmatpush1.msra.mxu0 0.0
  %3555 = vmatprep.subr.mxu0 0.0
  %3556 = vmatpush1.msra.mxu0 0.0
  %3557 = vmatprep.subr.mxu0 0.0
  %3558 = vmatpush1.msra.mxu0 0.0
  %3559 = vmatprep.subr.mxu0 0.0
  %3560 = vmatpush1.msra.mxu0 0.0
  %3561 = vmatprep.subr.mxu0 0.0
  %3562 = vmatpush1.msra.mxu0 0.0
  %3563 = vmatprep.subr.mxu0 0.0
  %3564 = vmatpush1.msra.mxu0 0.0
  %3565 = vmatprep.subr.mxu0 0.0
  %3566 = vmatpush1.msra.mxu0 0.0
  %3567 = vmatprep.subr.mxu0 0.0
  %3568 = vmatpush1.msra.mxu0 0.0
  %3569 = vmatprep.subr.mxu0 0.0
  %3570 = vmatpush1.msra.mxu0 0.0
  %3571 = vmatprep.subr.mxu0 0.0
  %3572 = vmatpush1.msra.mxu0 0.0
  %3573 = vmatprep.subr.mxu0 0.0
  %3574 = vmatpush1.msra.mxu0 0.0
  %3575 = vmatprep.mubr.f32.mxu0 0.0
  %3576 = vmatmul.mubr.f32.gmra.mrb[0].mxu0 %v3409
  %v3577 = vpop.f32.mrb[0].mxu0
  %v3578 = vadd.f32 0.0, %v3577
  %v3579 = vpop.f32.mrb[0].mxu0
  %3580 = vmatprep.mubr.f32.mxu0 0.0
  %3581 = vmatmul.mubr.f32.gmra.mrb[0].mxu0 %v3412
  %v3582 = vpop.f32.mrb[0].mxu0
  %v3583 = vadd.f32 0.0, %v3582
  %v3584 = vpop.f32.mrb[0].mxu0
  %3585 = vmatprep.mubr.f32.mxu0 0.0
  %3586 = vmatmul.mubr.f32.gmra.mrb[0].mxu0 %v3415
  %v3587 = vpop.f32.mrb[0].mxu0
  %v3588 = vadd.f32 0.0, %v3587
  %v3589 = vpop.f32.mrb[0].mxu0
  %3590 = vmatprep.mubr.f32.mxu0 0.0
  %3591 = vmatmul.mubr.f32.gmra.mrb[0].mxu0 %v3418
  %v3592 = vpop.f32.mrb[0].mxu0
  %v3593 = vadd.f32 0.0, %v3592
  %v3594 = vpop.f32.mrb[0].mxu0
  %3595 = vdwg.mxu0
  %s3596 = scalar_lea.vmem %s10, 32
  %v3597 = vld [vmem:[%s3596] sm:$0xff]
  %v3598 = vld [vmem:[%s3596 + $0x8] sm:$0xff]
  %v3599 = vld [vmem:[%s3596 + $0x10] sm:$0xff]
  %v3600 = vld [vmem:[%s3596 + $0x18] sm:$0xff]
  %v3602 = vsel %vm61, %v3597, 0
  %v3605 = vsel %vm61, %v3598, 0
  %v3608 = vsel %vm61, %v3599, 0
  %v3611 = vsel %vm61, %v3600, 0
  %3613 = vmatprep.subr.mxu0 0.0
  %3614 = vmatpush1.msra.mxu0 %v3578
  %3615 = vmatprep.subr.mxu0 0.0
  %3616 = vmatpush1.msra.mxu0 %v3583
  %3617 = vmatprep.subr.mxu0 0.0
  %3618 = vmatpush1.msra.mxu0 %v3588
  %3619 = vmatprep.subr.mxu0 0.0
  %3620 = vmatpush1.msra.mxu0 %v3593
  %3621 = vmatprep.subr.mxu0 0.0
  %3622 = vmatpush1.msra.mxu0 0.0
  %3623 = vmatprep.subr.mxu0 0.0
  %3624 = vmatpush1.msra.mxu0 0.0
  %3625 = vmatprep.subr.mxu0 0.0
  %3626 = vmatpush1.msra.mxu0 0.0
  %3627 = vmatprep.subr.mxu0 0.0
  %3628 = vmatpush1.msra.mxu0 0.0
  %3629 = vmatprep.subr.mxu0 0.0
  %3630 = vmatpush1.msra.mxu0 0.0
  %3631 = vmatprep.subr.mxu0 0.0
  %3632 = vmatpush1.msra.mxu0 0.0
  %3633 = vmatprep.subr.mxu0 0.0
  %3634 = vmatpush1.msra.mxu0 0.0
  %3635 = vmatprep.subr.mxu0 0.0
  %3636 = vmatpush1.msra.mxu0 0.0
  %3637 = vmatprep.subr.mxu0 0.0
  %3638 = vmatpush1.msra.mxu0 0.0
  %3639 = vmatprep.subr.mxu0 0.0
  %3640 = vmatpush1.msra.mxu0 0.0
  %3641 = vmatprep.subr.mxu0 0.0
  %3642 = vmatpush1.msra.mxu0 0.0
  %3643 = vmatprep.subr.mxu0 0.0
  %3644 = vmatpush1.msra.mxu0 0.0
  %3645 = vmatprep.subr.mxu0 0.0
  %3646 = vmatpush1.msra.mxu0 0.0
  %3647 = vmatprep.subr.mxu0 0.0
  %3648 = vmatpush1.msra.mxu0 0.0
  %3649 = vmatprep.subr.mxu0 0.0
  %3650 = vmatpush1.msra.mxu0 0.0
  %3651 = vmatprep.subr.mxu0 0.0
  %3652 = vmatpush1.msra.mxu0 0.0
  %3653 = vmatprep.subr.mxu0 0.0
  %3654 = vmatpush1.msra.mxu0 0.0
  %3655 = vmatprep.subr.mxu0 0.0
  %3656 = vmatpush1.msra.mxu0 0.0
  %3657 = vmatprep.subr.mxu0 0.0
  %3658 = vmatpush1.msra.mxu0 0.0
  %3659 = vmatprep.subr.mxu0 0.0
  %3660 = vmatpush1.msra.mxu0 0.0
  %3661 = vmatprep.subr.mxu0 0.0
  %3662 = vmatpush1.msra.mxu0 0.0
  %3663 = vmatprep.subr.mxu0 0.0
  %3664 = vmatpush1.msra.mxu0 0.0
  %3665 = vmatprep.subr.mxu0 0.0
  %3666 = vmatpush1.msra.mxu0 0.0
  %3667 = vmatprep.subr.mxu0 0.0
  %3668 = vmatpush1.msra.mxu0 0.0
  %3669 = vmatprep.subr.mxu0 0.0
  %3670 = vmatpush1.msra.mxu0 0.0
  %3671 = vmatprep.subr.mxu0 0.0
  %3672 = vmatpush1.msra.mxu0 0.0
  %3673 = vmatprep.subr.mxu0 0.0
  %3674 = vmatpush1.msra.mxu0 0.0
  %3675 = vmatprep.subr.mxu0 0.0
  %3676 = vmatpush1.msra.mxu0 0.0
  %3677 = vmatprep.mubr.f32.mxu0 0.0
  %3678 = vmatmul.mubr.f32.gmra.mrb[0].mxu0 %v3602
  %v3679 = vpop.f32.mrb[0].mxu0
  %v3680 = vadd.f32 0.0, %v3679
  %v3681 = vpop.f32.mrb[0].mxu0
  %3682 = vmatprep.mubr.f32.mxu0 0.0
  %3683 = vmatmul.mubr.f32.gmra.mrb[0].mxu0 %v3605
  %v3684 = vpop.f32.mrb[0].mxu0
  %v3685 = vadd.f32 0.0, %v3684
  %v3686 = vpop.f32.mrb[0].mxu0
  %3687 = vmatprep.mubr.f32.mxu0 0.0
  %3688 = vmatmul.mubr.f32.gmra.mrb[0].mxu0 %v3608
  %v3689 = vpop.f32.mrb[0].mxu0
  %v3690 = vadd.f32 0.0, %v3689
  %v3691 = vpop.f32.mrb[0].mxu0
  %3692 = vmatprep.mubr.f32.mxu0 0.0
  %3693 = vmatmul.mubr.f32.gmra.mrb[0].mxu0 %v3611
  %v3694 = vpop.f32.mrb[0].mxu0
  %v3695 = vadd.f32 0.0, %v3694
  %v3696 = vpop.f32.mrb[0].mxu0
  %3697 = vdwg.mxu0
  %v3699 = vsel %vm61, %v3505, 0
  %v3702 = vsel %vm61, %v3506, 0
  %v3705 = vsel %vm61, %v3507, 0
  %v3708 = vsel %vm61, %v3508, 0
  %3710 = vmatprep.subr.mxu0 0.0
  %3711 = vmatpush1.msra.mxu0 %v3487
  %3712 = vmatprep.subr.mxu0 0.0
  %3713 = vmatpush1.msra.mxu0 %v3492
  %3714 = vmatprep.subr.mxu0 0.0
  %3715 = vmatpush1.msra.mxu0 %v3497
  %3716 = vmatprep.subr.mxu0 0.0
  %3717 = vmatpush1.msra.mxu0 %v3502
  %3718 = vmatprep.subr.mxu0 0.0
  %3719 = vmatpush1.msra.mxu0 0.0
  %3720 = vmatprep.subr.mxu0 0.0
  %3721 = vmatpush1.msra.mxu0 0.0
  %3722 = vmatprep.subr.mxu0 0.0
  %3723 = vmatpush1.msra.mxu0 0.0
  %3724 = vmatprep.subr.mxu0 0.0
  %3725 = vmatpush1.msra.mxu0 0.0
  %3726 = vmatprep.subr.mxu0 0.0
  %3727 = vmatpush1.msra.mxu0 0.0
  %3728 = vmatprep.subr.mxu0 0.0
  %3729 = vmatpush1.msra.mxu0 0.0
  %3730 = vmatprep.subr.mxu0 0.0
  %3731 = vmatpush1.msra.mxu0 0.0
  %3732 = vmatprep.subr.mxu0 0.0
  %3733 = vmatpush1.msra.mxu0 0.0
  %3734 = vmatprep.subr.mxu0 0.0
  %3735 = vmatpush1.msra.mxu0 0.0
  %3736 = vmatprep.subr.mxu0 0.0
  %3737 = vmatpush1.msra.mxu0 0.0
  %3738 = vmatprep.subr.mxu0 0.0
  %3739 = vmatpush1.msra.mxu0 0.0
  %3740 = vmatprep.subr.mxu0 0.0
  %3741 = vmatpush1.msra.mxu0 0.0
  %3742 = vmatprep.subr.mxu0 0.0
  %3743 = vmatpush1.msra.mxu0 0.0
  %3744 = vmatprep.subr.mxu0 0.0
  %3745 = vmatpush1.msra.mxu0 0.0
  %3746 = vmatprep.subr.mxu0 0.0
  %3747 = vmatpush1.msra.mxu0 0.0
  %3748 = vmatprep.subr.mxu0 0.0
  %3749 = vmatpush1.msra.mxu0 0.0
  %3750 = vmatprep.subr.mxu0 0.0
  %3751 = vmatpush1.msra.mxu0 0.0
  %3752 = vmatprep.subr.mxu0 0.0
  %3753 = vmatpush1.msra.mxu0 0.0
  %3754 = vmatprep.subr.mxu0 0.0
  %3755 = vmatpush1.msra.mxu0 0.0
  %3756 = vmatprep.subr.mxu0 0.0
  %3757 = vmatpush1.msra.mxu0 0.0
  %3758 = vmatprep.subr.mxu0 0.0
  %3759 = vmatpush1.msra.mxu0 0.0
  %3760 = vmatprep.subr.mxu0 0.0
  %3761 = vmatpush1.msra.mxu0 0.0
  %3762 = vmatprep.subr.mxu0 0.0
  %3763 = vmatpush1.msra.mxu0 0.0
  %3764 = vmatprep.subr.mxu0 0.0
  %3765 = vmatpush1.msra.mxu0 0.0
  %3766 = vmatprep.subr.mxu0 0.0
  %3767 = vmatpush1.msra.mxu0 0.0
  %3768 = vmatprep.subr.mxu0 0.0
  %3769 = vmatpush1.msra.mxu0 0.0
  %3770 = vmatprep.subr.mxu0 0.0
  %3771 = vmatpush1.msra.mxu0 0.0
  %3772 = vmatprep.subr.mxu0 0.0
  %3773 = vmatpush1.msra.mxu0 0.0
  %3774 = vmatprep.mubr.f32.mxu0 0.0
  %3775 = vmatmul.mubr.f32.gmra.mrb[0].mxu0 %v3699
  %v3776 = vpop.f32.mrb[0].mxu0
  %v3777 = vadd.f32 %v3680, %v3776
  %v3778 = vpop.f32.mrb[0].mxu0
  %3779 = vmatprep.mubr.f32.mxu0 0.0
  %3780 = vmatmul.mubr.f32.gmra.mrb[0].mxu0 %v3702
  %v3781 = vpop.f32.mrb[0].mxu0
  %v3782 = vadd.f32 %v3685, %v3781
  %v3783 = vpop.f32.mrb[0].mxu0
  %3784 = vmatprep.mubr.f32.mxu0 0.0
  %3785 = vmatmul.mubr.f32.gmra.mrb[0].mxu0 %v3705
  %v3786 = vpop.f32.mrb[0].mxu0
  %v3787 = vadd.f32 %v3690, %v3786
  %v3788 = vpop.f32.mrb[0].mxu0
  %3789 = vmatprep.mubr.f32.mxu0 0.0
  %3790 = vmatmul.mubr.f32.gmra.mrb[0].mxu0 %v3708
  %v3791 = vpop.f32.mrb[0].mxu0
  %v3792 = vadd.f32 %v3695, %v3791
  %v3793 = vpop.f32.mrb[0].mxu0
  %3794 = vdwg.mxu0
  %s3795 = scalar_lea.vmem %s9, 16
  %v3796 = vld [vmem:[%s3795] sm:$0xff]
  %3797 = vmatprep.subr.mxu0 0.0
  %3798 = vmatpush1.msra.mxu0 %v3796
  %3799 = vmatprep.subr.mxu0 0.0
  %3800 = vmatpush1.msra.mxu0 0.0
  %3801 = vmatprep.subr.mxu0 0.0
  %3802 = vmatpush1.msra.mxu0 0.0
  %3803 = vmatprep.subr.mxu0 0.0
  %3804 = vmatpush1.msra.mxu0 0.0
  %3805 = vmatprep.subr.mxu0 0.0
  %3806 = vmatpush1.msra.mxu0 0.0
  %3807 = vmatprep.subr.mxu0 0.0
  %3808 = vmatpush1.msra.mxu0 0.0
  %3809 = vmatprep.subr.mxu0 0.0
  %3810 = vmatpush1.msra.mxu0 0.0
  %3811 = vmatprep.subr.mxu0 0.0
  %3812 = vmatpush1.msra.mxu0 0.0
  %3813 = vmatprep.subr.mxu0 0.0
  %3814 = vmatpush1.msra.mxu0 0.0
  %3815 = vmatprep.subr.mxu0 0.0
  %3816 = vmatpush1.msra.mxu0 0.0
  %3817 = vmatprep.subr.mxu0 0.0
  %3818 = vmatpush1.msra.mxu0 0.0
  %3819 = vmatprep.subr.mxu0 0.0
  %3820 = vmatpush1.msra.mxu0 0.0
  %3821 = vmatprep.subr.mxu0 0.0
  %3822 = vmatpush1.msra.mxu0 0.0
  %3823 = vmatprep.subr.mxu0 0.0
  %3824 = vmatpush1.msra.mxu0 0.0
  %3825 = vmatprep.subr.mxu0 0.0
  %3826 = vmatpush1.msra.mxu0 0.0
  %3827 = vmatprep.subr.mxu0 0.0
  %3828 = vmatpush1.msra.mxu0 0.0
  %3829 = vmatprep.subr.mxu0 0.0
  %3830 = vmatpush1.msra.mxu0 0.0
  %3831 = vmatprep.subr.mxu0 0.0
  %3832 = vmatpush1.msra.mxu0 0.0
  %3833 = vmatprep.subr.mxu0 0.0
  %3834 = vmatpush1.msra.mxu0 0.0
  %3835 = vmatprep.subr.mxu0 0.0
  %3836 = vmatpush1.msra.mxu0 0.0
  %3837 = vmatprep.subr.mxu0 0.0
  %3838 = vmatpush1.msra.mxu0 0.0
  %3839 = vmatprep.subr.mxu0 0.0
  %3840 = vmatpush1.msra.mxu0 0.0
  %3841 = vmatprep.subr.mxu0 0.0
  %3842 = vmatpush1.msra.mxu0 0.0
  %3843 = vmatprep.subr.mxu0 0.0
  %3844 = vmatpush1.msra.mxu0 0.0
  %3845 = vmatprep.subr.mxu0 0.0
  %3846 = vmatpush1.msra.mxu0 0.0
  %3847 = vmatprep.subr.mxu0 0.0
  %3848 = vmatpush1.msra.mxu0 0.0
  %3849 = vmatprep.subr.mxu0 0.0
  %3850 = vmatpush1.msra.mxu0 0.0
  %3851 = vmatprep.subr.mxu0 0.0
  %3852 = vmatpush1.msra.mxu0 0.0
  %3853 = vmatprep.subr.mxu0 0.0
  %3854 = vmatpush1.msra.mxu0 0.0
  %3855 = vmatprep.subr.mxu0 0.0
  %3856 = vmatpush1.msra.mxu0 0.0
  %3857 = vmatprep.subr.mxu0 0.0
  %3858 = vmatpush1.msra.mxu0 0.0
  %3859 = vmatprep.subr.mxu0 0.0
  %3860 = vmatpush1.msra.mxu0 0.0
  %3861 = vmatprep.mubr.f32.mxu0 0.0
  %3862 = vmatmul.mubr.f32.gmra.mrb[0].mxu0 %v3409
  %v3863 = vpop.f32.mrb[0].mxu0
  %v3864 = vadd.f32 0.0, %v3863
  %v3865 = vpop.f32.mrb[0].mxu0
  %3866 = vmatprep.mubr.f32.mxu0 0.0
  %3867 = vmatmul.mubr.f32.gmra.mrb[0].mxu0 %v3412
  %v3868 = vpop.f32.mrb[0].mxu0
  %v3869 = vadd.f32 0.0, %v3868
  %v3870 = vpop.f32.mrb[0].mxu0
  %3871 = vmatprep.mubr.f32.mxu0 0.0
  %3872 = vmatmul.mubr.f32.gmra.mrb[0].mxu0 %v3415
  %v3873 = vpop.f32.mrb[0].mxu0
  %v3874 = vadd.f32 0.0, %v3873
  %v3875 = vpop.f32.mrb[0].mxu0
  %3876 = vmatprep.mubr.f32.mxu0 0.0
  %3877 = vmatmul.mubr.f32.gmra.mrb[0].mxu0 %v3418
  %v3878 = vpop.f32.mrb[0].mxu0
  %v3879 = vadd.f32 0.0, %v3878
  %v3880 = vpop.f32.mrb[0].mxu0
  %3881 = vdwg.mxu0
  %s3882 = scalar_lea.vmem %s10, 64
  %v3883 = vld [vmem:[%s3882] sm:$0xff]
  %v3884 = vld [vmem:[%s3882 + $0x8] sm:$0xff]
  %v3885 = vld [vmem:[%s3882 + $0x10] sm:$0xff]
  %v3886 = vld [vmem:[%s3882 + $0x18] sm:$0xff]
  %v3888 = vsel %vm61, %v3883, 0
  %v3891 = vsel %vm61, %v3884, 0
  %v3894 = vsel %vm61, %v3885, 0
  %v3897 = vsel %vm61, %v3886, 0
  %3899 = vmatprep.subr.mxu0 0.0
  %3900 = vmatpush1.msra.mxu0 %v3864
  %3901 = vmatprep.subr.mxu0 0.0
  %3902 = vmatpush1.msra.mxu0 %v3869
  %3903 = vmatprep.subr.mxu0 0.0
  %3904 = vmatpush1.msra.mxu0 %v3874
  %3905 = vmatprep.subr.mxu0 0.0
  %3906 = vmatpush1.msra.mxu0 %v3879
  %3907 = vmatprep.subr.mxu0 0.0
  %3908 = vmatpush1.msra.mxu0 0.0
  %3909 = vmatprep.subr.mxu0 0.0
  %3910 = vmatpush1.msra.mxu0 0.0
  %3911 = vmatprep.subr.mxu0 0.0
  %3912 = vmatpush1.msra.mxu0 0.0
  %3913 = vmatprep.subr.mxu0 0.0
  %3914 = vmatpush1.msra.mxu0 0.0
  %3915 = vmatprep.subr.mxu0 0.0
  %3916 = vmatpush1.msra.mxu0 0.0
  %3917 = vmatprep.subr.mxu0 0.0
  %3918 = vmatpush1.msra.mxu0 0.0
  %3919 = vmatprep.subr.mxu0 0.0
  %3920 = vmatpush1.msra.mxu0 0.0
  %3921 = vmatprep.subr.mxu0 0.0
  %3922 = vmatpush1.msra.mxu0 0.0
  %3923 = vmatprep.subr.mxu0 0.0
  %3924 = vmatpush1.msra.mxu0 0.0
  %3925 = vmatprep.subr.mxu0 0.0
  %3926 = vmatpush1.msra.mxu0 0.0
  %3927 = vmatprep.subr.mxu0 0.0
  %3928 = vmatpush1.msra.mxu0 0.0
  %3929 = vmatprep.subr.mxu0 0.0
  %3930 = vmatpush1.msra.mxu0 0.0
  %3931 = vmatprep.subr.mxu0 0.0
  %3932 = vmatpush1.msra.mxu0 0.0
  %3933 = vmatprep.subr.mxu0 0.0
  %3934 = vmatpush1.msra.mxu0 0.0
  %3935 = vmatprep.subr.mxu0 0.0
  %3936 = vmatpush1.msra.mxu0 0.0
  %3937 = vmatprep.subr.mxu0 0.0
  %3938 = vmatpush1.msra.mxu0 0.0
  %3939 = vmatprep.subr.mxu0 0.0
  %3940 = vmatpush1.msra.mxu0 0.0
  %3941 = vmatprep.subr.mxu0 0.0
  %3942 = vmatpush1.msra.mxu0 0.0
  %3943 = vmatprep.subr.mxu0 0.0
  %3944 = vmatpush1.msra.mxu0 0.0
  %3945 = vmatprep.subr.mxu0 0.0
  %3946 = vmatpush1.msra.mxu0 0.0
  %3947 = vmatprep.subr.mxu0 0.0
  %3948 = vmatpush1.msra.mxu0 0.0
  %3949 = vmatprep.subr.mxu0 0.0
  %3950 = vmatpush1.msra.mxu0 0.0
  %3951 = vmatprep.subr.mxu0 0.0
  %3952 = vmatpush1.msra.mxu0 0.0
  %3953 = vmatprep.subr.mxu0 0.0
  %3954 = vmatpush1.msra.mxu0 0.0
  %3955 = vmatprep.subr.mxu0 0.0
  %3956 = vmatpush1.msra.mxu0 0.0
  %3957 = vmatprep.subr.mxu0 0.0
  %3958 = vmatpush1.msra.mxu0 0.0
  %3959 = vmatprep.subr.mxu0 0.0
  %3960 = vmatpush1.msra.mxu0 0.0
  %3961 = vmatprep.subr.mxu0 0.0
  %3962 = vmatpush1.msra.mxu0 0.0
  %3963 = vmatprep.mubr.f32.mxu0 0.0
  %3964 = vmatmul.mubr.f32.gmra.mrb[0].mxu0 %v3888
  %v3965 = vpop.f32.mrb[0].mxu0
  %v3966 = vadd.f32 0.0, %v3965
  %v3967 = vpop.f32.mrb[0].mxu0
  %3968 = vmatprep.mubr.f32.mxu0 0.0
  %3969 = vmatmul.mubr.f32.gmra.mrb[0].mxu0 %v3891
  %v3970 = vpop.f32.mrb[0].mxu0
  %v3971 = vadd.f32 0.0, %v3970
  %v3972 = vpop.f32.mrb[0].mxu0
  %3973 = vmatprep.mubr.f32.mxu0 0.0
  %3974 = vmatmul.mubr.f32.gmra.mrb[0].mxu0 %v3894
  %v3975 = vpop.f32.mrb[0].mxu0
  %v3976 = vadd.f32 0.0, %v3975
  %v3977 = vpop.f32.mrb[0].mxu0
  %3978 = vmatprep.mubr.f32.mxu0 0.0
  %3979 = vmatmul.mubr.f32.gmra.mrb[0].mxu0 %v3897
  %v3980 = vpop.f32.mrb[0].mxu0
  %v3981 = vadd.f32 0.0, %v3980
  %v3982 = vpop.f32.mrb[0].mxu0
  %3983 = vdwg.mxu0
  %v3984 = vadd.f32 %v3777, %v3966
  %v3985 = vadd.f32 %v3782, %v3971
  %v3986 = vadd.f32 %v3787, %v3976
  %v3987 = vadd.f32 %v3792, %v3981
  %s3988 = scalar_lea.vmem %s9, 24
  %v3989 = vld [vmem:[%s3988] sm:$0xff]
  %3990 = vmatprep.subr.mxu0 0.0
  %3991 = vmatpush1.msra.mxu0 %v3989
  %3992 = vmatprep.subr.mxu0 0.0
  %3993 = vmatpush1.msra.mxu0 0.0
  %3994 = vmatprep.subr.mxu0 0.0
  %3995 = vmatpush1.msra.mxu0 0.0
  %3996 = vmatprep.subr.mxu0 0.0
  %3997 = vmatpush1.msra.mxu0 0.0
  %3998 = vmatprep.subr.mxu0 0.0
  %3999 = vmatpush1.msra.mxu0 0.0
  %4000 = vmatprep.subr.mxu0 0.0
  %4001 = vmatpush1.msra.mxu0 0.0
  %4002 = vmatprep.subr.mxu0 0.0
  %4003 = vmatpush1.msra.mxu0 0.0
  %4004 = vmatprep.subr.mxu0 0.0
  %4005 = vmatpush1.msra.mxu0 0.0
  %4006 = vmatprep.subr.mxu0 0.0
  %4007 = vmatpush1.msra.mxu0 0.0
  %4008 = vmatprep.subr.mxu0 0.0
  %4009 = vmatpush1.msra.mxu0 0.0
  %4010 = vmatprep.subr.mxu0 0.0
  %4011 = vmatpush1.msra.mxu0 0.0
  %4012 = vmatprep.subr.mxu0 0.0
  %4013 = vmatpush1.msra.mxu0 0.0
  %4014 = vmatprep.subr.mxu0 0.0
  %4015 = vmatpush1.msra.mxu0 0.0
  %4016 = vmatprep.subr.mxu0 0.0
  %4017 = vmatpush1.msra.mxu0 0.0
  %4018 = vmatprep.subr.mxu0 0.0
  %4019 = vmatpush1.msra.mxu0 0.0
  %4020 = vmatprep.subr.mxu0 0.0
  %4021 = vmatpush1.msra.mxu0 0.0
  %4022 = vmatprep.subr.mxu0 0.0
  %4023 = vmatpush1.msra.mxu0 0.0
  %4024 = vmatprep.subr.mxu0 0.0
  %4025 = vmatpush1.msra.mxu0 0.0
  %4026 = vmatprep.subr.mxu0 0.0
  %4027 = vmatpush1.msra.mxu0 0.0
  %4028 = vmatprep.subr.mxu0 0.0
  %4029 = vmatpush1.msra.mxu0 0.0
  %4030 = vmatprep.subr.mxu0 0.0
  %4031 = vmatpush1.msra.mxu0 0.0
  %4032 = vmatprep.subr.mxu0 0.0
  %4033 = vmatpush1.msra.mxu0 0.0
  %4034 = vmatprep.subr.mxu0 0.0
  %4035 = vmatpush1.msra.mxu0 0.0
  %4036 = vmatprep.subr.mxu0 0.0
  %4037 = vmatpush1.msra.mxu0 0.0
  %4038 = vmatprep.subr.mxu0 0.0
  %4039 = vmatpush1.msra.mxu0 0.0
  %4040 = vmatprep.subr.mxu0 0.0
  %4041 = vmatpush1.msra.mxu0 0.0
  %4042 = vmatprep.subr.mxu0 0.0
  %4043 = vmatpush1.msra.mxu0 0.0
  %4044 = vmatprep.subr.mxu0 0.0
  %4045 = vmatpush1.msra.mxu0 0.0
  %4046 = vmatprep.subr.mxu0 0.0
  %4047 = vmatpush1.msra.mxu0 0.0
  %4048 = vmatprep.subr.mxu0 0.0
  %4049 = vmatpush1.msra.mxu0 0.0
  %4050 = vmatprep.subr.mxu0 0.0
  %4051 = vmatpush1.msra.mxu0 0.0
  %4052 = vmatprep.subr.mxu0 0.0
  %4053 = vmatpush1.msra.mxu0 0.0
  %4054 = vmatprep.mubr.f32.mxu0 0.0
  %4055 = vmatmul.mubr.f32.gmra.mrb[0].mxu0 %v3409
  %v4056 = vpop.f32.mrb[0].mxu0
  %v4057 = vadd.f32 0.0, %v4056
  %v4058 = vpop.f32.mrb[0].mxu0
  %4059 = vmatprep.mubr.f32.mxu0 0.0
  %4060 = vmatmul.mubr.f32.gmra.mrb[0].mxu0 %v3412
  %v4061 = vpop.f32.mrb[0].mxu0
  %v4062 = vadd.f32 0.0, %v4061
  %v4063 = vpop.f32.mrb[0].mxu0
  %4064 = vmatprep.mubr.f32.mxu0 0.0
  %4065 = vmatmul.mubr.f32.gmra.mrb[0].mxu0 %v3415
  %v4066 = vpop.f32.mrb[0].mxu0
  %v4067 = vadd.f32 0.0, %v4066
  %v4068 = vpop.f32.mrb[0].mxu0
  %4069 = vmatprep.mubr.f32.mxu0 0.0
  %4070 = vmatmul.mubr.f32.gmra.mrb[0].mxu0 %v3418
  %v4071 = vpop.f32.mrb[0].mxu0
  %v4072 = vadd.f32 0.0, %v4071
  %v4073 = vpop.f32.mrb[0].mxu0
  %4074 = vdwg.mxu0
  %s4075 = scalar_lea.vmem %s10, 96
  %v4076 = vld [vmem:[%s4075] sm:$0xff]
  %v4077 = vld [vmem:[%s4075 + $0x8] sm:$0xff]
  %v4078 = vld [vmem:[%s4075 + $0x10] sm:$0xff]
  %v4079 = vld [vmem:[%s4075 + $0x18] sm:$0xff]
  %v4081 = vsel %vm61, %v4076, 0
  %v4084 = vsel %vm61, %v4077, 0
  %v4087 = vsel %vm61, %v4078, 0
  %v4090 = vsel %vm61, %v4079, 0
  %4092 = vmatprep.subr.mxu0 0.0
  %4093 = vmatpush1.msra.mxu0 %v4057
  %4094 = vmatprep.subr.mxu0 0.0
  %4095 = vmatpush1.msra.mxu0 %v4062
  %4096 = vmatprep.subr.mxu0 0.0
  %4097 = vmatpush1.msra.mxu0 %v4067
  %4098 = vmatprep.subr.mxu0 0.0
  %4099 = vmatpush1.msra.mxu0 %v4072
  %4100 = vmatprep.subr.mxu0 0.0
  %4101 = vmatpush1.msra.mxu0 0.0
  %4102 = vmatprep.subr.mxu0 0.0
  %4103 = vmatpush1.msra.mxu0 0.0
  %4104 = vmatprep.subr.mxu0 0.0
  %4105 = vmatpush1.msra.mxu0 0.0
  %4106 = vmatprep.subr.mxu0 0.0
  %4107 = vmatpush1.msra.mxu0 0.0
  %4108 = vmatprep.subr.mxu0 0.0
  %4109 = vmatpush1.msra.mxu0 0.0
  %4110 = vmatprep.subr.mxu0 0.0
  %4111 = vmatpush1.msra.mxu0 0.0
  %4112 = vmatprep.subr.mxu0 0.0
  %4113 = vmatpush1.msra.mxu0 0.0
  %4114 = vmatprep.subr.mxu0 0.0
  %4115 = vmatpush1.msra.mxu0 0.0
  %4116 = vmatprep.subr.mxu0 0.0
  %4117 = vmatpush1.msra.mxu0 0.0
  %4118 = vmatprep.subr.mxu0 0.0
  %4119 = vmatpush1.msra.mxu0 0.0
  %4120 = vmatprep.subr.mxu0 0.0
  %4121 = vmatpush1.msra.mxu0 0.0
  %4122 = vmatprep.subr.mxu0 0.0
  %4123 = vmatpush1.msra.mxu0 0.0
  %4124 = vmatprep.subr.mxu0 0.0
  %4125 = vmatpush1.msra.mxu0 0.0
  %4126 = vmatprep.subr.mxu0 0.0
  %4127 = vmatpush1.msra.mxu0 0.0
  %4128 = vmatprep.subr.mxu0 0.0
  %4129 = vmatpush1.msra.mxu0 0.0
  %4130 = vmatprep.subr.mxu0 0.0
  %4131 = vmatpush1.msra.mxu0 0.0
  %4132 = vmatprep.subr.mxu0 0.0
  %4133 = vmatpush1.msra.mxu0 0.0
  %4134 = vmatprep.subr.mxu0 0.0
  %4135 = vmatpush1.msra.mxu0 0.0
  %4136 = vmatprep.subr.mxu0 0.0
  %4137 = vmatpush1.msra.mxu0 0.0
  %4138 = vmatprep.subr.mxu0 0.0
  %4139 = vmatpush1.msra.mxu0 0.0
  %4140 = vmatprep.subr.mxu0 0.0
  %4141 = vmatpush1.msra.mxu0 0.0
  %4142 = vmatprep.subr.mxu0 0.0
  %4143 = vmatpush1.msra.mxu0 0.0
  %4144 = vmatprep.subr.mxu0 0.0
  %4145 = vmatpush1.msra.mxu0 0.0
  %4146 = vmatprep.subr.mxu0 0.0
  %4147 = vmatpush1.msra.mxu0 0.0
  %4148 = vmatprep.subr.mxu0 0.0
  %4149 = vmatpush1.msra.mxu0 0.0
  %4150 = vmatprep.subr.mxu0 0.0
  %4151 = vmatpush1.msra.mxu0 0.0
  %4152 = vmatprep.subr.mxu0 0.0
  %4153 = vmatpush1.msra.mxu0 0.0
  %4154 = vmatprep.subr.mxu0 0.0
  %4155 = vmatpush1.msra.mxu0 0.0
  %4156 = vmatprep.mubr.f32.mxu0 0.0
  %4157 = vmatmul.mubr.f32.gmra.mrb[0].mxu0 %v4081
  %v4158 = vpop.f32.mrb[0].mxu0
  %v4159 = vadd.f32 0.0, %v4158
  %v4160 = vpop.f32.mrb[0].mxu0
  %4161 = vmatprep.mubr.f32.mxu0 0.0
  %4162 = vmatmul.mubr.f32.gmra.mrb[0].mxu0 %v4084
  %v4163 = vpop.f32.mrb[0].mxu0
  %v4164 = vadd.f32 0.0, %v4163
  %v4165 = vpop.f32.mrb[0].mxu0
  %4166 = vmatprep.mubr.f32.mxu0 0.0
  %4167 = vmatmul.mubr.f32.gmra.mrb[0].mxu0 %v4087
  %v4168 = vpop.f32.mrb[0].mxu0
  %v4169 = vadd.f32 0.0, %v4168
  %v4170 = vpop.f32.mrb[0].mxu0
  %4171 = vmatprep.mubr.f32.mxu0 0.0
  %4172 = vmatmul.mubr.f32.gmra.mrb[0].mxu0 %v4090
  %v4173 = vpop.f32.mrb[0].mxu0
  %v4174 = vadd.f32 0.0, %v4173
  %v4175 = vpop.f32.mrb[0].mxu0
  %4176 = vdwg.mxu0
  %v4177 = vadd.f32 %v3984, %v4159
  %v4178 = vadd.f32 %v3985, %v4164
  %v4179 = vadd.f32 %v3986, %v4169
  %v4180 = vadd.f32 %v3987, %v4174
  %s4181 = scalar_lea.vmem %s9, 32
  %v4182 = vld [vmem:[%s4181] sm:$0xff]
  %4183 = vmatprep.subr.mxu0 0.0
  %4184 = vmatpush1.msra.mxu0 %v4182
  %4185 = vmatprep.subr.mxu0 0.0
  %4186 = vmatpush1.msra.mxu0 0.0
  %4187 = vmatprep.subr.mxu0 0.0
  %4188 = vmatpush1.msra.mxu0 0.0
  %4189 = vmatprep.subr.mxu0 0.0
  %4190 = vmatpush1.msra.mxu0 0.0
  %4191 = vmatprep.subr.mxu0 0.0
  %4192 = vmatpush1.msra.mxu0 0.0
  %4193 = vmatprep.subr.mxu0 0.0
  %4194 = vmatpush1.msra.mxu0 0.0
  %4195 = vmatprep.subr.mxu0 0.0
  %4196 = vmatpush1.msra.mxu0 0.0
  %4197 = vmatprep.subr.mxu0 0.0
  %4198 = vmatpush1.msra.mxu0 0.0
  %4199 = vmatprep.subr.mxu0 0.0
  %4200 = vmatpush1.msra.mxu0 0.0
  %4201 = vmatprep.subr.mxu0 0.0
  %4202 = vmatpush1.msra.mxu0 0.0
  %4203 = vmatprep.subr.mxu0 0.0
  %4204 = vmatpush1.msra.mxu0 0.0
  %4205 = vmatprep.subr.mxu0 0.0
  %4206 = vmatpush1.msra.mxu0 0.0
  %4207 = vmatprep.subr.mxu0 0.0
  %4208 = vmatpush1.msra.mxu0 0.0
  %4209 = vmatprep.subr.mxu0 0.0
  %4210 = vmatpush1.msra.mxu0 0.0
  %4211 = vmatprep.subr.mxu0 0.0
  %4212 = vmatpush1.msra.mxu0 0.0
  %4213 = vmatprep.subr.mxu0 0.0
  %4214 = vmatpush1.msra.mxu0 0.0
  %4215 = vmatprep.subr.mxu0 0.0
  %4216 = vmatpush1.msra.mxu0 0.0
  %4217 = vmatprep.subr.mxu0 0.0
  %4218 = vmatpush1.msra.mxu0 0.0
  %4219 = vmatprep.subr.mxu0 0.0
  %4220 = vmatpush1.msra.mxu0 0.0
  %4221 = vmatprep.subr.mxu0 0.0
  %4222 = vmatpush1.msra.mxu0 0.0
  %4223 = vmatprep.subr.mxu0 0.0
  %4224 = vmatpush1.msra.mxu0 0.0
  %4225 = vmatprep.subr.mxu0 0.0
  %4226 = vmatpush1.msra.mxu0 0.0
  %4227 = vmatprep.subr.mxu0 0.0
  %4228 = vmatpush1.msra.mxu0 0.0
  %4229 = vmatprep.subr.mxu0 0.0
  %4230 = vmatpush1.msra.mxu0 0.0
  %4231 = vmatprep.subr.mxu0 0.0
  %4232 = vmatpush1.msra.mxu0 0.0
  %4233 = vmatprep.subr.mxu0 0.0
  %4234 = vmatpush1.msra.mxu0 0.0
  %4235 = vmatprep.subr.mxu0 0.0
  %4236 = vmatpush1.msra.mxu0 0.0
  %4237 = vmatprep.subr.mxu0 0.0
  %4238 = vmatpush1.msra.mxu0 0.0
  %4239 = vmatprep.subr.mxu0 0.0
  %4240 = vmatpush1.msra.mxu0 0.0
  %4241 = vmatprep.subr.mxu0 0.0
  %4242 = vmatpush1.msra.mxu0 0.0
  %4243 = vmatprep.subr.mxu0 0.0
  %4244 = vmatpush1.msra.mxu0 0.0
  %4245 = vmatprep.subr.mxu0 0.0
  %4246 = vmatpush1.msra.mxu0 0.0
  %4247 = vmatprep.mubr.f32.mxu0 0.0
  %4248 = vmatmul.mubr.f32.gmra.mrb[0].mxu0 %v3409
  %v4249 = vpop.f32.mrb[0].mxu0
  %v4250 = vadd.f32 0.0, %v4249
  %v4251 = vpop.f32.mrb[0].mxu0
  %4252 = vmatprep.mubr.f32.mxu0 0.0
  %4253 = vmatmul.mubr.f32.gmra.mrb[0].mxu0 %v3412
  %v4254 = vpop.f32.mrb[0].mxu0
  %v4255 = vadd.f32 0.0, %v4254
  %v4256 = vpop.f32.mrb[0].mxu0
  %4257 = vmatprep.mubr.f32.mxu0 0.0
  %4258 = vmatmul.mubr.f32.gmra.mrb[0].mxu0 %v3415
  %v4259 = vpop.f32.mrb[0].mxu0
  %v4260 = vadd.f32 0.0, %v4259
  %v4261 = vpop.f32.mrb[0].mxu0
  %4262 = vmatprep.mubr.f32.mxu0 0.0
  %4263 = vmatmul.mubr.f32.gmra.mrb[0].mxu0 %v3418
  %v4264 = vpop.f32.mrb[0].mxu0
  %v4265 = vadd.f32 0.0, %v4264
  %v4266 = vpop.f32.mrb[0].mxu0
  %4267 = vdwg.mxu0
  %s4268 = scalar_lea.vmem %s10, 128
  %v4269 = vld [vmem:[%s4268] sm:$0xff]
  %v4270 = vld [vmem:[%s4268 + $0x8] sm:$0xff]
  %v4271 = vld [vmem:[%s4268 + $0x10] sm:$0xff]
  %v4272 = vld [vmem:[%s4268 + $0x18] sm:$0xff]
  %v4274 = vsel %vm61, %v4269, 0
  %v4277 = vsel %vm61, %v4270, 0
  %v4280 = vsel %vm61, %v4271, 0
  %v4283 = vsel %vm61, %v4272, 0
  %4285 = vmatprep.subr.mxu0 0.0
  %4286 = vmatpush1.msra.mxu0 %v4250
  %4287 = vmatprep.subr.mxu0 0.0
  %4288 = vmatpush1.msra.mxu0 %v4255
  %4289 = vmatprep.subr.mxu0 0.0
  %4290 = vmatpush1.msra.mxu0 %v4260
  %4291 = vmatprep.subr.mxu0 0.0
  %4292 = vmatpush1.msra.mxu0 %v4265
  %4293 = vmatprep.subr.mxu0 0.0
  %4294 = vmatpush1.msra.mxu0 0.0
  %4295 = vmatprep.subr.mxu0 0.0
  %4296 = vmatpush1.msra.mxu0 0.0
  %4297 = vmatprep.subr.mxu0 0.0
  %4298 = vmatpush1.msra.mxu0 0.0
  %4299 = vmatprep.subr.mxu0 0.0
  %4300 = vmatpush1.msra.mxu0 0.0
  %4301 = vmatprep.subr.mxu0 0.0
  %4302 = vmatpush1.msra.mxu0 0.0
  %4303 = vmatprep.subr.mxu0 0.0
  %4304 = vmatpush1.msra.mxu0 0.0
  %4305 = vmatprep.subr.mxu0 0.0
  %4306 = vmatpush1.msra.mxu0 0.0
  %4307 = vmatprep.subr.mxu0 0.0
  %4308 = vmatpush1.msra.mxu0 0.0
  %4309 = vmatprep.subr.mxu0 0.0
  %4310 = vmatpush1.msra.mxu0 0.0
  %4311 = vmatprep.subr.mxu0 0.0
  %4312 = vmatpush1.msra.mxu0 0.0
  %4313 = vmatprep.subr.mxu0 0.0
  %4314 = vmatpush1.msra.mxu0 0.0
  %4315 = vmatprep.subr.mxu0 0.0
  %4316 = vmatpush1.msra.mxu0 0.0
  %4317 = vmatprep.subr.mxu0 0.0
  %4318 = vmatpush1.msra.mxu0 0.0
  %4319 = vmatprep.subr.mxu0 0.0
  %4320 = vmatpush1.msra.mxu0 0.0
  %4321 = vmatprep.subr.mxu0 0.0
  %4322 = vmatpush1.msra.mxu0 0.0
  %4323 = vmatprep.subr.mxu0 0.0
  %4324 = vmatpush1.msra.mxu0 0.0
  %4325 = vmatprep.subr.mxu0 0.0
  %4326 = vmatpush1.msra.mxu0 0.0
  %4327 = vmatprep.subr.mxu0 0.0
  %4328 = vmatpush1.msra.mxu0 0.0
  %4329 = vmatprep.subr.mxu0 0.0
  %4330 = vmatpush1.msra.mxu0 0.0
  %4331 = vmatprep.subr.mxu0 0.0
  %4332 = vmatpush1.msra.mxu0 0.0
  %4333 = vmatprep.subr.mxu0 0.0
  %4334 = vmatpush1.msra.mxu0 0.0
  %4335 = vmatprep.subr.mxu0 0.0
  %4336 = vmatpush1.msra.mxu0 0.0
  %4337 = vmatprep.subr.mxu0 0.0
  %4338 = vmatpush1.msra.mxu0 0.0
  %4339 = vmatprep.subr.mxu0 0.0
  %4340 = vmatpush1.msra.mxu0 0.0
  %4341 = vmatprep.subr.mxu0 0.0
  %4342 = vmatpush1.msra.mxu0 0.0
  %4343 = vmatprep.subr.mxu0 0.0
  %4344 = vmatpush1.msra.mxu0 0.0
  %4345 = vmatprep.subr.mxu0 0.0
  %4346 = vmatpush1.msra.mxu0 0.0
  %4347 = vmatprep.subr.mxu0 0.0
  %4348 = vmatpush1.msra.mxu0 0.0
  %4349 = vmatprep.mubr.f32.mxu0 0.0
  %4350 = vmatmul.mubr.f32.gmra.mrb[0].mxu0 %v4274
  %v4351 = vpop.f32.mrb[0].mxu0
  %v4352 = vadd.f32 0.0, %v4351
  %v4353 = vpop.f32.mrb[0].mxu0
  %4354 = vmatprep.mubr.f32.mxu0 0.0
  %4355 = vmatmul.mubr.f32.gmra.mrb[0].mxu0 %v4277
  %v4356 = vpop.f32.mrb[0].mxu0
  %v4357 = vadd.f32 0.0, %v4356
  %v4358 = vpop.f32.mrb[0].mxu0
  %4359 = vmatprep.mubr.f32.mxu0 0.0
  %4360 = vmatmul.mubr.f32.gmra.mrb[0].mxu0 %v4280
  %v4361 = vpop.f32.mrb[0].mxu0
  %v4362 = vadd.f32 0.0, %v4361
  %v4363 = vpop.f32.mrb[0].mxu0
  %4364 = vmatprep.mubr.f32.mxu0 0.0
  %4365 = vmatmul.mubr.f32.gmra.mrb[0].mxu0 %v4283
  %v4366 = vpop.f32.mrb[0].mxu0
  %v4367 = vadd.f32 0.0, %v4366
  %v4368 = vpop.f32.mrb[0].mxu0
  %4369 = vdwg.mxu0
  %v4370 = vadd.f32 %v4177, %v4352
  %v4371 = vadd.f32 %v4178, %v4357
  %v4372 = vadd.f32 %v4179, %v4362
  %v4373 = vadd.f32 %v4180, %v4367
  %s4374 = scalar_lea.vmem %s9, 40
  %v4375 = vld [vmem:[%s4374] sm:$0xff]
  %4376 = vmatprep.subr.mxu0 0.0
  %4377 = vmatpush1.msra.mxu0 %v4375
  %4378 = vmatprep.subr.mxu0 0.0
  %4379 = vmatpush1.msra.mxu0 0.0
  %4380 = vmatprep.subr.mxu0 0.0
  %4381 = vmatpush1.msra.mxu0 0.0
  %4382 = vmatprep.subr.mxu0 0.0
  %4383 = vmatpush1.msra.mxu0 0.0
  %4384 = vmatprep.subr.mxu0 0.0
  %4385 = vmatpush1.msra.mxu0 0.0
  %4386 = vmatprep.subr.mxu0 0.0
  %4387 = vmatpush1.msra.mxu0 0.0
  %4388 = vmatprep.subr.mxu0 0.0
  %4389 = vmatpush1.msra.mxu0 0.0
  %4390 = vmatprep.subr.mxu0 0.0
  %4391 = vmatpush1.msra.mxu0 0.0
  %4392 = vmatprep.subr.mxu0 0.0
  %4393 = vmatpush1.msra.mxu0 0.0
  %4394 = vmatprep.subr.mxu0 0.0
  %4395 = vmatpush1.msra.mxu0 0.0
  %4396 = vmatprep.subr.mxu0 0.0
  %4397 = vmatpush1.msra.mxu0 0.0
  %4398 = vmatprep.subr.mxu0 0.0
  %4399 = vmatpush1.msra.mxu0 0.0
  %4400 = vmatprep.subr.mxu0 0.0
  %4401 = vmatpush1.msra.mxu0 0.0
  %4402 = vmatprep.subr.mxu0 0.0
  %4403 = vmatpush1.msra.mxu0 0.0
  %4404 = vmatprep.subr.mxu0 0.0
  %4405 = vmatpush1.msra.mxu0 0.0
  %4406 = vmatprep.subr.mxu0 0.0
  %4407 = vmatpush1.msra.mxu0 0.0
  %4408 = vmatprep.subr.mxu0 0.0
  %4409 = vmatpush1.msra.mxu0 0.0
  %4410 = vmatprep.subr.mxu0 0.0
  %4411 = vmatpush1.msra.mxu0 0.0
  %4412 = vmatprep.subr.mxu0 0.0
  %4413 = vmatpush1.msra.mxu0 0.0
  %4414 = vmatprep.subr.mxu0 0.0
  %4415 = vmatpush1.msra.mxu0 0.0
  %4416 = vmatprep.subr.mxu0 0.0
  %4417 = vmatpush1.msra.mxu0 0.0
  %4418 = vmatprep.subr.mxu0 0.0
  %4419 = vmatpush1.msra.mxu0 0.0
  %4420 = vmatprep.subr.mxu0 0.0
  %4421 = vmatpush1.msra.mxu0 0.0
  %4422 = vmatprep.subr.mxu0 0.0
  %4423 = vmatpush1.msra.mxu0 0.0
  %4424 = vmatprep.subr.mxu0 0.0
  %4425 = vmatpush1.msra.mxu0 0.0
  %4426 = vmatprep.subr.mxu0 0.0
  %4427 = vmatpush1.msra.mxu0 0.0
  %4428 = vmatprep.subr.mxu0 0.0
  %4429 = vmatpush1.msra.mxu0 0.0
  %4430 = vmatprep.subr.mxu0 0.0
  %4431 = vmatpush1.msra.mxu0 0.0
  %4432 = vmatprep.subr.mxu0 0.0
  %4433 = vmatpush1.msra.mxu0 0.0
  %4434 = vmatprep.subr.mxu0 0.0
  %4435 = vmatpush1.msra.mxu0 0.0
  %4436 = vmatprep.subr.mxu0 0.0
  %4437 = vmatpush1.msra.mxu0 0.0
  %4438 = vmatprep.subr.mxu0 0.0
  %4439 = vmatpush1.msra.mxu0 0.0
  %4440 = vmatprep.mubr.f32.mxu0 0.0
  %4441 = vmatmul.mubr.f32.gmra.mrb[0].mxu0 %v3409
  %v4442 = vpop.f32.mrb[0].mxu0
  %v4443 = vadd.f32 0.0, %v4442
  %v4444 = vpop.f32.mrb[0].mxu0
  %4445 = vmatprep.mubr.f32.mxu0 0.0
  %4446 = vmatmul.mubr.f32.gmra.mrb[0].mxu0 %v3412
  %v4447 = vpop.f32.mrb[0].mxu0
  %v4448 = vadd.f32 0.0, %v4447
  %v4449 = vpop.f32.mrb[0].mxu0
  %4450 = vmatprep.mubr.f32.mxu0 0.0
  %4451 = vmatmul.mubr.f32.gmra.mrb[0].mxu0 %v3415
  %v4452 = vpop.f32.mrb[0].mxu0
  %v4453 = vadd.f32 0.0, %v4452
  %v4454 = vpop.f32.mrb[0].mxu0
  %4455 = vmatprep.mubr.f32.mxu0 0.0
  %4456 = vmatmul.mubr.f32.gmra.mrb[0].mxu0 %v3418
  %v4457 = vpop.f32.mrb[0].mxu0
  %v4458 = vadd.f32 0.0, %v4457
  %v4459 = vpop.f32.mrb[0].mxu0
  %4460 = vdwg.mxu0
  %s4461 = scalar_lea.vmem %s10, 160
  %v4462 = vld [vmem:[%s4461] sm:$0xff]
  %v4463 = vld [vmem:[%s4461 + $0x8] sm:$0xff]
  %v4464 = vld [vmem:[%s4461 + $0x10] sm:$0xff]
  %v4465 = vld [vmem:[%s4461 + $0x18] sm:$0xff]
  %v4467 = vsel %vm61, %v4462, 0
  %v4470 = vsel %vm61, %v4463, 0
  %v4473 = vsel %vm61, %v4464, 0
  %v4476 = vsel %vm61, %v4465, 0
  %4478 = vmatprep.subr.mxu0 0.0
  %4479 = vmatpush1.msra.mxu0 %v4443
  %4480 = vmatprep.subr.mxu0 0.0
  %4481 = vmatpush1.msra.mxu0 %v4448
  %4482 = vmatprep.subr.mxu0 0.0
  %4483 = vmatpush1.msra.mxu0 %v4453
  %4484 = vmatprep.subr.mxu0 0.0
  %4485 = vmatpush1.msra.mxu0 %v4458
  %4486 = vmatprep.subr.mxu0 0.0
  %4487 = vmatpush1.msra.mxu0 0.0
  %4488 = vmatprep.subr.mxu0 0.0
  %4489 = vmatpush1.msra.mxu0 0.0
  %4490 = vmatprep.subr.mxu0 0.0
  %4491 = vmatpush1.msra.mxu0 0.0
  %4492 = vmatprep.subr.mxu0 0.0
  %4493 = vmatpush1.msra.mxu0 0.0
  %4494 = vmatprep.subr.mxu0 0.0
  %4495 = vmatpush1.msra.mxu0 0.0
  %4496 = vmatprep.subr.mxu0 0.0
  %4497 = vmatpush1.msra.mxu0 0.0
  %4498 = vmatprep.subr.mxu0 0.0
  %4499 = vmatpush1.msra.mxu0 0.0
  %4500 = vmatprep.subr.mxu0 0.0
  %4501 = vmatpush1.msra.mxu0 0.0
  %4502 = vmatprep.subr.mxu0 0.0
  %4503 = vmatpush1.msra.mxu0 0.0
  %4504 = vmatprep.subr.mxu0 0.0
  %4505 = vmatpush1.msra.mxu0 0.0
  %4506 = vmatprep.subr.mxu0 0.0
  %4507 = vmatpush1.msra.mxu0 0.0
  %4508 = vmatprep.subr.mxu0 0.0
  %4509 = vmatpush1.msra.mxu0 0.0
  %4510 = vmatprep.subr.mxu0 0.0
  %4511 = vmatpush1.msra.mxu0 0.0
  %4512 = vmatprep.subr.mxu0 0.0
  %4513 = vmatpush1.msra.mxu0 0.0
  %4514 = vmatprep.subr.mxu0 0.0
  %4515 = vmatpush1.msra.mxu0 0.0
  %4516 = vmatprep.subr.mxu0 0.0
  %4517 = vmatpush1.msra.mxu0 0.0
  %4518 = vmatprep.subr.mxu0 0.0
  %4519 = vmatpush1.msra.mxu0 0.0
  %4520 = vmatprep.subr.mxu0 0.0
  %4521 = vmatpush1.msra.mxu0 0.0
  %4522 = vmatprep.subr.mxu0 0.0
  %4523 = vmatpush1.msra.mxu0 0.0
  %4524 = vmatprep.subr.mxu0 0.0
  %4525 = vmatpush1.msra.mxu0 0.0
  %4526 = vmatprep.subr.mxu0 0.0
  %4527 = vmatpush1.msra.mxu0 0.0
  %4528 = vmatprep.subr.mxu0 0.0
  %4529 = vmatpush1.msra.mxu0 0.0
  %4530 = vmatprep.subr.mxu0 0.0
  %4531 = vmatpush1.msra.mxu0 0.0
  %4532 = vmatprep.subr.mxu0 0.0
  %4533 = vmatpush1.msra.mxu0 0.0
  %4534 = vmatprep.subr.mxu0 0.0
  %4535 = vmatpush1.msra.mxu0 0.0
  %4536 = vmatprep.subr.mxu0 0.0
  %4537 = vmatpush1.msra.mxu0 0.0
  %4538 = vmatprep.subr.mxu0 0.0
  %4539 = vmatpush1.msra.mxu0 0.0
  %4540 = vmatprep.subr.mxu0 0.0
  %4541 = vmatpush1.msra.mxu0 0.0
  %4542 = vmatprep.mubr.f32.mxu0 0.0
  %4543 = vmatmul.mubr.f32.gmra.mrb[0].mxu0 %v4467
  %v4544 = vpop.f32.mrb[0].mxu0
  %v4545 = vadd.f32 0.0, %v4544
  %v4546 = vpop.f32.mrb[0].mxu0
  %4547 = vmatprep.mubr.f32.mxu0 0.0
  %4548 = vmatmul.mubr.f32.gmra.mrb[0].mxu0 %v4470
  %v4549 = vpop.f32.mrb[0].mxu0
  %v4550 = vadd.f32 0.0, %v4549
  %v4551 = vpop.f32.mrb[0].mxu0
  %4552 = vmatprep.mubr.f32.mxu0 0.0
  %4553 = vmatmul.mubr.f32.gmra.mrb[0].mxu0 %v4473
  %v4554 = vpop.f32.mrb[0].mxu0
  %v4555 = vadd.f32 0.0, %v4554
  %v4556 = vpop.f32.mrb[0].mxu0
  %4557 = vmatprep.mubr.f32.mxu0 0.0
  %4558 = vmatmul.mubr.f32.gmra.mrb[0].mxu0 %v4476
  %v4559 = vpop.f32.mrb[0].mxu0
  %v4560 = vadd.f32 0.0, %v4559
  %v4561 = vpop.f32.mrb[0].mxu0
  %4562 = vdwg.mxu0
  %v4563 = vadd.f32 %v4370, %v4545
  %v4564 = vadd.f32 %v4371, %v4550
  %v4565 = vadd.f32 %v4372, %v4555
  %v4566 = vadd.f32 %v4373, %v4560
  %s4567 = scalar_lea.vmem %s9, 48
  %v4568 = vld [vmem:[%s4567] sm:$0xff]
  %4569 = vmatprep.subr.mxu0 0.0
  %4570 = vmatpush1.msra.mxu0 %v4568
  %4571 = vmatprep.subr.mxu0 0.0
  %4572 = vmatpush1.msra.mxu0 0.0
  %4573 = vmatprep.subr.mxu0 0.0
  %4574 = vmatpush1.msra.mxu0 0.0
  %4575 = vmatprep.subr.mxu0 0.0
  %4576 = vmatpush1.msra.mxu0 0.0
  %4577 = vmatprep.subr.mxu0 0.0
  %4578 = vmatpush1.msra.mxu0 0.0
  %4579 = vmatprep.subr.mxu0 0.0
  %4580 = vmatpush1.msra.mxu0 0.0
  %4581 = vmatprep.subr.mxu0 0.0
  %4582 = vmatpush1.msra.mxu0 0.0
  %4583 = vmatprep.subr.mxu0 0.0
  %4584 = vmatpush1.msra.mxu0 0.0
  %4585 = vmatprep.subr.mxu0 0.0
  %4586 = vmatpush1.msra.mxu0 0.0
  %4587 = vmatprep.subr.mxu0 0.0
  %4588 = vmatpush1.msra.mxu0 0.0
  %4589 = vmatprep.subr.mxu0 0.0
  %4590 = vmatpush1.msra.mxu0 0.0
  %4591 = vmatprep.subr.mxu0 0.0
  %4592 = vmatpush1.msra.mxu0 0.0
  %4593 = vmatprep.subr.mxu0 0.0
  %4594 = vmatpush1.msra.mxu0 0.0
  %4595 = vmatprep.subr.mxu0 0.0
  %4596 = vmatpush1.msra.mxu0 0.0
  %4597 = vmatprep.subr.mxu0 0.0
  %4598 = vmatpush1.msra.mxu0 0.0
  %4599 = vmatprep.subr.mxu0 0.0
  %4600 = vmatpush1.msra.mxu0 0.0
  %4601 = vmatprep.subr.mxu0 0.0
  %4602 = vmatpush1.msra.mxu0 0.0
  %4603 = vmatprep.subr.mxu0 0.0
  %4604 = vmatpush1.msra.mxu0 0.0
  %4605 = vmatprep.subr.mxu0 0.0
  %4606 = vmatpush1.msra.mxu0 0.0
  %4607 = vmatprep.subr.mxu0 0.0
  %4608 = vmatpush1.msra.mxu0 0.0
  %4609 = vmatprep.subr.mxu0 0.0
  %4610 = vmatpush1.msra.mxu0 0.0
  %4611 = vmatprep.subr.mxu0 0.0
  %4612 = vmatpush1.msra.mxu0 0.0
  %4613 = vmatprep.subr.mxu0 0.0
  %4614 = vmatpush1.msra.mxu0 0.0
  %4615 = vmatprep.subr.mxu0 0.0
  %4616 = vmatpush1.msra.mxu0 0.0
  %4617 = vmatprep.subr.mxu0 0.0
  %4618 = vmatpush1.msra.mxu0 0.0
  %4619 = vmatprep.subr.mxu0 0.0
  %4620 = vmatpush1.msra.mxu0 0.0
  %4621 = vmatprep.subr.mxu0 0.0
  %4622 = vmatpush1.msra.mxu0 0.0
  %4623 = vmatprep.subr.mxu0 0.0
  %4624 = vmatpush1.msra.mxu0 0.0
  %4625 = vmatprep.subr.mxu0 0.0
  %4626 = vmatpush1.msra.mxu0 0.0
  %4627 = vmatprep.subr.mxu0 0.0
  %4628 = vmatpush1.msra.mxu0 0.0
  %4629 = vmatprep.subr.mxu0 0.0
  %4630 = vmatpush1.msra.mxu0 0.0
  %4631 = vmatprep.subr.mxu0 0.0
  %4632 = vmatpush1.msra.mxu0 0.0
  %4633 = vmatprep.mubr.f32.mxu0 0.0
  %4634 = vmatmul.mubr.f32.gmra.mrb[0].mxu0 %v3409
  %v4635 = vpop.f32.mrb[0].mxu0
  %v4636 = vadd.f32 0.0, %v4635
  %v4637 = vpop.f32.mrb[0].mxu0
  %4638 = vmatprep.mubr.f32.mxu0 0.0
  %4639 = vmatmul.mubr.f32.gmra.mrb[0].mxu0 %v3412
  %v4640 = vpop.f32.mrb[0].mxu0
  %v4641 = vadd.f32 0.0, %v4640
  %v4642 = vpop.f32.mrb[0].mxu0
  %4643 = vmatprep.mubr.f32.mxu0 0.0
  %4644 = vmatmul.mubr.f32.gmra.mrb[0].mxu0 %v3415
  %v4645 = vpop.f32.mrb[0].mxu0
  %v4646 = vadd.f32 0.0, %v4645
  %v4647 = vpop.f32.mrb[0].mxu0
  %4648 = vmatprep.mubr.f32.mxu0 0.0
  %4649 = vmatmul.mubr.f32.gmra.mrb[0].mxu0 %v3418
  %v4650 = vpop.f32.mrb[0].mxu0
  %v4651 = vadd.f32 0.0, %v4650
  %v4652 = vpop.f32.mrb[0].mxu0
  %4653 = vdwg.mxu0
  %s4654 = scalar_lea.vmem %s10, 192
  %v4655 = vld [vmem:[%s4654] sm:$0xff]
  %v4656 = vld [vmem:[%s4654 + $0x8] sm:$0xff]
  %v4657 = vld [vmem:[%s4654 + $0x10] sm:$0xff]
  %v4658 = vld [vmem:[%s4654 + $0x18] sm:$0xff]
  %v4660 = vsel %vm61, %v4655, 0
  %v4663 = vsel %vm61, %v4656, 0
  %v4666 = vsel %vm61, %v4657, 0
  %v4669 = vsel %vm61, %v4658, 0
  %4671 = vmatprep.subr.mxu0 0.0
  %4672 = vmatpush1.msra.mxu0 %v4636
  %4673 = vmatprep.subr.mxu0 0.0
  %4674 = vmatpush1.msra.mxu0 %v4641
  %4675 = vmatprep.subr.mxu0 0.0
  %4676 = vmatpush1.msra.mxu0 %v4646
  %4677 = vmatprep.subr.mxu0 0.0
  %4678 = vmatpush1.msra.mxu0 %v4651
  %4679 = vmatprep.subr.mxu0 0.0
  %4680 = vmatpush1.msra.mxu0 0.0
  %4681 = vmatprep.subr.mxu0 0.0
  %4682 = vmatpush1.msra.mxu0 0.0
  %4683 = vmatprep.subr.mxu0 0.0
  %4684 = vmatpush1.msra.mxu0 0.0
  %4685 = vmatprep.subr.mxu0 0.0
  %4686 = vmatpush1.msra.mxu0 0.0
  %4687 = vmatprep.subr.mxu0 0.0
  %4688 = vmatpush1.msra.mxu0 0.0
  %4689 = vmatprep.subr.mxu0 0.0
  %4690 = vmatpush1.msra.mxu0 0.0
  %4691 = vmatprep.subr.mxu0 0.0
  %4692 = vmatpush1.msra.mxu0 0.0
  %4693 = vmatprep.subr.mxu0 0.0
  %4694 = vmatpush1.msra.mxu0 0.0
  %4695 = vmatprep.subr.mxu0 0.0
  %4696 = vmatpush1.msra.mxu0 0.0
  %4697 = vmatprep.subr.mxu0 0.0
  %4698 = vmatpush1.msra.mxu0 0.0
  %4699 = vmatprep.subr.mxu0 0.0
  %4700 = vmatpush1.msra.mxu0 0.0
  %4701 = vmatprep.subr.mxu0 0.0
  %4702 = vmatpush1.msra.mxu0 0.0
  %4703 = vmatprep.subr.mxu0 0.0
  %4704 = vmatpush1.msra.mxu0 0.0
  %4705 = vmatprep.subr.mxu0 0.0
  %4706 = vmatpush1.msra.mxu0 0.0
  %4707 = vmatprep.subr.mxu0 0.0
  %4708 = vmatpush1.msra.mxu0 0.0
  %4709 = vmatprep.subr.mxu0 0.0
  %4710 = vmatpush1.msra.mxu0 0.0
  %4711 = vmatprep.subr.mxu0 0.0
  %4712 = vmatpush1.msra.mxu0 0.0
  %4713 = vmatprep.subr.mxu0 0.0
  %4714 = vmatpush1.msra.mxu0 0.0
  %4715 = vmatprep.subr.mxu0 0.0
  %4716 = vmatpush1.msra.mxu0 0.0
  %4717 = vmatprep.subr.mxu0 0.0
  %4718 = vmatpush1.msra.mxu0 0.0
  %4719 = vmatprep.subr.mxu0 0.0
  %4720 = vmatpush1.msra.mxu0 0.0
  %4721 = vmatprep.subr.mxu0 0.0
  %4722 = vmatpush1.msra.mxu0 0.0
  %4723 = vmatprep.subr.mxu0 0.0
  %4724 = vmatpush1.msra.mxu0 0.0
  %4725 = vmatprep.subr.mxu0 0.0
  %4726 = vmatpush1.msra.mxu0 0.0
  %4727 = vmatprep.subr.mxu0 0.0
  %4728 = vmatpush1.msra.mxu0 0.0
  %4729 = vmatprep.subr.mxu0 0.0
  %4730 = vmatpush1.msra.mxu0 0.0
  %4731 = vmatprep.subr.mxu0 0.0
  %4732 = vmatpush1.msra.mxu0 0.0
  %4733 = vmatprep.subr.mxu0 0.0
  %4734 = vmatpush1.msra.mxu0 0.0
  %4735 = vmatprep.mubr.f32.mxu0 0.0
  %4736 = vmatmul.mubr.f32.gmra.mrb[0].mxu0 %v4660
  %v4737 = vpop.f32.mrb[0].mxu0
  %v4738 = vadd.f32 0.0, %v4737
  %v4739 = vpop.f32.mrb[0].mxu0
  %4740 = vmatprep.mubr.f32.mxu0 0.0
  %4741 = vmatmul.mubr.f32.gmra.mrb[0].mxu0 %v4663
  %v4742 = vpop.f32.mrb[0].mxu0
  %v4743 = vadd.f32 0.0, %v4742
  %v4744 = vpop.f32.mrb[0].mxu0
  %4745 = vmatprep.mubr.f32.mxu0 0.0
  %4746 = vmatmul.mubr.f32.gmra.mrb[0].mxu0 %v4666
  %v4747 = vpop.f32.mrb[0].mxu0
  %v4748 = vadd.f32 0.0, %v4747
  %v4749 = vpop.f32.mrb[0].mxu0
  %4750 = vmatprep.mubr.f32.mxu0 0.0
  %4751 = vmatmul.mubr.f32.gmra.mrb[0].mxu0 %v4669
  %v4752 = vpop.f32.mrb[0].mxu0
  %v4753 = vadd.f32 0.0, %v4752
  %v4754 = vpop.f32.mrb[0].mxu0
  %4755 = vdwg.mxu0
  %v4756 = vadd.f32 %v4563, %v4738
  %v4757 = vadd.f32 %v4564, %v4743
  %v4758 = vadd.f32 %v4565, %v4748
  %v4759 = vadd.f32 %v4566, %v4753
  %s4760 = scalar_lea.vmem %s9, 56
  %v4761 = vld [vmem:[%s4760] sm:$0xff]
  %4762 = vmatprep.subr.mxu0 0.0
  %4763 = vmatpush1.msra.mxu0 %v4761
  %4764 = vmatprep.subr.mxu0 0.0
  %4765 = vmatpush1.msra.mxu0 0.0
  %4766 = vmatprep.subr.mxu0 0.0
  %4767 = vmatpush1.msra.mxu0 0.0
  %4768 = vmatprep.subr.mxu0 0.0
  %4769 = vmatpush1.msra.mxu0 0.0
  %4770 = vmatprep.subr.mxu0 0.0
  %4771 = vmatpush1.msra.mxu0 0.0
  %4772 = vmatprep.subr.mxu0 0.0
  %4773 = vmatpush1.msra.mxu0 0.0
  %4774 = vmatprep.subr.mxu0 0.0
  %4775 = vmatpush1.msra.mxu0 0.0
  %4776 = vmatprep.subr.mxu0 0.0
  %4777 = vmatpush1.msra.mxu0 0.0
  %4778 = vmatprep.subr.mxu0 0.0
  %4779 = vmatpush1.msra.mxu0 0.0
  %4780 = vmatprep.subr.mxu0 0.0
  %4781 = vmatpush1.msra.mxu0 0.0
  %4782 = vmatprep.subr.mxu0 0.0
  %4783 = vmatpush1.msra.mxu0 0.0
  %4784 = vmatprep.subr.mxu0 0.0
  %4785 = vmatpush1.msra.mxu0 0.0
  %4786 = vmatprep.subr.mxu0 0.0
  %4787 = vmatpush1.msra.mxu0 0.0
  %4788 = vmatprep.subr.mxu0 0.0
  %4789 = vmatpush1.msra.mxu0 0.0
  %4790 = vmatprep.subr.mxu0 0.0
  %4791 = vmatpush1.msra.mxu0 0.0
  %4792 = vmatprep.subr.mxu0 0.0
  %4793 = vmatpush1.msra.mxu0 0.0
  %4794 = vmatprep.subr.mxu0 0.0
  %4795 = vmatpush1.msra.mxu0 0.0
  %4796 = vmatprep.subr.mxu0 0.0
  %4797 = vmatpush1.msra.mxu0 0.0
  %4798 = vmatprep.subr.mxu0 0.0
  %4799 = vmatpush1.msra.mxu0 0.0
  %4800 = vmatprep.subr.mxu0 0.0
  %4801 = vmatpush1.msra.mxu0 0.0
  %4802 = vmatprep.subr.mxu0 0.0
  %4803 = vmatpush1.msra.mxu0 0.0
  %4804 = vmatprep.subr.mxu0 0.0
  %4805 = vmatpush1.msra.mxu0 0.0
  %4806 = vmatprep.subr.mxu0 0.0
  %4807 = vmatpush1.msra.mxu0 0.0
  %4808 = vmatprep.subr.mxu0 0.0
  %4809 = vmatpush1.msra.mxu0 0.0
  %4810 = vmatprep.subr.mxu0 0.0
  %4811 = vmatpush1.msra.mxu0 0.0
  %4812 = vmatprep.subr.mxu0 0.0
  %4813 = vmatpush1.msra.mxu0 0.0
  %4814 = vmatprep.subr.mxu0 0.0
  %4815 = vmatpush1.msra.mxu0 0.0
  %4816 = vmatprep.subr.mxu0 0.0
  %4817 = vmatpush1.msra.mxu0 0.0
  %4818 = vmatprep.subr.mxu0 0.0
  %4819 = vmatpush1.msra.mxu0 0.0
  %4820 = vmatprep.subr.mxu0 0.0
  %4821 = vmatpush1.msra.mxu0 0.0
  %4822 = vmatprep.subr.mxu0 0.0
  %4823 = vmatpush1.msra.mxu0 0.0
  %4824 = vmatprep.subr.mxu0 0.0
  %4825 = vmatpush1.msra.mxu0 0.0
  %4826 = vmatprep.mubr.f32.mxu0 0.0
  %4827 = vmatmul.mubr.f32.gmra.mrb[0].mxu0 %v3409
  %v4828 = vpop.f32.mrb[0].mxu0
  %v4829 = vadd.f32 0.0, %v4828
  %v4830 = vpop.f32.mrb[0].mxu0
  %4831 = vmatprep.mubr.f32.mxu0 0.0
  %4832 = vmatmul.mubr.f32.gmra.mrb[0].mxu0 %v3412
  %v4833 = vpop.f32.mrb[0].mxu0
  %v4834 = vadd.f32 0.0, %v4833
  %v4835 = vpop.f32.mrb[0].mxu0
  %4836 = vmatprep.mubr.f32.mxu0 0.0
  %4837 = vmatmul.mubr.f32.gmra.mrb[0].mxu0 %v3415
  %v4838 = vpop.f32.mrb[0].mxu0
  %v4839 = vadd.f32 0.0, %v4838
  %v4840 = vpop.f32.mrb[0].mxu0
  %4841 = vmatprep.mubr.f32.mxu0 0.0
  %4842 = vmatmul.mubr.f32.gmra.mrb[0].mxu0 %v3418
  %v4843 = vpop.f32.mrb[0].mxu0
  %v4844 = vadd.f32 0.0, %v4843
  %v4845 = vpop.f32.mrb[0].mxu0
  %4846 = vdwg.mxu0
  %s4847 = scalar_lea.vmem %s10, 224
  %v4848 = vld [vmem:[%s4847] sm:$0xff]
  %v4849 = vld [vmem:[%s4847 + $0x8] sm:$0xff]
  %v4850 = vld [vmem:[%s4847 + $0x10] sm:$0xff]
  %v4851 = vld [vmem:[%s4847 + $0x18] sm:$0xff]
  %v4853 = vsel %vm61, %v4848, 0
  %v4856 = vsel %vm61, %v4849, 0
  %v4859 = vsel %vm61, %v4850, 0
  %v4862 = vsel %vm61, %v4851, 0
  %4864 = vmatprep.subr.mxu0 0.0
  %4865 = vmatpush1.msra.mxu0 %v4829
  %4866 = vmatprep.subr.mxu0 0.0
  %4867 = vmatpush1.msra.mxu0 %v4834
  %4868 = vmatprep.subr.mxu0 0.0
  %4869 = vmatpush1.msra.mxu0 %v4839
  %4870 = vmatprep.subr.mxu0 0.0
  %4871 = vmatpush1.msra.mxu0 %v4844
  %4872 = vmatprep.subr.mxu0 0.0
  %4873 = vmatpush1.msra.mxu0 0.0
  %4874 = vmatprep.subr.mxu0 0.0
  %4875 = vmatpush1.msra.mxu0 0.0
  %4876 = vmatprep.subr.mxu0 0.0
  %4877 = vmatpush1.msra.mxu0 0.0
  %4878 = vmatprep.subr.mxu0 0.0
  %4879 = vmatpush1.msra.mxu0 0.0
  %4880 = vmatprep.subr.mxu0 0.0
  %4881 = vmatpush1.msra.mxu0 0.0
  %4882 = vmatprep.subr.mxu0 0.0
  %4883 = vmatpush1.msra.mxu0 0.0
  %4884 = vmatprep.subr.mxu0 0.0
  %4885 = vmatpush1.msra.mxu0 0.0
  %4886 = vmatprep.subr.mxu0 0.0
  %4887 = vmatpush1.msra.mxu0 0.0
  %4888 = vmatprep.subr.mxu0 0.0
  %4889 = vmatpush1.msra.mxu0 0.0
  %4890 = vmatprep.subr.mxu0 0.0
  %4891 = vmatpush1.msra.mxu0 0.0
  %4892 = vmatprep.subr.mxu0 0.0
  %4893 = vmatpush1.msra.mxu0 0.0
  %4894 = vmatprep.subr.mxu0 0.0
  %4895 = vmatpush1.msra.mxu0 0.0
  %4896 = vmatprep.subr.mxu0 0.0
  %4897 = vmatpush1.msra.mxu0 0.0
  %4898 = vmatprep.subr.mxu0 0.0
  %4899 = vmatpush1.msra.mxu0 0.0
  %4900 = vmatprep.subr.mxu0 0.0
  %4901 = vmatpush1.msra.mxu0 0.0
  %4902 = vmatprep.subr.mxu0 0.0
  %4903 = vmatpush1.msra.mxu0 0.0
  %4904 = vmatprep.subr.mxu0 0.0
  %4905 = vmatpush1.msra.mxu0 0.0
  %4906 = vmatprep.subr.mxu0 0.0
  %4907 = vmatpush1.msra.mxu0 0.0
  %4908 = vmatprep.subr.mxu0 0.0
  %4909 = vmatpush1.msra.mxu0 0.0
  %4910 = vmatprep.subr.mxu0 0.0
  %4911 = vmatpush1.msra.mxu0 0.0
  %4912 = vmatprep.subr.mxu0 0.0
  %4913 = vmatpush1.msra.mxu0 0.0
  %4914 = vmatprep.subr.mxu0 0.0
  %4915 = vmatpush1.msra.mxu0 0.0
  %4916 = vmatprep.subr.mxu0 0.0
  %4917 = vmatpush1.msra.mxu0 0.0
  %4918 = vmatprep.subr.mxu0 0.0
  %4919 = vmatpush1.msra.mxu0 0.0
  %4920 = vmatprep.subr.mxu0 0.0
  %4921 = vmatpush1.msra.mxu0 0.0
  %4922 = vmatprep.subr.mxu0 0.0
  %4923 = vmatpush1.msra.mxu0 0.0
  %4924 = vmatprep.subr.mxu0 0.0
  %4925 = vmatpush1.msra.mxu0 0.0
  %4926 = vmatprep.subr.mxu0 0.0
  %4927 = vmatpush1.msra.mxu0 0.0
  %4928 = vmatprep.mubr.f32.mxu0 0.0
  %4929 = vmatmul.mubr.f32.gmra.mrb[0].mxu0 %v4853
  %v4930 = vpop.f32.mrb[0].mxu0
  %v4931 = vadd.f32 0.0, %v4930
  %v4932 = vpop.f32.mrb[0].mxu0
  %4933 = vmatprep.mubr.f32.mxu0 0.0
  %4934 = vmatmul.mubr.f32.gmra.mrb[0].mxu0 %v4856
  %v4935 = vpop.f32.mrb[0].mxu0
  %v4936 = vadd.f32 0.0, %v4935
  %v4937 = vpop.f32.mrb[0].mxu0
  %4938 = vmatprep.mubr.f32.mxu0 0.0
  %4939 = vmatmul.mubr.f32.gmra.mrb[0].mxu0 %v4859
  %v4940 = vpop.f32.mrb[0].mxu0
  %v4941 = vadd.f32 0.0, %v4940
  %v4942 = vpop.f32.mrb[0].mxu0
  %4943 = vmatprep.mubr.f32.mxu0 0.0
  %4944 = vmatmul.mubr.f32.gmra.mrb[0].mxu0 %v4862
  %v4945 = vpop.f32.mrb[0].mxu0
  %v4946 = vadd.f32 0.0, %v4945
  %v4947 = vpop.f32.mrb[0].mxu0
  %4948 = vdwg.mxu0
  %v4949 = vadd.f32 %v4756, %v4931
  %v4950 = vadd.f32 %v4757, %v4936
  %v4951 = vadd.f32 %v4758, %v4941
  %v4952 = vadd.f32 %v4759, %v4946
  %s4953 = scalar_lea.vmem %s9, 64
  %v4954 = vld [vmem:[%s4953] sm:$0xff]
  %4955 = vmatprep.subr.mxu0 0.0
  %4956 = vmatpush1.msra.mxu0 %v4954
  %4957 = vmatprep.subr.mxu0 0.0
  %4958 = vmatpush1.msra.mxu0 0.0
  %4959 = vmatprep.subr.mxu0 0.0
  %4960 = vmatpush1.msra.mxu0 0.0
  %4961 = vmatprep.subr.mxu0 0.0
  %4962 = vmatpush1.msra.mxu0 0.0
  %4963 = vmatprep.subr.mxu0 0.0
  %4964 = vmatpush1.msra.mxu0 0.0
  %4965 = vmatprep.subr.mxu0 0.0
  %4966 = vmatpush1.msra.mxu0 0.0
  %4967 = vmatprep.subr.mxu0 0.0
  %4968 = vmatpush1.msra.mxu0 0.0
  %4969 = vmatprep.subr.mxu0 0.0
  %4970 = vmatpush1.msra.mxu0 0.0
  %4971 = vmatprep.subr.mxu0 0.0
  %4972 = vmatpush1.msra.mxu0 0.0
  %4973 = vmatprep.subr.mxu0 0.0
  %4974 = vmatpush1.msra.mxu0 0.0
  %4975 = vmatprep.subr.mxu0 0.0
  %4976 = vmatpush1.msra.mxu0 0.0
  %4977 = vmatprep.subr.mxu0 0.0
  %4978 = vmatpush1.msra.mxu0 0.0
  %4979 = vmatprep.subr.mxu0 0.0
  %4980 = vmatpush1.msra.mxu0 0.0
  %4981 = vmatprep.subr.mxu0 0.0
  %4982 = vmatpush1.msra.mxu0 0.0
  %4983 = vmatprep.subr.mxu0 0.0
  %4984 = vmatpush1.msra.mxu0 0.0
  %4985 = vmatprep.subr.mxu0 0.0
  %4986 = vmatpush1.msra.mxu0 0.0
  %4987 = vmatprep.subr.mxu0 0.0
  %4988 = vmatpush1.msra.mxu0 0.0
  %4989 = vmatprep.subr.mxu0 0.0
  %4990 = vmatpush1.msra.mxu0 0.0
  %4991 = vmatprep.subr.mxu0 0.0
  %4992 = vmatpush1.msra.mxu0 0.0
  %4993 = vmatprep.subr.mxu0 0.0
  %4994 = vmatpush1.msra.mxu0 0.0
  %4995 = vmatprep.subr.mxu0 0.0
  %4996 = vmatpush1.msra.mxu0 0.0
  %4997 = vmatprep.subr.mxu0 0.0
  %4998 = vmatpush1.msra.mxu0 0.0
  %4999 = vmatprep.subr.mxu0 0.0
  %5000 = vmatpush1.msra.mxu0 0.0
  %5001 = vmatprep.subr.mxu0 0.0
  %5002 = vmatpush1.msra.mxu0 0.0
  %5003 = vmatprep.subr.mxu0 0.0
  %5004 = vmatpush1.msra.mxu0 0.0
  %5005 = vmatprep.subr.mxu0 0.0
  %5006 = vmatpush1.msra.mxu0 0.0
  %5007 = vmatprep.subr.mxu0 0.0
  %5008 = vmatpush1.msra.mxu0 0.0
  %5009 = vmatprep.subr.mxu0 0.0
  %5010 = vmatpush1.msra.mxu0 0.0
  %5011 = vmatprep.subr.mxu0 0.0
  %5012 = vmatpush1.msra.mxu0 0.0
  %5013 = vmatprep.subr.mxu0 0.0
  %5014 = vmatpush1.msra.mxu0 0.0
  %5015 = vmatprep.subr.mxu0 0.0
  %5016 = vmatpush1.msra.mxu0 0.0
  %5017 = vmatprep.subr.mxu0 0.0
  %5018 = vmatpush1.msra.mxu0 0.0
  %5019 = vmatprep.mubr.f32.mxu0 0.0
  %5020 = vmatmul.mubr.f32.gmra.mrb[0].mxu0 %v3409
  %v5021 = vpop.f32.mrb[0].mxu0
  %v5022 = vadd.f32 0.0, %v5021
  %v5023 = vpop.f32.mrb[0].mxu0
  %5024 = vmatprep.mubr.f32.mxu0 0.0
  %5025 = vmatmul.mubr.f32.gmra.mrb[0].mxu0 %v3412
  %v5026 = vpop.f32.mrb[0].mxu0
  %v5027 = vadd.f32 0.0, %v5026
  %v5028 = vpop.f32.mrb[0].mxu0
  %5029 = vmatprep.mubr.f32.mxu0 0.0
  %5030 = vmatmul.mubr.f32.gmra.mrb[0].mxu0 %v3415
  %v5031 = vpop.f32.mrb[0].mxu0
  %v5032 = vadd.f32 0.0, %v5031
  %v5033 = vpop.f32.mrb[0].mxu0
  %5034 = vmatprep.mubr.f32.mxu0 0.0
  %5035 = vmatmul.mubr.f32.gmra.mrb[0].mxu0 %v3418
  %v5036 = vpop.f32.mrb[0].mxu0
  %v5037 = vadd.f32 0.0, %v5036
  %v5038 = vpop.f32.mrb[0].mxu0
  %5039 = vdwg.mxu0
  %s5040 = scalar_lea.vmem %s10, 256
  %v5041 = vld [vmem:[%s5040] sm:$0xff]
  %v5042 = vld [vmem:[%s5040 + $0x8] sm:$0xff]
  %v5043 = vld [vmem:[%s5040 + $0x10] sm:$0xff]
  %v5044 = vld [vmem:[%s5040 + $0x18] sm:$0xff]
  %v5046 = vsel %vm61, %v5041, 0
  %v5049 = vsel %vm61, %v5042, 0
  %v5052 = vsel %vm61, %v5043, 0
  %v5055 = vsel %vm61, %v5044, 0
  %5057 = vmatprep.subr.mxu0 0.0
  %5058 = vmatpush1.msra.mxu0 %v5022
  %5059 = vmatprep.subr.mxu0 0.0
  %5060 = vmatpush1.msra.mxu0 %v5027
  %5061 = vmatprep.subr.mxu0 0.0
  %5062 = vmatpush1.msra.mxu0 %v5032
  %5063 = vmatprep.subr.mxu0 0.0
  %5064 = vmatpush1.msra.mxu0 %v5037
  %5065 = vmatprep.subr.mxu0 0.0
  %5066 = vmatpush1.msra.mxu0 0.0
  %5067 = vmatprep.subr.mxu0 0.0
  %5068 = vmatpush1.msra.mxu0 0.0
  %5069 = vmatprep.subr.mxu0 0.0
  %5070 = vmatpush1.msra.mxu0 0.0
  %5071 = vmatprep.subr.mxu0 0.0
  %5072 = vmatpush1.msra.mxu0 0.0
  %5073 = vmatprep.subr.mxu0 0.0
  %5074 = vmatpush1.msra.mxu0 0.0
  %5075 = vmatprep.subr.mxu0 0.0
  %5076 = vmatpush1.msra.mxu0 0.0
  %5077 = vmatprep.subr.mxu0 0.0
  %5078 = vmatpush1.msra.mxu0 0.0
  %5079 = vmatprep.subr.mxu0 0.0
  %5080 = vmatpush1.msra.mxu0 0.0
  %5081 = vmatprep.subr.mxu0 0.0
  %5082 = vmatpush1.msra.mxu0 0.0
  %5083 = vmatprep.subr.mxu0 0.0
  %5084 = vmatpush1.msra.mxu0 0.0
  %5085 = vmatprep.subr.mxu0 0.0
  %5086 = vmatpush1.msra.mxu0 0.0
  %5087 = vmatprep.subr.mxu0 0.0
  %5088 = vmatpush1.msra.mxu0 0.0
  %5089 = vmatprep.subr.mxu0 0.0
  %5090 = vmatpush1.msra.mxu0 0.0
  %5091 = vmatprep.subr.mxu0 0.0
  %5092 = vmatpush1.msra.mxu0 0.0
  %5093 = vmatprep.subr.mxu0 0.0
  %5094 = vmatpush1.msra.mxu0 0.0
  %5095 = vmatprep.subr.mxu0 0.0
  %5096 = vmatpush1.msra.mxu0 0.0
  %5097 = vmatprep.subr.mxu0 0.0
  %5098 = vmatpush1.msra.mxu0 0.0
  %5099 = vmatprep.subr.mxu0 0.0
  %5100 = vmatpush1.msra.mxu0 0.0
  %5101 = vmatprep.subr.mxu0 0.0
  %5102 = vmatpush1.msra.mxu0 0.0
  %5103 = vmatprep.subr.mxu0 0.0
  %5104 = vmatpush1.msra.mxu0 0.0
  %5105 = vmatprep.subr.mxu0 0.0
  %5106 = vmatpush1.msra.mxu0 0.0
  %5107 = vmatprep.subr.mxu0 0.0
  %5108 = vmatpush1.msra.mxu0 0.0
  %5109 = vmatprep.subr.mxu0 0.0
  %5110 = vmatpush1.msra.mxu0 0.0
  %5111 = vmatprep.subr.mxu0 0.0
  %5112 = vmatpush1.msra.mxu0 0.0
  %5113 = vmatprep.subr.mxu0 0.0
  %5114 = vmatpush1.msra.mxu0 0.0
  %5115 = vmatprep.subr.mxu0 0.0
  %5116 = vmatpush1.msra.mxu0 0.0
  %5117 = vmatprep.subr.mxu0 0.0
  %5118 = vmatpush1.msra.mxu0 0.0
  %5119 = vmatprep.subr.mxu0 0.0
  %5120 = vmatpush1.msra.mxu0 0.0
  %5121 = vmatprep.mubr.f32.mxu0 0.0
  %5122 = vmatmul.mubr.f32.gmra.mrb[0].mxu0 %v5046
  %v5123 = vpop.f32.mrb[0].mxu0
  %v5124 = vadd.f32 0.0, %v5123
  %v5125 = vpop.f32.mrb[0].mxu0
  %5126 = vmatprep.mubr.f32.mxu0 0.0
  %5127 = vmatmul.mubr.f32.gmra.mrb[0].mxu0 %v5049
  %v5128 = vpop.f32.mrb[0].mxu0
  %v5129 = vadd.f32 0.0, %v5128
  %v5130 = vpop.f32.mrb[0].mxu0
  %5131 = vmatprep.mubr.f32.mxu0 0.0
  %5132 = vmatmul.mubr.f32.gmra.mrb[0].mxu0 %v5052
  %v5133 = vpop.f32.mrb[0].mxu0
  %v5134 = vadd.f32 0.0, %v5133
  %v5135 = vpop.f32.mrb[0].mxu0
  %5136 = vmatprep.mubr.f32.mxu0 0.0
  %5137 = vmatmul.mubr.f32.gmra.mrb[0].mxu0 %v5055
  %v5138 = vpop.f32.mrb[0].mxu0
  %v5139 = vadd.f32 0.0, %v5138
  %v5140 = vpop.f32.mrb[0].mxu0
  %5141 = vdwg.mxu0
  %v5142 = vadd.f32 %v4949, %v5124
  %v5143 = vadd.f32 %v4950, %v5129
  %v5144 = vadd.f32 %v4951, %v5134
  %v5145 = vadd.f32 %v4952, %v5139
  %v5146 = vld [vmem:[%s11] sm:$0xff]
  %v5147 = vld [vmem:[%s11 + $0x8] sm:$0xff]
  %v5148 = vld [vmem:[%s11 + $0x10] sm:$0xff]
  %v5149 = vld [vmem:[%s11 + $0x18] sm:$0xff]
  %5151 = vset.pattern.permute.xlu0 0
  %5152 = vperm.xlu0 %5151, %v5146
  %v5153 = vpop.permute.xlu0 %5152
  %5156 = vset.pattern.permute.xlu0 0
  %5157 = vperm.xlu0 %5156, %v5147
  %v5158 = vpop.permute.xlu0 %5157
  %5161 = vset.pattern.permute.xlu0 0
  %5162 = vperm.xlu0 %5161, %v5148
  %v5163 = vpop.permute.xlu0 %5162
  %5166 = vset.pattern.permute.xlu0 0
  %5167 = vperm.xlu0 %5166, %v5149
  %v5168 = vpop.permute.xlu0 %5167
  %v5170 = vadd.f32 %v5142, %v5153
  %v5171 = vadd.f32 %v5143, %v5158
  %v5172 = vadd.f32 %v5144, %v5163
  %v5173 = vadd.f32 %v5145, %v5168
  %v5174 = vmax.f32 %v5170, 0.0
  %v5175 = vmax.f32 %v5171, 0.0
  %v5176 = vmax.f32 %v5172, 0.0
  %v5177 = vmax.f32 %v5173, 0.0
  %v5178 = vld [vmem:[%s12] sm:$0x3]
  %vm5179 = vcmask 15360
  %v5181 = vsel %vm5179, %v5174, 0
  %v5184 = vsel %vm5179, %v5175, 0
  %v5187 = vsel %vm5179, %v5176, 0
  %v5190 = vsel %vm5179, %v5177, 0
  %vm5192 = vcmask 1041408
  %v5194 = vsel %vm5192, %v5178, 0
  %5196 = vmatprep.subr.mxu0 0.0
  %5197 = vmatpush1.msra.mxu0 %v5194
  %5198 = vmatprep.subr.mxu0 0.0
  %5199 = vmatpush1.msra.mxu0 0.0
  %5200 = vmatprep.subr.mxu0 0.0
  %5201 = vmatpush1.msra.mxu0 0.0
  %5202 = vmatprep.subr.mxu0 0.0
  %5203 = vmatpush1.msra.mxu0 0.0
  %5204 = vmatprep.subr.mxu0 0.0
  %5205 = vmatpush1.msra.mxu0 0.0
  %5206 = vmatprep.subr.mxu0 0.0
  %5207 = vmatpush1.msra.mxu0 0.0
  %5208 = vmatprep.subr.mxu0 0.0
  %5209 = vmatpush1.msra.mxu0 0.0
  %5210 = vmatprep.subr.mxu0 0.0
  %5211 = vmatpush1.msra.mxu0 0.0
  %5212 = vmatprep.subr.mxu0 0.0
  %5213 = vmatpush1.msra.mxu0 0.0
  %5214 = vmatprep.subr.mxu0 0.0
  %5215 = vmatpush1.msra.mxu0 0.0
  %5216 = vmatprep.subr.mxu0 0.0
  %5217 = vmatpush1.msra.mxu0 0.0
  %5218 = vmatprep.subr.mxu0 0.0
  %5219 = vmatpush1.msra.mxu0 0.0
  %5220 = vmatprep.subr.mxu0 0.0
  %5221 = vmatpush1.msra.mxu0 0.0
  %5222 = vmatprep.subr.mxu0 0.0
  %5223 = vmatpush1.msra.mxu0 0.0
  %5224 = vmatprep.subr.mxu0 0.0
  %5225 = vmatpush1.msra.mxu0 0.0
  %5226 = vmatprep.subr.mxu0 0.0
  %5227 = vmatpush1.msra.mxu0 0.0
  %5228 = vmatprep.subr.mxu0 0.0
  %5229 = vmatpush1.msra.mxu0 0.0
  %5230 = vmatprep.subr.mxu0 0.0
  %5231 = vmatpush1.msra.mxu0 0.0
  %5232 = vmatprep.subr.mxu0 0.0
  %5233 = vmatpush1.msra.mxu0 0.0
  %5234 = vmatprep.subr.mxu0 0.0
  %5235 = vmatpush1.msra.mxu0 0.0
  %5236 = vmatprep.subr.mxu0 0.0
  %5237 = vmatpush1.msra.mxu0 0.0
  %5238 = vmatprep.subr.mxu0 0.0
  %5239 = vmatpush1.msra.mxu0 0.0
  %5240 = vmatprep.subr.mxu0 0.0
  %5241 = vmatpush1.msra.mxu0 0.0
  %5242 = vmatprep.subr.mxu0 0.0
  %5243 = vmatpush1.msra.mxu0 0.0
  %5244 = vmatprep.subr.mxu0 0.0
  %5245 = vmatpush1.msra.mxu0 0.0
  %5246 = vmatprep.subr.mxu0 0.0
  %5247 = vmatpush1.msra.mxu0 0.0
  %5248 = vmatprep.subr.mxu0 0.0
  %5249 = vmatpush1.msra.mxu0 0.0
  %5250 = vmatprep.subr.mxu0 0.0
  %5251 = vmatpush1.msra.mxu0 0.0
  %5252 = vmatprep.subr.mxu0 0.0
  %5253 = vmatpush1.msra.mxu0 0.0
  %5254 = vmatprep.subr.mxu0 0.0
  %5255 = vmatpush1.msra.mxu0 0.0
  %5256 = vmatprep.subr.mxu0 0.0
  %5257 = vmatpush1.msra.mxu0 0.0
  %5258 = vmatprep.subr.mxu0 0.0
  %5259 = vmatpush1.msra.mxu0 0.0
  %5260 = vmatprep.mubr.f32.mxu0 0.0
  %5261 = vmatmul.mubr.f32.gmra.mrb[0].mxu0 %v5181
  %v5262 = vpop.f32.mrb[0].mxu0
  %v5263 = vadd.f32 0.0, %v5262
  %v5264 = vpop.f32.mrb[0].mxu0
  %5265 = vmatprep.mubr.f32.mxu0 0.0
  %5266 = vmatmul.mubr.f32.gmra.mrb[0].mxu0 %v5184
  %v5267 = vpop.f32.mrb[0].mxu0
  %v5268 = vadd.f32 0.0, %v5267
  %v5269 = vpop.f32.mrb[0].mxu0
  %5270 = vmatprep.mubr.f32.mxu0 0.0
  %5271 = vmatmul.mubr.f32.gmra.mrb[0].mxu0 %v5187
  %v5272 = vpop.f32.mrb[0].mxu0
  %v5273 = vadd.f32 0.0, %v5272
  %v5274 = vpop.f32.mrb[0].mxu0
  %5275 = vmatprep.mubr.f32.mxu0 0.0
  %5276 = vmatmul.mubr.f32.gmra.mrb[0].mxu0 %v5190
  %v5277 = vpop.f32.mrb[0].mxu0
  %v5278 = vadd.f32 0.0, %v5277
  %v5279 = vpop.f32.mrb[0].mxu0
  %5280 = vdwg.mxu0
  %v5281 = vld [vmem:[%s13] sm:$0xff]
  %v5282 = vld [vmem:[%s13 + $0x8] sm:$0x3]
  %v5283 = vld [vmem:[%s14] sm:$0xff]
  %v5284 = vld [vmem:[%s14 + $0x8] sm:$0x3]
  %5286 = vset.pattern.permute.xlu0 0
  %5287 = vperm.xlu0 %5286, %v5283
  %v5288 = vpop.permute.xlu0 %5287
  %5291 = vset.pattern.permute.xlu0 0
  %5292 = vperm.xlu0 %5291, %v5284
  %v5293 = vpop.permute.xlu0 %5292
  %v5296 = vsel %vm61, %v5281, 0
  %v5299 = vsel %vm61, %v5282, 0
  %5301 = vmatprep.subr.mxu0 0.0
  %5302 = vmatpush1.msra.mxu0 %v5263
  %5303 = vmatprep.subr.mxu0 0.0
  %5304 = vmatpush1.msra.mxu0 %v5268
  %5305 = vmatprep.subr.mxu0 0.0
  %5306 = vmatpush1.msra.mxu0 %v5273
  %5307 = vmatprep.subr.mxu0 0.0
  %5308 = vmatpush1.msra.mxu0 %v5278
  %5309 = vmatprep.subr.mxu0 0.0
  %5310 = vmatpush1.msra.mxu0 0.0
  %5311 = vmatprep.subr.mxu0 0.0
  %5312 = vmatpush1.msra.mxu0 0.0
  %5313 = vmatprep.subr.mxu0 0.0
  %5314 = vmatpush1.msra.mxu0 0.0
  %5315 = vmatprep.subr.mxu0 0.0
  %5316 = vmatpush1.msra.mxu0 0.0
  %5317 = vmatprep.subr.mxu0 0.0
  %5318 = vmatpush1.msra.mxu0 0.0
  %5319 = vmatprep.subr.mxu0 0.0
  %5320 = vmatpush1.msra.mxu0 0.0
  %5321 = vmatprep.subr.mxu0 0.0
  %5322 = vmatpush1.msra.mxu0 0.0
  %5323 = vmatprep.subr.mxu0 0.0
  %5324 = vmatpush1.msra.mxu0 0.0
  %5325 = vmatprep.subr.mxu0 0.0
  %5326 = vmatpush1.msra.mxu0 0.0
  %5327 = vmatprep.subr.mxu0 0.0
  %5328 = vmatpush1.msra.mxu0 0.0
  %5329 = vmatprep.subr.mxu0 0.0
  %5330 = vmatpush1.msra.mxu0 0.0
  %5331 = vmatprep.subr.mxu0 0.0
  %5332 = vmatpush1.msra.mxu0 0.0
  %5333 = vmatprep.subr.mxu0 0.0
  %5334 = vmatpush1.msra.mxu0 0.0
  %5335 = vmatprep.subr.mxu0 0.0
  %5336 = vmatpush1.msra.mxu0 0.0
  %5337 = vmatprep.subr.mxu0 0.0
  %5338 = vmatpush1.msra.mxu0 0.0
  %5339 = vmatprep.subr.mxu0 0.0
  %5340 = vmatpush1.msra.mxu0 0.0
  %5341 = vmatprep.subr.mxu0 0.0
  %5342 = vmatpush1.msra.mxu0 0.0
  %5343 = vmatprep.subr.mxu0 0.0
  %5344 = vmatpush1.msra.mxu0 0.0
  %5345 = vmatprep.subr.mxu0 0.0
  %5346 = vmatpush1.msra.mxu0 0.0
  %5347 = vmatprep.subr.mxu0 0.0
  %5348 = vmatpush1.msra.mxu0 0.0
  %5349 = vmatprep.subr.mxu0 0.0
  %5350 = vmatpush1.msra.mxu0 0.0
  %5351 = vmatprep.subr.mxu0 0.0
  %5352 = vmatpush1.msra.mxu0 0.0
  %5353 = vmatprep.subr.mxu0 0.0
  %5354 = vmatpush1.msra.mxu0 0.0
  %5355 = vmatprep.subr.mxu0 0.0
  %5356 = vmatpush1.msra.mxu0 0.0
  %5357 = vmatprep.subr.mxu0 0.0
  %5358 = vmatpush1.msra.mxu0 0.0
  %5359 = vmatprep.subr.mxu0 0.0
  %5360 = vmatpush1.msra.mxu0 0.0
  %5361 = vmatprep.subr.mxu0 0.0
  %5362 = vmatpush1.msra.mxu0 0.0
  %5363 = vmatprep.subr.mxu0 0.0
  %5364 = vmatpush1.msra.mxu0 0.0
  %5365 = vmatprep.mubr.f32.mxu0 0.0
  %5366 = vmatmul.mubr.f32.gmra.mrb[0].mxu0 %v5296
  %v5367 = vpop.f32.mrb[0].mxu0
  %v5368 = vadd.f32 %v5288, %v5367
  %v5369 = vpop.f32.mrb[0].mxu0
  %5370 = vmatprep.mubr.f32.mxu0 0.0
  %5371 = vmatmul.mubr.f32.gmra.mrb[0].mxu0 %v5299
  %v5372 = vpop.f32.mrb[0].mxu0
  %v5373 = vadd.f32 %v5293, %v5372
  %v5374 = vpop.f32.mrb[0].mxu0
  %5375 = vdwg.mxu0
  %5376 = vst.msk [vmem:[%s15] sm:$0xff] %vm5179, %v5368
  %vm5377 = vcmask 9216
  %5378 = vst.msk [vmem:[%s15 + $0x8] sm:$0x3] %vm5377, %v5373
  // Predicated region
  $region62: #{fashion_mnist_net.1} parent=0 // pred_check
    _
  $region63: #{fashion_mnist_net.1} parent=0 // pred_check_branch
    %5380 = sbr.rel (0) target = $region65
  $region64: #{fashion_mnist_net.1} parent=0 // pred_region
    _
  $region65: #{fashion_mnist_net.1} parent=0 // pred_fallthru
    _
  // Predicated region
  $region66: #{fashion_mnist_net.1} parent=0 // pred_check
    _
  $region67: #{fashion_mnist_net.1} parent=0 // pred_check_branch
    %5382 = sbr.rel (0) target = $region69
  $region68: #{fashion_mnist_net.1} parent=0 // pred_region
    _
  $region69: #{fashion_mnist_net.1} parent=0 // pred_fallthru
    _

</llo_original>
